<compile_context>
chip_gen: v7x
topology: tpu7x:2x2x1
jax: 0.10.0
libtpu: 0.0.40
codegen_flags: <defaults>
</compile_context>

<pallas_src>
import functools

import jax
import jax.numpy as jnp
from jax.experimental import pallas as pl
from jax.experimental.pallas import tpu as pltpu

EPS = 1e-5


def _round_up(x, m):
    return (x + m - 1) // m * m


def _pick_tile_m(M, tile_m_max):
    """Rows per grid step. Prefer >=2 grid steps (both v7x TensorCores get work on the
    'parallel' M axis); harmless on 1-TC chips (one extra ~0.35us step)."""
    if M <= 8:
        return 8
    if M <= tile_m_max:
        return _round_up(pl.cdiv(M, 2), 8)
    return tile_m_max


# ---------------------------------------------------------------------------
# Pallas kernels
# ---------------------------------------------------------------------------
def _conv_stage_kernel(x_ref, w_ref, b_ref, y_ref, stats_ref, *, n_rows):
    """bf16 patches @ bf16 folded-weights -> +bias -> ReLU -> bf16 store, plus masked
    per-tile (sum, sum-of-squares) channel stats (f32) for this stage's BatchNorm."""
    acc = jnp.dot(x_ref[...], w_ref[...], preferred_element_type=jnp.float32)
    acc = jnp.maximum(acc + b_ref[...], 0.0)
    y_ref[...] = acc.astype(y_ref.dtype)

    # Batch statistics of relu(conv(.)) from the f32 accumulator; padded rows masked out.
    tile_m = acc.shape[0]
    row = jax.lax.broadcasted_iota(jnp.int32, (tile_m, 1), 0) + pl.program_id(0) * tile_m
    valid = (row < n_rows).astype(jnp.float32)
    masked = acc * valid
    stats_ref[0:1, :] = jnp.sum(masked, axis=0, keepdims=True)          # sum
    stats_ref[1:2, :] = jnp.sum(masked * acc, axis=0, keepdims=True)    # sum of squares


def _fc_stack_kernel(x_ref, w1_ref, b1_ref, w2_ref, b2_ref, w3_ref, b3_ref, w4_ref, b4_ref,
                     o_ref):
    """fc1..fc3 (+ReLU) -> fc4, all weights resident in VMEM; bn3 already folded into fc1."""

    def dense(h, w_ref, b_ref, relu):
        y = jnp.dot(h, w_ref[...], preferred_element_type=jnp.float32) + b_ref[...]
        return jnp.maximum(y, 0.0) if relu else y

    h = dense(x_ref[...], w1_ref, b1_ref, True).astype(jnp.bfloat16)
    h = dense(h, w2_ref, b2_ref, True).astype(jnp.bfloat16)
    h = dense(h, w3_ref, b3_ref, True).astype(jnp.bfloat16)
    o_ref[...] = dense(h, w4_ref, b4_ref, False)


# ---------------------------------------------------------------------------
# Pallas wrappers
# ---------------------------------------------------------------------------
def conv_stage(patches, w_mat, bias, *, tile_m_max=1024):
    """y = relu(patches @ w + b) (bf16 out, lane-padded) plus per-channel
    (mean, rsqrt(var+eps)) of y computed from masked f32 tile statistics."""
    M, K = patches.shape
    K2, O = w_mat.shape
    assert K == K2, (K, K2)
    O_pad = _round_up(O, 128)                       # lane-dense stores
    tile_m = _pick_tile_m(M, tile_m_max)
    grid_m = pl.cdiv(M, tile_m)
    Mp = grid_m * tile_m

    xp = jnp.pad(patches.astype(jnp.bfloat16), ((0, Mp - M), (0, 0)))
    wb = jnp.pad(w_mat.astype(jnp.float32), ((0, 0), (0, O_pad - O))).astype(jnp.bfloat16)
    bp = jnp.pad(bias.astype(jnp.float32).reshape(1, O), ((0, 0), (0, O_pad - O)))

    y, stats = pl.pallas_call(
        functools.partial(_conv_stage_kernel, n_rows=M),
        out_shape=(jax.ShapeDtypeStruct((Mp, O_pad), jnp.bfloat16),
                   jax.ShapeDtypeStruct((grid_m, 2, O_pad), jnp.float32)),
        grid=(grid_m,),
        in_specs=[
            pl.BlockSpec((tile_m, K), lambda i: (i, 0)),    # bf16 patches tile (full K)
            pl.BlockSpec((K, O_pad), lambda i: (0, 0)),     # folded weights, resident
            pl.BlockSpec((1, O_pad), lambda i: (0, 0)),     # folded bias
        ],
        out_specs=(pl.BlockSpec((tile_m, O_pad), lambda i: (i, 0)),
                   pl.BlockSpec((None, 2, O_pad), lambda i: (i, 0, 0))),
        compiler_params=pltpu.CompilerParams(dimension_semantics=("parallel",)),
    )(xp, wb, bp)

    total = jnp.sum(stats, axis=0)[:, :O]                 # (2, O)
    mean = total[0] / M
    var = jnp.maximum(total[1] / M - mean * mean, 0.0)    # biased (training-mode) variance
    inv = jax.lax.rsqrt(var + EPS)
    return y[:M, :O], mean, inv


def fc_stack(x, mean_flat, inv_flat, weights, biases, *, tile_m_max=256):
    """Fused fc1(relu)->fc2(relu)->fc3(relu)->fc4 in one kernel; bn3 folded into fc1."""
    M, K = x.shape
    tile_m = _pick_tile_m(M, tile_m_max)
    grid_m = pl.cdiv(M, tile_m)
    Mp = grid_m * tile_m
    xp = jnp.pad(x.astype(jnp.bfloat16), ((0, Mp - M), (0, 0)))

    # Fold bn3 into fc1:  (x - mean) * inv @ W1 + b1  ==  x @ (inv*W1) + (b1 - mean @ (inv*W1))
    w1 = weights[0].astype(jnp.float32) * inv_flat.astype(jnp.float32)[:, None]
    b1 = biases[0].astype(jnp.float32) - mean_flat.astype(jnp.float32) @ w1
    ws = [w1] + [w.astype(jnp.float32) for w in weights[1:]]
    bs = [b1] + [b.astype(jnp.float32) for b in biases[1:]]

    # Lane-pad the final output to 128 so fc4's store is lane-dense.
    n_out = ws[-1].shape[1]
    n_out_pad = _round_up(n_out, 128)
    ws[-1] = jnp.pad(ws[-1], ((0, 0), (0, n_out_pad - n_out)))
    bs[-1] = jnp.pad(bs[-1], ((0, n_out_pad - n_out),))

    inputs = [xp]
    in_specs = [pl.BlockSpec((tile_m, K), lambda i: (i, 0))]
    for w, b in zip(ws, bs):
        ki, no = w.shape
        inputs += [w.astype(jnp.bfloat16), b.reshape(1, no)]
        in_specs += [pl.BlockSpec((ki, no), lambda i: (0, 0)),
                     pl.BlockSpec((1, no), lambda i: (0, 0))]

    out = pl.pallas_call(
        _fc_stack_kernel,
        out_shape=jax.ShapeDtypeStruct((Mp, n_out_pad), jnp.float32),
        grid=(grid_m,),
        in_specs=in_specs,
        out_specs=pl.BlockSpec((tile_m, n_out_pad), lambda i: (i, 0)),
        compiler_params=pltpu.CompilerParams(dimension_semantics=("parallel",)),
    )(*inputs)
    return out[:M, :n_out]


# ---------------------------------------------------------------------------
# XLA glue (im2col in bf16, 2x2 pools, BN weight folding) on tiny tensors
# ---------------------------------------------------------------------------
def _im2col(x_nhwc, kh, kw):
    N, H, W, C = x_nhwc.shape
    oh, ow = H - kh + 1, W - kw + 1
    cols = [x_nhwc[:, i:i + oh, j:j + ow, :] for i in range(kh) for j in range(kw)]
    return jnp.concatenate(cols, axis=-1).reshape(N * oh * ow, kh * kw * C), oh, ow


def conv_bn_relu_stage(x_nhwc, w_oihw, bias, prev_mean=None, prev_inv=None):
    """relu(conv(bn_prev(x))) with this stage's BN stats; the PREVIOUS stage's BN is folded
    into this stage's weights (valid since BN commutes with 2x2 max/avg pooling)."""
    N, H, W, C = x_nhwc.shape
    O, Ci, kh, kw = w_oihw.shape
    assert Ci == C
    patches, oh, ow = _im2col(x_nhwc.astype(jnp.bfloat16), kh, kw)     # bf16 patches
    # (O, Ci, kh, kw) -> (kh, kw, Ci, O) -> (kh*kw*Ci, O) matches patch column ordering.
    wm = jnp.transpose(w_oihw, (2, 3, 1, 0)).reshape(kh * kw * Ci, O).astype(jnp.float32)
    b = bias.astype(jnp.float32)
    if prev_mean is not None:
        inv_t = jnp.tile(prev_inv.astype(jnp.float32), kh * kw)        # cols = (tap, channel)
        mean_t = jnp.tile(prev_mean.astype(jnp.float32), kh * kw)
        wm = wm * inv_t[:, None]
        b = b - mean_t @ wm
    y, mean, inv = conv_stage(patches, wm, b)
    return y.reshape(N, oh, ow, O), mean, inv


def max_pool_2x2(x):
    N, H, W, C = x.shape
    return jnp.max(x.reshape(N, H // 2, 2, W // 2, 2, C), axis=(2, 4))


def avg_pool_2x2(x):
    N, H, W, C = x.shape
    return jnp.mean(x.reshape(N, H // 2, 2, W // 2, 2, C), axis=(2, 4))


# ---------------------------------------------------------------------------
# Parameters + forward
# ---------------------------------------------------------------------------
def init_params(key, feat_1, feat_2, feat_3, feat_0=3):
    def uniform(k, shape, fan_in):
        bound = 1.0 / jnp.sqrt(jnp.float32(fan_in))
        return jax.random.uniform(k, shape, jnp.float32, -bound, bound)

    ks = jax.random.split(key, 14)
    p = {}
    p["w1"] = uniform(ks[0], (feat_1, feat_0, 3, 3), feat_0 * 9)
    p["b1"] = uniform(ks[1], (feat_1,), feat_0 * 9)
    p["w2"] = uniform(ks[2], (feat_2, feat_1, 4, 4), feat_1 * 16)
    p["b2"] = uniform(ks[3], (feat_2,), feat_1 * 16)
    p["w3"] = uniform(ks[4], (feat_3, feat_2, 2, 2), feat_2 * 4)
    p["b3"] = uniform(ks[5], (feat_3,), feat_2 * 4)
    d_in = 5 * 5 * feat_3
    p["wf1"] = uniform(ks[6], (d_in, 500), d_in)
    p["bf1"] = uniform(ks[7], (500,), d_in)
    p["wf2"] = uniform(ks[8], (500, 300), 500)
    p["bf2"] = uniform(ks[9], (300,), 500)
    p["wf3"] = uniform(ks[10], (300, 100), 300)
    p["bf3"] = uniform(ks[11], (100,), 300)
    p["wf4"] = uniform(ks[12], (100, 10), 100)
    p["bf4"] = uniform(ks[13], (10,), 100)
    return p


def net_forward(x_nchw, params):
    x = jnp.transpose(x_nchw, (0, 2, 3, 1)).astype(jnp.bfloat16)      # NCHW -> NHWC, bf16
    N = x.shape[0]

    # stage 1: z1 = relu(conv1(x)) (+ bn1 stats); pool on raw z1, bn1 folded into conv2's W.
    z1, mean1, inv1 = conv_bn_relu_stage(x, params["w1"], params["b1"])          # (N,30,30,f1)
    q1 = max_pool_2x2(z1)                                                        # (N,15,15,f1)

    # stage 2: z2 = relu(conv2(bn1(q1))) (+ bn2 stats); pool2 on raw z2.
    z2, mean2, inv2 = conv_bn_relu_stage(q1, params["w2"], params["b2"],
                                         mean1, inv1)                            # (N,12,12,f2)
    q2 = avg_pool_2x2(z2)                                                        # (N,6,6,f2)

    # stage 3: z3 = relu(conv3(bn2(q2))) (+ bn3 stats); bn3 folded into fc1's weights.
    z3, mean3, inv3 = conv_bn_relu_stage(q2, params["w3"], params["b3"],
                                         mean2, inv2)                            # (N,5,5,f3)

    # torch's x.view(-1, 5*5*feat_3) flattens in NCHW order: col = c*25 + h*5 + w.
    oh, ow = z3.shape[1], z3.shape[2]
    flat = jnp.transpose(z3, (0, 3, 1, 2)).reshape(N, -1)                        # (N, 25*f3)
    mean3_flat = jnp.repeat(mean3, oh * ow)
    inv3_flat = jnp.repeat(inv3, oh * ow)

    return fc_stack(flat, mean3_flat, inv3_flat,
                    [params["wf1"], params["wf2"], params["wf3"], params["wf4"]],
                    [params["bf1"], params["bf2"], params["bf3"], params["bf4"]])


# TODO(synk): nn.Dropout(p=0.5) is declared in __init__ but never used in forward(); omitted.
# TODO(synk): BatchNorm runs in training mode (batch stats, gamma=1/beta=0 defaults); eval-mode
#             running statistics are not implemented.

if __name__ == "__main__":
    feat_0, feat_1, feat_2, feat_3 = 3, 4, 8, 16
    batch = 2
    key = jax.random.PRNGKey(0)
    k_x, k_p = jax.random.split(key)
    x = jax.random.normal(k_x, (batch, feat_0, 32, 32), jnp.float32)
    params = init_params(k_p, feat_1, feat_2, feat_3, feat_0)

    out = jax.jit(net_forward)(x, params)
    out = jax.block_until_ready(out)
    assert out.shape == (batch, 10), out.shape
    assert bool(jnp.all(jnp.isfinite(out)))
    print("KERNEL_OK")
</pallas_src>

<mosaic_0001>
module attributes {stable_mosaic.version = 11 : i64} {
  func.func @_conv_stage_kernel(%arg0: i32, %arg1: memref<1024x27xbf16, #tpu.memory_space<vmem>>, %arg2: memref<27x128xbf16, #tpu.memory_space<vmem>>, %arg3: memref<1x128xf32, #tpu.memory_space<vmem>>, %arg4: memref<1024x128xbf16, #tpu.memory_space<vmem>>, %arg5: memref<1x2x128xf32, #tpu.memory_space<vmem>>) attributes {dimension_semantics = [#tpu.dimension_semantics<parallel>], iteration_bounds = array<i64: 2>, scalar_prefetch = 0 : i64, scratch_operands = 0 : i64, tpu.core_type = #tpu.core_type<tc>, window_params = [{transform_indices = @transform_0, window_bounds = array<i64: 1024, 27>}, {pipeline_mode = #tpu.pipeline_mode<synchronous>, transform_indices = @transform_1, window_bounds = array<i64: 27, 128>}, {pipeline_mode = #tpu.pipeline_mode<synchronous>, transform_indices = @transform_2, window_bounds = array<i64: 1, 128>}, {transform_indices = @transform_3, window_bounds = array<i64: 1024, 128>}, {transform_indices = @transform_4, window_bounds = array<i64: 1, 2, 128>}]} {
    %c0 = arith.constant 0 : index
    %c0_0 = arith.constant 0 : index
    %0 = vector.load %arg1[%c0, %c0_0] : memref<1024x27xbf16, #tpu.memory_space<vmem>>, vector<1024x27xbf16>
    %c0_1 = arith.constant 0 : index
    %c0_2 = arith.constant 0 : index
    %1 = vector.load %arg2[%c0_1, %c0_2] : memref<27x128xbf16, #tpu.memory_space<vmem>>, vector<27x128xbf16>
    %cst = arith.constant dense<0.000000e+00> : vector<1024x128xf32>
    %2 = tpu.matmul %0, %1, %cst {dimension_numbers = #tpu.dot_dimension_numbers<[1], [0], [0], [1], [0, 0, 1, 1], [], []>} : vector<1024x27xbf16>, vector<27x128xbf16>, vector<1024x128xf32> -> vector<1024x128xf32>
    %c0_3 = arith.constant 0 : index
    %c0_4 = arith.constant 0 : index
    %3 = vector.load %arg3[%c0_3, %c0_4] : memref<1x128xf32, #tpu.memory_space<vmem>>, vector<1x128xf32>
    %4 = vector.broadcast %3 : vector<1x128xf32> to vector<1024x128xf32>
    %5 = arith.addf %2, %4 : vector<1024x128xf32>
    %cst_5 = arith.constant 0.000000e+00 : f32
    %6 = vector.broadcast %cst_5 : f32 to vector<1024x128xf32>
    %7 = arith.maximumf %5, %6 : vector<1024x128xf32>
    %8 = arith.truncf %7 : vector<1024x128xf32> to vector<1024x128xbf16>
    %c0_6 = arith.constant 0 : index
    %c0_7 = arith.constant 0 : index
    %9 = vector.load %arg4[%c0_6, %c0_7] : memref<1024x128xbf16, #tpu.memory_space<vmem>>, vector<1024x128xbf16>
    tpu.vector_store %arg4[%c0_6, %c0_7], %8 {strides = array<i32>} : memref<1024x128xbf16, #tpu.memory_space<vmem>>, vector<1024x128xbf16>,
    %10 = tpu.iota {dimensions = array<i32: 0>} : vector<1024x1xi32>
    %c1024_i32 = arith.constant 1024 : i32
    %11 = arith.muli %arg0, %c1024_i32 : i32
    %12 = vector.broadcast %11 : i32 to vector<1024x1xi32>
    %13 = arith.addi %10, %12 : vector<1024x1xi32>
    %c1800_i32 = arith.constant 1800 : i32
    %14 = vector.broadcast %c1800_i32 : i32 to vector<1024x1xi32>
    %15 = arith.cmpi slt, %13, %14 : vector<1024x1xi32>
    %16 = arith.extui %15 : vector<1024x1xi1> to vector<1024x1xi32>
    %17 = arith.sitofp %16 : vector<1024x1xi32> to vector<1024x1xf32>
    %18 = vector.broadcast %17 : vector<1024x1xf32> to vector<1024x128xf32>
    %19 = arith.mulf %7, %18 : vector<1024x128xf32>
    %cst_8 = arith.constant dense<0.000000e+00> : vector<128xf32>
    %20 = vector.multi_reduction <add>, %19, %cst_8 [0] : vector<1024x128xf32> to vector<128xf32>
    %21 = vector.shape_cast %20 : vector<128xf32> to vector<1x128xf32>
    %c0_9 = arith.constant 0 : index
    %c0_10 = arith.constant 0 : index
    %c0_11 = arith.constant 0 : index
    %22 = vector.load %arg5[%c0_9, %c0_10, %c0_11] : memref<1x2x128xf32, #tpu.memory_space<vmem>>, vector<1x1x128xf32>
    %23 = vector.shape_cast %22 : vector<1x1x128xf32> to vector<1x128xf32>
    %24 = vector.shape_cast %21 : vector<1x128xf32> to vector<1x1x128xf32>
    tpu.vector_store %arg5[%c0_9, %c0_10, %c0_11], %24 {strides = array<i32>} : memref<1x2x128xf32, #tpu.memory_space<vmem>>, vector<1x1x128xf32>,
    %25 = arith.mulf %19, %7 : vector<1024x128xf32>
    %cst_12 = arith.constant dense<0.000000e+00> : vector<128xf32>
    %26 = vector.multi_reduction <add>, %25, %cst_12 [0] : vector<1024x128xf32> to vector<128xf32>
    %27 = vector.shape_cast %26 : vector<128xf32> to vector<1x128xf32>
    %c0_13 = arith.constant 0 : index
    %c1 = arith.constant 1 : index
    %c0_14 = arith.constant 0 : index
    %28 = vector.load %arg5[%c0_13, %c1, %c0_14] : memref<1x2x128xf32, #tpu.memory_space<vmem>>, vector<1x1x128xf32>
    %29 = vector.shape_cast %28 : vector<1x1x128xf32> to vector<1x128xf32>
    %30 = vector.shape_cast %27 : vector<1x128xf32> to vector<1x1x128xf32>
    tpu.vector_store %arg5[%c0_13, %c1, %c0_14], %30 {strides = array<i32>} : memref<1x2x128xf32, #tpu.memory_space<vmem>>, vector<1x1x128xf32>,
    return
  }
  func.func @transform_0(%arg0: i32) -> (i32, i32) {
    %c0_i32 = arith.constant 0 : i32
    %c0_i32_0 = arith.constant 0 : i32
    return %arg0, %c0_i32 : i32, i32
  }
  func.func @transform_1(%arg0: i32) -> (i32, i32) {
    %c0_i32 = arith.constant 0 : i32
    %c0_i32_0 = arith.constant 0 : i32
    %c0_i32_1 = arith.constant 0 : i32
    return %c0_i32, %c0_i32_0 : i32, i32
  }
  func.func @transform_2(%arg0: i32) -> (i32, i32) {
    %c0_i32 = arith.constant 0 : i32
    %c0_i32_0 = arith.constant 0 : i32
    %c0_i32_1 = arith.constant 0 : i32
    return %c0_i32, %c0_i32_0 : i32, i32
  }
  func.func @transform_3(%arg0: i32) -> (i32, i32) {
    %c0_i32 = arith.constant 0 : i32
    %c0_i32_0 = arith.constant 0 : i32
    return %arg0, %c0_i32 : i32, i32
  }
  func.func @transform_4(%arg0: i32) -> (i32, i32, i32) {
    %c0_i32 = arith.constant 0 : i32
    %c0_i32_0 = arith.constant 0 : i32
    %c0_i32_1 = arith.constant 0 : i32
    return %arg0, %c0_i32, %c0_i32_0 : i32, i32, i32
  }
}

module attributes {stable_mosaic.version = 11 : i64} {
  func.func @_conv_stage_kernel(%arg0: i32, %arg1: memref<144x64xbf16, #tpu.memory_space<vmem>>, %arg2: memref<64x128xbf16, #tpu.memory_space<vmem>>, %arg3: memref<1x128xf32, #tpu.memory_space<vmem>>, %arg4: memref<144x128xbf16, #tpu.memory_space<vmem>>, %arg5: memref<1x2x128xf32, #tpu.memory_space<vmem>>) attributes {dimension_semantics = [#tpu.dimension_semantics<parallel>], iteration_bounds = array<i64: 2>, scalar_prefetch = 0 : i64, scratch_operands = 0 : i64, tpu.core_type = #tpu.core_type<tc>, window_params = [{transform_indices = @transform_0, window_bounds = array<i64: 144, 64>}, {pipeline_mode = #tpu.pipeline_mode<synchronous>, transform_indices = @transform_1, window_bounds = array<i64: 64, 128>}, {pipeline_mode = #tpu.pipeline_mode<synchronous>, transform_indices = @transform_2, window_bounds = array<i64: 1, 128>}, {transform_indices = @transform_3, window_bounds = array<i64: 144, 128>}, {transform_indices = @transform_4, window_bounds = array<i64: 1, 2, 128>}]} {
    %c0 = arith.constant 0 : index
    %c0_0 = arith.constant 0 : index
    %0 = vector.load %arg1[%c0, %c0_0] : memref<144x64xbf16, #tpu.memory_space<vmem>>, vector<144x64xbf16>
    %c0_1 = arith.constant 0 : index
    %c0_2 = arith.constant 0 : index
    %1 = vector.load %arg2[%c0_1, %c0_2] : memref<64x128xbf16, #tpu.memory_space<vmem>>, vector<64x128xbf16>
    %cst = arith.constant dense<0.000000e+00> : vector<144x128xf32>
    %2 = tpu.matmul %0, %1, %cst {dimension_numbers = #tpu.dot_dimension_numbers<[1], [0], [0], [1], [0, 0, 1, 1], [], []>} : vector<144x64xbf16>, vector<64x128xbf16>, vector<144x128xf32> -> vector<144x128xf32>
    %c0_3 = arith.constant 0 : index
    %c0_4 = arith.constant 0 : index
    %3 = vector.load %arg3[%c0_3, %c0_4] : memref<1x128xf32, #tpu.memory_space<vmem>>, vector<1x128xf32>
    %4 = vector.broadcast %3 : vector<1x128xf32> to vector<144x128xf32>
    %5 = arith.addf %2, %4 : vector<144x128xf32>
    %cst_5 = arith.constant 0.000000e+00 : f32
    %6 = vector.broadcast %cst_5 : f32 to vector<144x128xf32>
    %7 = arith.maximumf %5, %6 : vector<144x128xf32>
    %8 = arith.truncf %7 : vector<144x128xf32> to vector<144x128xbf16>
    %c0_6 = arith.constant 0 : index
    %c0_7 = arith.constant 0 : index
    %9 = vector.load %arg4[%c0_6, %c0_7] : memref<144x128xbf16, #tpu.memory_space<vmem>>, vector<144x128xbf16>
    tpu.vector_store %arg4[%c0_6, %c0_7], %8 {strides = array<i32>} : memref<144x128xbf16, #tpu.memory_space<vmem>>, vector<144x128xbf16>,
    %10 = tpu.iota {dimensions = array<i32: 0>} : vector<144x1xi32>
    %c144_i32 = arith.constant 144 : i32
    %11 = arith.muli %arg0, %c144_i32 : i32
    %12 = vector.broadcast %11 : i32 to vector<144x1xi32>
    %13 = arith.addi %10, %12 : vector<144x1xi32>
    %c288_i32 = arith.constant 288 : i32
    %14 = vector.broadcast %c288_i32 : i32 to vector<144x1xi32>
    %15 = arith.cmpi slt, %13, %14 : vector<144x1xi32>
    %16 = arith.extui %15 : vector<144x1xi1> to vector<144x1xi32>
    %17 = arith.sitofp %16 : vector<144x1xi32> to vector<144x1xf32>
    %18 = vector.broadcast %17 : vector<144x1xf32> to vector<144x128xf32>
    %19 = arith.mulf %7, %18 : vector<144x128xf32>
    %cst_8 = arith.constant dense<0.000000e+00> : vector<128xf32>
    %20 = vector.multi_reduction <add>, %19, %cst_8 [0] : vector<144x128xf32> to vector<128xf32>
    %21 = vector.shape_cast %20 : vector<128xf32> to vector<1x128xf32>
    %c0_9 = arith.constant 0 : index
    %c0_10 = arith.constant 0 : index
    %c0_11 = arith.constant 0 : index
    %22 = vector.load %arg5[%c0_9, %c0_10, %c0_11] : memref<1x2x128xf32, #tpu.memory_space<vmem>>, vector<1x1x128xf32>
    %23 = vector.shape_cast %22 : vector<1x1x128xf32> to vector<1x128xf32>
    %24 = vector.shape_cast %21 : vector<1x128xf32> to vector<1x1x128xf32>
    tpu.vector_store %arg5[%c0_9, %c0_10, %c0_11], %24 {strides = array<i32>} : memref<1x2x128xf32, #tpu.memory_space<vmem>>, vector<1x1x128xf32>,
    %25 = arith.mulf %19, %7 : vector<144x128xf32>
    %cst_12 = arith.constant dense<0.000000e+00> : vector<128xf32>
    %26 = vector.multi_reduction <add>, %25, %cst_12 [0] : vector<144x128xf32> to vector<128xf32>
    %27 = vector.shape_cast %26 : vector<128xf32> to vector<1x128xf32>
    %c0_13 = arith.constant 0 : index
    %c1 = arith.constant 1 : index
    %c0_14 = arith.constant 0 : index
    %28 = vector.load %arg5[%c0_13, %c1, %c0_14] : memref<1x2x128xf32, #tpu.memory_space<vmem>>, vector<1x1x128xf32>
    %29 = vector.shape_cast %28 : vector<1x1x128xf32> to vector<1x128xf32>
    %30 = vector.shape_cast %27 : vector<1x128xf32> to vector<1x1x128xf32>
    tpu.vector_store %arg5[%c0_13, %c1, %c0_14], %30 {strides = array<i32>} : memref<1x2x128xf32, #tpu.memory_space<vmem>>, vector<1x1x128xf32>,
    return
  }
  func.func @transform_0(%arg0: i32) -> (i32, i32) {
    %c0_i32 = arith.constant 0 : i32
    %c0_i32_0 = arith.constant 0 : i32
    return %arg0, %c0_i32 : i32, i32
  }
  func.func @transform_1(%arg0: i32) -> (i32, i32) {
    %c0_i32 = arith.constant 0 : i32
    %c0_i32_0 = arith.constant 0 : i32
    %c0_i32_1 = arith.constant 0 : i32
    return %c0_i32, %c0_i32_0 : i32, i32
  }
  func.func @transform_2(%arg0: i32) -> (i32, i32) {
    %c0_i32 = arith.constant 0 : i32
    %c0_i32_0 = arith.constant 0 : i32
    %c0_i32_1 = arith.constant 0 : i32
    return %c0_i32, %c0_i32_0 : i32, i32
  }
  func.func @transform_3(%arg0: i32) -> (i32, i32) {
    %c0_i32 = arith.constant 0 : i32
    %c0_i32_0 = arith.constant 0 : i32
    return %arg0, %c0_i32 : i32, i32
  }
  func.func @transform_4(%arg0: i32) -> (i32, i32, i32) {
    %c0_i32 = arith.constant 0 : i32
    %c0_i32_0 = arith.constant 0 : i32
    %c0_i32_1 = arith.constant 0 : i32
    return %arg0, %c0_i32, %c0_i32_0 : i32, i32, i32
  }
}

module attributes {stable_mosaic.version = 11 : i64} {
  func.func @_conv_stage_kernel(%arg0: i32, %arg1: memref<32x32xbf16, #tpu.memory_space<vmem>>, %arg2: memref<32x128xbf16, #tpu.memory_space<vmem>>, %arg3: memref<1x128xf32, #tpu.memory_space<vmem>>, %arg4: memref<32x128xbf16, #tpu.memory_space<vmem>>, %arg5: memref<1x2x128xf32, #tpu.memory_space<vmem>>) attributes {dimension_semantics = [#tpu.dimension_semantics<parallel>], iteration_bounds = array<i64: 2>, scalar_prefetch = 0 : i64, scratch_operands = 0 : i64, tpu.core_type = #tpu.core_type<tc>, window_params = [{transform_indices = @transform_0, window_bounds = array<i64: 32, 32>}, {pipeline_mode = #tpu.pipeline_mode<synchronous>, transform_indices = @transform_1, window_bounds = array<i64: 32, 128>}, {pipeline_mode = #tpu.pipeline_mode<synchronous>, transform_indices = @transform_2, window_bounds = array<i64: 1, 128>}, {transform_indices = @transform_3, window_bounds = array<i64: 32, 128>}, {transform_indices = @transform_4, window_bounds = array<i64: 1, 2, 128>}]} {
    %c0 = arith.constant 0 : index
    %c0_0 = arith.constant 0 : index
    %0 = vector.load %arg1[%c0, %c0_0] : memref<32x32xbf16, #tpu.memory_space<vmem>>, vector<32x32xbf16>
    %c0_1 = arith.constant 0 : index
    %c0_2 = arith.constant 0 : index
    %1 = vector.load %arg2[%c0_1, %c0_2] : memref<32x128xbf16, #tpu.memory_space<vmem>>, vector<32x128xbf16>
    %cst = arith.constant dense<0.000000e+00> : vector<32x128xf32>
    %2 = tpu.matmul %0, %1, %cst {dimension_numbers = #tpu.dot_dimension_numbers<[1], [0], [0], [1], [0, 0, 1, 1], [], []>} : vector<32x32xbf16>, vector<32x128xbf16>, vector<32x128xf32> -> vector<32x128xf32>
    %c0_3 = arith.constant 0 : index
    %c0_4 = arith.constant 0 : index
    %3 = vector.load %arg3[%c0_3, %c0_4] : memref<1x128xf32, #tpu.memory_space<vmem>>, vector<1x128xf32>
    %4 = vector.broadcast %3 : vector<1x128xf32> to vector<32x128xf32>
    %5 = arith.addf %2, %4 : vector<32x128xf32>
    %cst_5 = arith.constant 0.000000e+00 : f32
    %6 = vector.broadcast %cst_5 : f32 to vector<32x128xf32>
    %7 = arith.maximumf %5, %6 : vector<32x128xf32>
    %8 = arith.truncf %7 : vector<32x128xf32> to vector<32x128xbf16>
    %c0_6 = arith.constant 0 : index
    %c0_7 = arith.constant 0 : index
    %9 = vector.load %arg4[%c0_6, %c0_7] : memref<32x128xbf16, #tpu.memory_space<vmem>>, vector<32x128xbf16>
    tpu.vector_store %arg4[%c0_6, %c0_7], %8 {strides = array<i32>} : memref<32x128xbf16, #tpu.memory_space<vmem>>, vector<32x128xbf16>,
    %10 = tpu.iota {dimensions = array<i32: 0>} : vector<32x1xi32>
    %c32_i32 = arith.constant 32 : i32
    %11 = arith.muli %arg0, %c32_i32 : i32
    %12 = vector.broadcast %11 : i32 to vector<32x1xi32>
    %13 = arith.addi %10, %12 : vector<32x1xi32>
    %c50_i32 = arith.constant 50 : i32
    %14 = vector.broadcast %c50_i32 : i32 to vector<32x1xi32>
    %15 = arith.cmpi slt, %13, %14 : vector<32x1xi32>
    %16 = arith.extui %15 : vector<32x1xi1> to vector<32x1xi32>
    %17 = arith.sitofp %16 : vector<32x1xi32> to vector<32x1xf32>
    %18 = vector.broadcast %17 : vector<32x1xf32> to vector<32x128xf32>
    %19 = arith.mulf %7, %18 : vector<32x128xf32>
    %cst_8 = arith.constant dense<0.000000e+00> : vector<128xf32>
    %20 = vector.multi_reduction <add>, %19, %cst_8 [0] : vector<32x128xf32> to vector<128xf32>
    %21 = vector.shape_cast %20 : vector<128xf32> to vector<1x128xf32>
    %c0_9 = arith.constant 0 : index
    %c0_10 = arith.constant 0 : index
    %c0_11 = arith.constant 0 : index
    %22 = vector.load %arg5[%c0_9, %c0_10, %c0_11] : memref<1x2x128xf32, #tpu.memory_space<vmem>>, vector<1x1x128xf32>
    %23 = vector.shape_cast %22 : vector<1x1x128xf32> to vector<1x128xf32>
    %24 = vector.shape_cast %21 : vector<1x128xf32> to vector<1x1x128xf32>
    tpu.vector_store %arg5[%c0_9, %c0_10, %c0_11], %24 {strides = array<i32>} : memref<1x2x128xf32, #tpu.memory_space<vmem>>, vector<1x1x128xf32>,
    %25 = arith.mulf %19, %7 : vector<32x128xf32>
    %cst_12 = arith.constant dense<0.000000e+00> : vector<128xf32>
    %26 = vector.multi_reduction <add>, %25, %cst_12 [0] : vector<32x128xf32> to vector<128xf32>
    %27 = vector.shape_cast %26 : vector<128xf32> to vector<1x128xf32>
    %c0_13 = arith.constant 0 : index
    %c1 = arith.constant 1 : index
    %c0_14 = arith.constant 0 : index
    %28 = vector.load %arg5[%c0_13, %c1, %c0_14] : memref<1x2x128xf32, #tpu.memory_space<vmem>>, vector<1x1x128xf32>
    %29 = vector.shape_cast %28 : vector<1x1x128xf32> to vector<1x128xf32>
    %30 = vector.shape_cast %27 : vector<1x128xf32> to vector<1x1x128xf32>
    tpu.vector_store %arg5[%c0_13, %c1, %c0_14], %30 {strides = array<i32>} : memref<1x2x128xf32, #tpu.memory_space<vmem>>, vector<1x1x128xf32>,
    return
  }
  func.func @transform_0(%arg0: i32) -> (i32, i32) {
    %c0_i32 = arith.constant 0 : i32
    %c0_i32_0 = arith.constant 0 : i32
    return %arg0, %c0_i32 : i32, i32
  }
  func.func @transform_1(%arg0: i32) -> (i32, i32) {
    %c0_i32 = arith.constant 0 : i32
    %c0_i32_0 = arith.constant 0 : i32
    %c0_i32_1 = arith.constant 0 : i32
    return %c0_i32, %c0_i32_0 : i32, i32
  }
  func.func @transform_2(%arg0: i32) -> (i32, i32) {
    %c0_i32 = arith.constant 0 : i32
    %c0_i32_0 = arith.constant 0 : i32
    %c0_i32_1 = arith.constant 0 : i32
    return %c0_i32, %c0_i32_0 : i32, i32
  }
  func.func @transform_3(%arg0: i32) -> (i32, i32) {
    %c0_i32 = arith.constant 0 : i32
    %c0_i32_0 = arith.constant 0 : i32
    return %arg0, %c0_i32 : i32, i32
  }
  func.func @transform_4(%arg0: i32) -> (i32, i32, i32) {
    %c0_i32 = arith.constant 0 : i32
    %c0_i32_0 = arith.constant 0 : i32
    %c0_i32_1 = arith.constant 0 : i32
    return %arg0, %c0_i32, %c0_i32_0 : i32, i32, i32
  }
}

module attributes {stable_mosaic.version = 11 : i64} {
  func.func @_fc_stack_kernel(%arg0: i32, %arg1: memref<8x400xbf16, #tpu.memory_space<vmem>>, %arg2: memref<400x500xbf16, #tpu.memory_space<vmem>>, %arg3: memref<1x500xf32, #tpu.memory_space<vmem>>, %arg4: memref<500x300xbf16, #tpu.memory_space<vmem>>, %arg5: memref<1x300xf32, #tpu.memory_space<vmem>>, %arg6: memref<300x100xbf16, #tpu.memory_space<vmem>>, %arg7: memref<1x100xf32, #tpu.memory_space<vmem>>, %arg8: memref<100x128xbf16, #tpu.memory_space<vmem>>, %arg9: memref<1x128xf32, #tpu.memory_space<vmem>>, %arg10: memref<8x128xf32, #tpu.memory_space<vmem>>) attributes {dimension_semantics = [#tpu.dimension_semantics<parallel>], iteration_bounds = array<i64: 1>, scalar_prefetch = 0 : i64, scratch_operands = 0 : i64, tpu.core_type = #tpu.core_type<tc>, window_params = [{transform_indices = @transform_0, window_bounds = array<i64: 8, 400>}, {pipeline_mode = #tpu.pipeline_mode<synchronous>, transform_indices = @transform_1, window_bounds = array<i64: 400, 500>}, {pipeline_mode = #tpu.pipeline_mode<synchronous>, transform_indices = @transform_2, window_bounds = array<i64: 1, 500>}, {pipeline_mode = #tpu.pipeline_mode<synchronous>, transform_indices = @transform_3, window_bounds = array<i64: 500, 300>}, {pipeline_mode = #tpu.pipeline_mode<synchronous>, transform_indices = @transform_4, window_bounds = array<i64: 1, 300>}, {pipeline_mode = #tpu.pipeline_mode<synchronous>, transform_indices = @transform_5, window_bounds = array<i64: 300, 100>}, {pipeline_mode = #tpu.pipeline_mode<synchronous>, transform_indices = @transform_6, window_bounds = array<i64: 1, 100>}, {pipeline_mode = #tpu.pipeline_mode<synchronous>, transform_indices = @transform_7, window_bounds = array<i64: 100, 128>}, {pipeline_mode = #tpu.pipeline_mode<synchronous>, transform_indices = @transform_8, window_bounds = array<i64: 1, 128>}, {transform_indices = @transform_9, window_bounds = array<i64: 8, 128>}]} {
    %c0 = arith.constant 0 : index
    %c0_0 = arith.constant 0 : index
    %0 = vector.load %arg1[%c0, %c0_0] : memref<8x400xbf16, #tpu.memory_space<vmem>>, vector<8x400xbf16>
    %c0_1 = arith.constant 0 : index
    %c0_2 = arith.constant 0 : index
    %1 = vector.load %arg2[%c0_1, %c0_2] : memref<400x500xbf16, #tpu.memory_space<vmem>>, vector<400x500xbf16>
    %cst = arith.constant dense<0.000000e+00> : vector<8x500xf32>
    %2 = tpu.matmul %0, %1, %cst {dimension_numbers = #tpu.dot_dimension_numbers<[1], [0], [0], [1], [0, 0, 1, 1], [], []>} : vector<8x400xbf16>, vector<400x500xbf16>, vector<8x500xf32> -> vector<8x500xf32>
    %c0_3 = arith.constant 0 : index
    %c0_4 = arith.constant 0 : index
    %3 = vector.load %arg3[%c0_3, %c0_4] : memref<1x500xf32, #tpu.memory_space<vmem>>, vector<1x500xf32>
    %4 = vector.broadcast %3 : vector<1x500xf32> to vector<8x500xf32>
    %5 = arith.addf %2, %4 : vector<8x500xf32>
    %cst_5 = arith.constant 0.000000e+00 : f32
    %6 = vector.broadcast %cst_5 : f32 to vector<8x500xf32>
    %7 = arith.maximumf %5, %6 : vector<8x500xf32>
    %8 = arith.truncf %7 : vector<8x500xf32> to vector<8x500xbf16>
    %c0_6 = arith.constant 0 : index
    %c0_7 = arith.constant 0 : index
    %9 = vector.load %arg4[%c0_6, %c0_7] : memref<500x300xbf16, #tpu.memory_space<vmem>>, vector<500x300xbf16>
    %cst_8 = arith.constant dense<0.000000e+00> : vector<8x300xf32>
    %10 = tpu.matmul %8, %9, %cst_8 {dimension_numbers = #tpu.dot_dimension_numbers<[1], [0], [0], [1], [0, 0, 1, 1], [], []>} : vector<8x500xbf16>, vector<500x300xbf16>, vector<8x300xf32> -> vector<8x300xf32>
    %c0_9 = arith.constant 0 : index
    %c0_10 = arith.constant 0 : index
    %11 = vector.load %arg5[%c0_9, %c0_10] : memref<1x300xf32, #tpu.memory_space<vmem>>, vector<1x300xf32>
    %12 = vector.broadcast %11 : vector<1x300xf32> to vector<8x300xf32>
    %13 = arith.addf %10, %12 : vector<8x300xf32>
    %cst_11 = arith.constant 0.000000e+00 : f32
    %14 = vector.broadcast %cst_11 : f32 to vector<8x300xf32>
    %15 = arith.maximumf %13, %14 : vector<8x300xf32>
    %16 = arith.truncf %15 : vector<8x300xf32> to vector<8x300xbf16>
    %c0_12 = arith.constant 0 : index
    %c0_13 = arith.constant 0 : index
    %17 = vector.load %arg6[%c0_12, %c0_13] : memref<300x100xbf16, #tpu.memory_space<vmem>>, vector<300x100xbf16>
    %cst_14 = arith.constant dense<0.000000e+00> : vector<8x100xf32>
    %18 = tpu.matmul %16, %17, %cst_14 {dimension_numbers = #tpu.dot_dimension_numbers<[1], [0], [0], [1], [0, 0, 1, 1], [], []>} : vector<8x300xbf16>, vector<300x100xbf16>, vector<8x100xf32> -> vector<8x100xf32>
    %c0_15 = arith.constant 0 : index
    %c0_16 = arith.constant 0 : index
    %19 = vector.load %arg7[%c0_15, %c0_16] : memref<1x100xf32, #tpu.memory_space<vmem>>, vector<1x100xf32>
    %20 = vector.broadcast %19 : vector<1x100xf32> to vector<8x100xf32>
    %21 = arith.addf %18, %20 : vector<8x100xf32>
    %cst_17 = arith.constant 0.000000e+00 : f32
    %22 = vector.broadcast %cst_17 : f32 to vector<8x100xf32>
    %23 = arith.maximumf %21, %22 : vector<8x100xf32>
    %24 = arith.truncf %23 : vector<8x100xf32> to vector<8x100xbf16>
    %c0_18 = arith.constant 0 : index
    %c0_19 = arith.constant 0 : index
    %25 = vector.load %arg8[%c0_18, %c0_19] : memref<100x128xbf16, #tpu.memory_space<vmem>>, vector<100x128xbf16>
    %cst_20 = arith.constant dense<0.000000e+00> : vector<8x128xf32>
    %26 = tpu.matmul %24, %25, %cst_20 {dimension_numbers = #tpu.dot_dimension_numbers<[1], [0], [0], [1], [0, 0, 1, 1], [], []>} : vector<8x100xbf16>, vector<100x128xbf16>, vector<8x128xf32> -> vector<8x128xf32>
    %c0_21 = arith.constant 0 : index
    %c0_22 = arith.constant 0 : index
    %27 = vector.load %arg9[%c0_21, %c0_22] : memref<1x128xf32, #tpu.memory_space<vmem>>, vector<1x128xf32>
    %28 = vector.broadcast %27 : vector<1x128xf32> to vector<8x128xf32>
    %29 = arith.addf %26, %28 : vector<8x128xf32>
    %c0_23 = arith.constant 0 : index
    %c0_24 = arith.constant 0 : index
    %30 = vector.load %arg10[%c0_23, %c0_24] : memref<8x128xf32, #tpu.memory_space<vmem>>, vector<8x128xf32>
    tpu.vector_store %arg10[%c0_23, %c0_24], %29 {strides = array<i32>} : memref<8x128xf32, #tpu.memory_space<vmem>>, vector<8x128xf32>,
    return
  }
  func.func @transform_0(%arg0: i32) -> (i32, i32) {
    %c0_i32 = arith.constant 0 : i32
    %c0_i32_0 = arith.constant 0 : i32
    return %arg0, %c0_i32 : i32, i32
  }
  func.func @transform_1(%arg0: i32) -> (i32, i32) {
    %c0_i32 = arith.constant 0 : i32
    %c0_i32_0 = arith.constant 0 : i32
    %c0_i32_1 = arith.constant 0 : i32
    return %c0_i32, %c0_i32_0 : i32, i32
  }
  func.func @transform_2(%arg0: i32) -> (i32, i32) {
    %c0_i32 = arith.constant 0 : i32
    %c0_i32_0 = arith.constant 0 : i32
    %c0_i32_1 = arith.constant 0 : i32
    return %c0_i32, %c0_i32_0 : i32, i32
  }
  func.func @transform_3(%arg0: i32) -> (i32, i32) {
    %c0_i32 = arith.constant 0 : i32
    %c0_i32_0 = arith.constant 0 : i32
    %c0_i32_1 = arith.constant 0 : i32
    return %c0_i32, %c0_i32_0 : i32, i32
  }
  func.func @transform_4(%arg0: i32) -> (i32, i32) {
    %c0_i32 = arith.constant 0 : i32
    %c0_i32_0 = arith.constant 0 : i32
    %c0_i32_1 = arith.constant 0 : i32
    return %c0_i32, %c0_i32_0 : i32, i32
  }
  func.func @transform_5(%arg0: i32) -> (i32, i32) {
    %c0_i32 = arith.constant 0 : i32
    %c0_i32_0 = arith.constant 0 : i32
    %c0_i32_1 = arith.constant 0 : i32
    return %c0_i32, %c0_i32_0 : i32, i32
  }
  func.func @transform_6(%arg0: i32) -> (i32, i32) {
    %c0_i32 = arith.constant 0 : i32
    %c0_i32_0 = arith.constant 0 : i32
    %c0_i32_1 = arith.constant 0 : i32
    return %c0_i32, %c0_i32_0 : i32, i32
  }
  func.func @transform_7(%arg0: i32) -> (i32, i32) {
    %c0_i32 = arith.constant 0 : i32
    %c0_i32_0 = arith.constant 0 : i32
    %c0_i32_1 = arith.constant 0 : i32
    return %c0_i32, %c0_i32_0 : i32, i32
  }
  func.func @transform_8(%arg0: i32) -> (i32, i32) {
    %c0_i32 = arith.constant 0 : i32
    %c0_i32_0 = arith.constant 0 : i32
    %c0_i32_1 = arith.constant 0 : i32
    return %c0_i32, %c0_i32_0 : i32, i32
  }
  func.func @transform_9(%arg0: i32) -> (i32, i32) {
    %c0_i32 = arith.constant 0 : i32
    %c0_i32_0 = arith.constant 0 : i32
    return %arg0, %c0_i32 : i32, i32
  }
}

</mosaic_0001>

<llo_original>
// kernel: net_forward.4
$region0: #{net_forward.4}
  #allocation0 [shape = 'u32[]', space=smem, size = 0x4, offset = 0x4, fixed_abs, tag = 'smem constant byte address 0x4 - core index']
  #allocation1 [shape = 'u32[144,128]{1,0:T(1,128)}', space=vmem, size = 0x12000, scoped, tag = 'internal scratch']
  %s0 = inlined_call_operand.vmem [shape: bf16[2048,27], index: 0, kind: input, shape index: {}]
  %s1 = inlined_call_operand.vmem [shape: bf16[27,128], index: 1, kind: input, shape index: {}]
  %s2 = inlined_call_operand.vmem [shape: f32[1,128], index: 2, kind: input, shape index: {}]
  %s3 = inlined_call_operand.vmem [shape: bf16[2048,128], index: 3, kind: output, shape index: {0}]
  %s4 = inlined_call_operand.vmem [shape: f32[2,2,128], index: 4, kind: output, shape index: {1}]
  %5 = xla_tuple %s3, %s4
  %s6 = sld [smem:[#allocation0]]
  $region53: #{net_forward.4} parent=0
    _
  %s8 = ssub.s32 1, %s6
  %s9 = scalar_select 0, %s8, %s6
  loop: start=0, step=1, limit=4
  $region2: #{net_forward.4} parent=0 // loop_pre_header
    _
  $region3: #{net_forward.4} parent=0 // loop_header
    %s11 = sphi 0, %s15
    %p12 = scmp.ge.s32.totalorder %s11, 4
    %s21 = sphi 0, %s23
    %s24 = sphi 0, %s21
    %s25 = sphi 0, %s24
    %s41 = sphi 0, %s25
    %s45 = sphi 0, %s45
    %s47 = sphi 0, %s45
    %s48 = sphi 0, %s47
    %s62 = sphi 0, %s48
    %s66 = sphi 0, %s66
    %s68 = sphi 0, %s66
    %s69 = sphi 0, %s68
    %s83 = sphi 0, %s69
    %s89 = sphi 0, %s91
    %s92 = sphi 0, %s89
    %s93 = sphi 0, %s92
    %s109 = sphi 0, %s93
    %s115 = sphi 0, %s117
    %s118 = sphi 0, %s115
    %s119 = sphi 0, %s118
    %s135 = sphi 0, %s119
  $region4: #{net_forward.4} parent=0 // loop_header_branch
    %14 = sbr.rel (%p12) target = $region8
  $region5: #{net_forward.4} parent=0 // loop_body
    %s16 = ssub.s32 %s11, 1
    %s17 = ssub.s32 %s11, 2
    %s18 = sadd.s32 %s11, 1
    %s19 = ssub.s32 %s11, %s18
    %p20 = scmp.eq.s32.totalorder %s19, 0
    %s22 = sadd.s32 %s21, 1
    %s23 = scalar_select %p20, %s21, %s22
    %p26 = pneg %p20
    %p27 = scmp.eq.s32.totalorder %s11, 1
    %p28 = por %p26, %p27
    %p29 = scmp.ne.s32.totalorder %s21, %s24
    %p30 = scmp.eq.s32.totalorder %s11, 0
    %p31 = por %p29, %p30
    %p32 = scmp.ne.s32.totalorder %s21, %s24
    %p33 = scmp.eq.s32.totalorder %s16, 1
    %p34 = por %p32, %p33
    %p35 = scmp.ne.s32.totalorder %s24, %s25
    %p36 = scmp.eq.s32.totalorder %s16, 0
    %p37 = por %p35, %p36
    %p38 = scmp.ne.s32.totalorder %s24, %s25
    %p39 = scmp.eq.s32.totalorder %s17, 1
    %p40 = por %p38, %p39
    %p42 = scmp.ne.s32.totalorder %s25, %s41
    %p43 = scmp.eq.s32.totalorder %s17, 0
    %p44 = por %p42, %p43
    %s46 = sadd.s32 %s45, 1
    %p49 = scmp.eq.s32.totalorder %s11, 1
    %p50 = scmp.ne.s32.totalorder %s45, %s47
    %p51 = scmp.eq.s32.totalorder %s11, 0
    %p52 = por %p50, %p51
    %p53 = scmp.ne.s32.totalorder %s45, %s47
    %p54 = scmp.eq.s32.totalorder %s16, 1
    %p55 = por %p53, %p54
    %p56 = scmp.ne.s32.totalorder %s47, %s48
    %p57 = scmp.eq.s32.totalorder %s16, 0
    %p58 = por %p56, %p57
    %p59 = scmp.ne.s32.totalorder %s47, %s48
    %p60 = scmp.eq.s32.totalorder %s17, 1
    %p61 = por %p59, %p60
    %p63 = scmp.ne.s32.totalorder %s48, %s62
    %p64 = scmp.eq.s32.totalorder %s17, 0
    %p65 = por %p63, %p64
    %s67 = sadd.s32 %s66, 1
    %p70 = scmp.eq.s32.totalorder %s11, 1
    %p71 = scmp.ne.s32.totalorder %s66, %s68
    %p72 = scmp.eq.s32.totalorder %s11, 0
    %p73 = por %p71, %p72
    %p74 = scmp.ne.s32.totalorder %s66, %s68
    %p75 = scmp.eq.s32.totalorder %s16, 1
    %p76 = por %p74, %p75
    %p77 = scmp.ne.s32.totalorder %s68, %s69
    %p78 = scmp.eq.s32.totalorder %s16, 0
    %p79 = por %p77, %p78
    %p80 = scmp.ne.s32.totalorder %s68, %s69
    %p81 = scmp.eq.s32.totalorder %s17, 1
    %p82 = por %p80, %p81
    %p84 = scmp.ne.s32.totalorder %s69, %s83
    %p85 = scmp.eq.s32.totalorder %s17, 0
    %p86 = por %p84, %p85
    %s87 = ssub.s32 %s11, %s18
    %p88 = scmp.eq.s32.totalorder %s87, 0
    %s90 = sadd.s32 %s89, 1
    %s91 = scalar_select %p88, %s89, %s90
    %p94 = pneg %p88
    %p95 = scmp.eq.s32.totalorder %s11, 1
    %p96 = por %p94, %p95
    %p97 = scmp.ne.s32.totalorder %s89, %s92
    %p98 = scmp.eq.s32.totalorder %s11, 0
    %p99 = por %p97, %p98
    %p100 = scmp.ne.s32.totalorder %s89, %s92
    %p101 = scmp.eq.s32.totalorder %s16, 1
    %p102 = por %p100, %p101
    %p103 = scmp.ne.s32.totalorder %s92, %s93
    %p104 = scmp.eq.s32.totalorder %s16, 0
    %p105 = por %p103, %p104
    %p106 = scmp.ne.s32.totalorder %s92, %s93
    %p107 = scmp.eq.s32.totalorder %s17, 1
    %p108 = por %p106, %p107
    %p110 = scmp.ne.s32.totalorder %s93, %s109
    %p111 = scmp.eq.s32.totalorder %s17, 0
    %p112 = por %p110, %p111
    %s113 = ssub.s32 %s11, %s18
    %p114 = scmp.eq.s32.totalorder %s113, 0
    %s116 = sadd.s32 %s115, 1
    %s117 = scalar_select %p114, %s115, %s116
    %p120 = pneg %p114
    %p121 = scmp.eq.s32.totalorder %s11, 1
    %p122 = por %p120, %p121
    %p123 = scmp.ne.s32.totalorder %s115, %s118
    %p124 = scmp.eq.s32.totalorder %s11, 0
    %p125 = por %p123, %p124
    %p126 = scmp.ne.s32.totalorder %s115, %s118
    %p127 = scmp.eq.s32.totalorder %s16, 1
    %p128 = por %p126, %p127
    %p129 = scmp.ne.s32.totalorder %s118, %s119
    %p130 = scmp.eq.s32.totalorder %s16, 0
    %p131 = por %p129, %p130
    %p132 = scmp.ne.s32.totalorder %s118, %s119
    %p133 = scmp.eq.s32.totalorder %s17, 1
    %p134 = por %p132, %p133
    %p136 = scmp.ne.s32.totalorder %s119, %s135
    %p137 = scmp.eq.s32.totalorder %s17, 0
    %p138 = por %p136, %p137
    %p139 = scmp.le.s32.totalorder 1, %s11
    %p140 = scmp.lt.s32.totalorder %s11, 3
    %p141 = pnand %p139, %p140
    %p142 = pneg %p141
    // Predicated region
    $region9: #{net_forward.4} parent=5 // pred_check
      _
    $region10: #{net_forward.4} parent=5 // pred_check_branch
      %144 = sbr.rel (%p141) target = $region12
    $region11: #{net_forward.4} parent=5 // pred_region
      %s145 = ssub.s32 %s11, 1
      // Predicated region
      $region13: #{net_forward.4} parent=11 // pred_check
        %p146 = pneg %p58
      $region14: #{net_forward.4} parent=11 // pred_check_branch
        %148 = sbr.rel (%p146) target = $region16
      $region15: #{net_forward.4} parent=11 // pred_region
        _
      $region16: #{net_forward.4} parent=11 // pred_fallthru
        _
      // Predicated region
      $region17: #{net_forward.4} parent=11 // pred_check
        %p149 = pneg %p79
      $region18: #{net_forward.4} parent=11 // pred_check_branch
        %151 = sbr.rel (%p149) target = $region20
      $region19: #{net_forward.4} parent=11 // pred_region
        _
      $region20: #{net_forward.4} parent=11 // pred_fallthru
        _
    $region12: #{net_forward.4} parent=5 // pred_fallthru
      _
    %p152 = scmp.lt.s32.totalorder %s11, 2
    // Predicated region
    $region21: #{net_forward.4} parent=5 // pred_check
      %p153 = pneg %p152
    $region22: #{net_forward.4} parent=5 // pred_check_branch
      %155 = sbr.rel (%p153) target = $region24
    $region23: #{net_forward.4} parent=5 // pred_region
      // Predicated region
      $region25: #{net_forward.4} parent=23 // pred_check
        %p156 = pneg %p31
      $region26: #{net_forward.4} parent=23 // pred_check_branch
        %158 = sbr.rel (%p156) target = $region28
      $region27: #{net_forward.4} parent=23 // pred_region
        %s159 = smul.u32 128, %s11
        %p160 = scmp.lt.s32.totalorder %s159, 255
        %s161 = scalar_select %p160, %s159, 255
        %s162 = smul.addr %s161, 4
        %s163 = scalar_lea.vmem %s0, %s162
        %s164 = smul.u32 128, %s11
      $region28: #{net_forward.4} parent=23 // pred_fallthru
        _
    $region24: #{net_forward.4} parent=5 // pred_fallthru
      _
    %p165 = scmp.le.s32.totalorder 1, %s11
    %p166 = scmp.lt.s32.totalorder %s11, 3
    %p167 = pnand %p165, %p166
    %p168 = pneg %p167
    // Predicated region
    $region29: #{net_forward.4} parent=5 // pred_check
      _
    $region30: #{net_forward.4} parent=5 // pred_check_branch
      %170 = sbr.rel (%p167) target = $region32
    $region31: #{net_forward.4} parent=5 // pred_region
      %s171 = ssub.s32 %s11, 1
      %s172 = smul.u32 128, %s16
      %p173 = scmp.lt.s32.totalorder %s172, 255
      %s174 = scalar_select %p173, %s172, 255
      %s175 = smul.addr %s174, 4
      %s176 = scalar_lea.vmem %s0, %s175
      %p177 = pneg %p37
      %p178 = pneg %p34
      %p179 = pneg %p58
      %p180 = pneg %p55
      %p181 = pneg %p79
      %p182 = pneg %p76
      %p183 = pneg %p105
      %p184 = pneg %p102
      %s185 = smul.u32 128, %s16
      %p186 = scmp.lt.s32.totalorder %s185, 255
      %s187 = scalar_select %p186, %s185, 255
      %s188 = smul.addr %s187, 4
      %s189 = scalar_lea.vmem %s3, %s188
      %p190 = pneg %p131
      %p191 = pneg %p128
      %p192 = scmp.lt.s32.totalorder %s16, 1
      %s193 = scalar_select %p192, %s16, 1
      %s194 = smul.addr %s193, 2
      %s195 = scalar_lea.vmem %s4, %s194
      %s196 = smul.u32 128, %s16
      %p197 = scmp.lt.s32.totalorder %s196, 255
      %s198 = scalar_select %p197, %s196, 255
      %s199 = smul.addr %s198, 4
      %s200 = scalar_lea.vmem %s0, %s199
      %s201 = smul.u32 128, %s16
      %s202 = smul.u32 128, %s16
      %p203 = scmp.lt.s32.totalorder %s202, 255
      %s204 = scalar_select %p203, %s202, 255
      %s205 = smul.addr %s204, 4
      %s206 = scalar_lea.vmem %s3, %s205
      %s207 = smul.u32 128, %s16
      %p208 = scmp.lt.s32.totalorder %s16, 1
      %s209 = scalar_select %p208, %s16, 1
      %s210 = smul.addr %s209, 2
      %s211 = scalar_lea.vmem %s4, %s210
      %v213 = vld [vmem:[%s200] sm:$0xf]
      %v214 = vld [vmem:[%s200 + $0x4] sm:$0xf]
      %v215 = vld [vmem:[%s200 + $0x8] sm:$0xf]
      %v216 = vld [vmem:[%s200 + $0xc] sm:$0xf]
      %v217 = vld [vmem:[%s200 + $0x10] sm:$0xf]
      %v218 = vld [vmem:[%s200 + $0x14] sm:$0xf]
      %v219 = vld [vmem:[%s200 + $0x18] sm:$0xf]
      %v220 = vld [vmem:[%s200 + $0x1c] sm:$0xf]
      %v221 = vld [vmem:[%s200 + $0x20] sm:$0xf]
      %v222 = vld [vmem:[%s200 + $0x24] sm:$0xf]
      %v223 = vld [vmem:[%s200 + $0x28] sm:$0xf]
      %v224 = vld [vmem:[%s200 + $0x2c] sm:$0xf]
      %v225 = vld [vmem:[%s200 + $0x30] sm:$0xf]
      %v226 = vld [vmem:[%s200 + $0x34] sm:$0xf]
      %v227 = vld [vmem:[%s200 + $0x38] sm:$0xf]
      %v228 = vld [vmem:[%s200 + $0x3c] sm:$0xf]
      %v229 = vld [vmem:[%s200 + $0x40] sm:$0xf]
      %v230 = vld [vmem:[%s200 + $0x44] sm:$0xf]
      %v231 = vld [vmem:[%s200 + $0x48] sm:$0xf]
      %v232 = vld [vmem:[%s200 + $0x4c] sm:$0xf]
      %v233 = vld [vmem:[%s200 + $0x50] sm:$0xf]
      %v234 = vld [vmem:[%s200 + $0x54] sm:$0xf]
      %v235 = vld [vmem:[%s200 + $0x58] sm:$0xf]
      %v236 = vld [vmem:[%s200 + $0x5c] sm:$0xf]
      %v237 = vld [vmem:[%s200 + $0x60] sm:$0xf]
      %v238 = vld [vmem:[%s200 + $0x64] sm:$0xf]
      %v239 = vld [vmem:[%s200 + $0x68] sm:$0xf]
      %v240 = vld [vmem:[%s200 + $0x6c] sm:$0xf]
      %v241 = vld [vmem:[%s200 + $0x70] sm:$0xf]
      %v242 = vld [vmem:[%s200 + $0x74] sm:$0xf]
      %v243 = vld [vmem:[%s200 + $0x78] sm:$0xf]
      %v244 = vld [vmem:[%s200 + $0x7c] sm:$0xf]
      %v245 = vld [vmem:[%s200 + $0x80] sm:$0xf]
      %v246 = vld [vmem:[%s200 + $0x84] sm:$0xf]
      %v247 = vld [vmem:[%s200 + $0x88] sm:$0xf]
      %v248 = vld [vmem:[%s200 + $0x8c] sm:$0xf]
      %v249 = vld [vmem:[%s200 + $0x90] sm:$0xf]
      %v250 = vld [vmem:[%s200 + $0x94] sm:$0xf]
      %v251 = vld [vmem:[%s200 + $0x98] sm:$0xf]
      %v252 = vld [vmem:[%s200 + $0x9c] sm:$0xf]
      %v253 = vld [vmem:[%s200 + $0xa0] sm:$0xf]
      %v254 = vld [vmem:[%s200 + $0xa4] sm:$0xf]
      %v255 = vld [vmem:[%s200 + $0xa8] sm:$0xf]
      %v256 = vld [vmem:[%s200 + $0xac] sm:$0xf]
      %v257 = vld [vmem:[%s200 + $0xb0] sm:$0xf]
      %v258 = vld [vmem:[%s200 + $0xb4] sm:$0xf]
      %v259 = vld [vmem:[%s200 + $0xb8] sm:$0xf]
      %v260 = vld [vmem:[%s200 + $0xbc] sm:$0xf]
      %v261 = vld [vmem:[%s200 + $0xc0] sm:$0xf]
      %v262 = vld [vmem:[%s200 + $0xc4] sm:$0xf]
      %v263 = vld [vmem:[%s200 + $0xc8] sm:$0xf]
      %v264 = vld [vmem:[%s200 + $0xcc] sm:$0xf]
      %v265 = vld [vmem:[%s200 + $0xd0] sm:$0xf]
      %v266 = vld [vmem:[%s200 + $0xd4] sm:$0xf]
      %v267 = vld [vmem:[%s200 + $0xd8] sm:$0xf]
      %v268 = vld [vmem:[%s200 + $0xdc] sm:$0xf]
      %v269 = vld [vmem:[%s200 + $0xe0] sm:$0xf]
      %v270 = vld [vmem:[%s200 + $0xe4] sm:$0xf]
      %v271 = vld [vmem:[%s200 + $0xe8] sm:$0xf]
      %v272 = vld [vmem:[%s200 + $0xec] sm:$0xf]
      %v273 = vld [vmem:[%s200 + $0xf0] sm:$0xf]
      %v274 = vld [vmem:[%s200 + $0xf4] sm:$0xf]
      %v275 = vld [vmem:[%s200 + $0xf8] sm:$0xf]
      %v276 = vld [vmem:[%s200 + $0xfc] sm:$0xf]
      %v277 = vld [vmem:[%s200 + $0x100] sm:$0xf]
      %v278 = vld [vmem:[%s200 + $0x104] sm:$0xf]
      %v279 = vld [vmem:[%s200 + $0x108] sm:$0xf]
      %v280 = vld [vmem:[%s200 + $0x10c] sm:$0xf]
      %v281 = vld [vmem:[%s200 + $0x110] sm:$0xf]
      %v282 = vld [vmem:[%s200 + $0x114] sm:$0xf]
      %v283 = vld [vmem:[%s200 + $0x118] sm:$0xf]
      %v284 = vld [vmem:[%s200 + $0x11c] sm:$0xf]
      %v285 = vld [vmem:[%s200 + $0x120] sm:$0xf]
      %v286 = vld [vmem:[%s200 + $0x124] sm:$0xf]
      %v287 = vld [vmem:[%s200 + $0x128] sm:$0xf]
      %v288 = vld [vmem:[%s200 + $0x12c] sm:$0xf]
      %v289 = vld [vmem:[%s200 + $0x130] sm:$0xf]
      %v290 = vld [vmem:[%s200 + $0x134] sm:$0xf]
      %v291 = vld [vmem:[%s200 + $0x138] sm:$0xf]
      %v292 = vld [vmem:[%s200 + $0x13c] sm:$0xf]
      %v293 = vld [vmem:[%s200 + $0x140] sm:$0xf]
      %v294 = vld [vmem:[%s200 + $0x144] sm:$0xf]
      %v295 = vld [vmem:[%s200 + $0x148] sm:$0xf]
      %v296 = vld [vmem:[%s200 + $0x14c] sm:$0xf]
      %v297 = vld [vmem:[%s200 + $0x150] sm:$0xf]
      %v298 = vld [vmem:[%s200 + $0x154] sm:$0xf]
      %v299 = vld [vmem:[%s200 + $0x158] sm:$0xf]
      %v300 = vld [vmem:[%s200 + $0x15c] sm:$0xf]
      %v301 = vld [vmem:[%s200 + $0x160] sm:$0xf]
      %v302 = vld [vmem:[%s200 + $0x164] sm:$0xf]
      %v303 = vld [vmem:[%s200 + $0x168] sm:$0xf]
      %v304 = vld [vmem:[%s200 + $0x16c] sm:$0xf]
      %v305 = vld [vmem:[%s200 + $0x170] sm:$0xf]
      %v306 = vld [vmem:[%s200 + $0x174] sm:$0xf]
      %v307 = vld [vmem:[%s200 + $0x178] sm:$0xf]
      %v308 = vld [vmem:[%s200 + $0x17c] sm:$0xf]
      %v309 = vld [vmem:[%s200 + $0x180] sm:$0xf]
      %v310 = vld [vmem:[%s200 + $0x184] sm:$0xf]
      %v311 = vld [vmem:[%s200 + $0x188] sm:$0xf]
      %v312 = vld [vmem:[%s200 + $0x18c] sm:$0xf]
      %v313 = vld [vmem:[%s200 + $0x190] sm:$0xf]
      %v314 = vld [vmem:[%s200 + $0x194] sm:$0xf]
      %v315 = vld [vmem:[%s200 + $0x198] sm:$0xf]
      %v316 = vld [vmem:[%s200 + $0x19c] sm:$0xf]
      %v317 = vld [vmem:[%s200 + $0x1a0] sm:$0xf]
      %v318 = vld [vmem:[%s200 + $0x1a4] sm:$0xf]
      %v319 = vld [vmem:[%s200 + $0x1a8] sm:$0xf]
      %v320 = vld [vmem:[%s200 + $0x1ac] sm:$0xf]
      %v321 = vld [vmem:[%s200 + $0x1b0] sm:$0xf]
      %v322 = vld [vmem:[%s200 + $0x1b4] sm:$0xf]
      %v323 = vld [vmem:[%s200 + $0x1b8] sm:$0xf]
      %v324 = vld [vmem:[%s200 + $0x1bc] sm:$0xf]
      %v325 = vld [vmem:[%s200 + $0x1c0] sm:$0xf]
      %v326 = vld [vmem:[%s200 + $0x1c4] sm:$0xf]
      %v327 = vld [vmem:[%s200 + $0x1c8] sm:$0xf]
      %v328 = vld [vmem:[%s200 + $0x1cc] sm:$0xf]
      %v329 = vld [vmem:[%s200 + $0x1d0] sm:$0xf]
      %v330 = vld [vmem:[%s200 + $0x1d4] sm:$0xf]
      %v331 = vld [vmem:[%s200 + $0x1d8] sm:$0xf]
      %v332 = vld [vmem:[%s200 + $0x1dc] sm:$0xf]
      %v333 = vld [vmem:[%s200 + $0x1e0] sm:$0xf]
      %v334 = vld [vmem:[%s200 + $0x1e4] sm:$0xf]
      %v335 = vld [vmem:[%s200 + $0x1e8] sm:$0xf]
      %v336 = vld [vmem:[%s200 + $0x1ec] sm:$0xf]
      %v337 = vld [vmem:[%s200 + $0x1f0] sm:$0xf]
      %v338 = vld [vmem:[%s200 + $0x1f4] sm:$0xf]
      %v339 = vld [vmem:[%s200 + $0x1f8] sm:$0xf]
      %v340 = vld [vmem:[%s200 + $0x1fc] sm:$0xf]
      %v341 = vld [vmem:[%s1] sm:$0xf]
      %v342 = vld [vmem:[%s1 + $0x4] sm:$0xf]
      %v343 = vld [vmem:[%s1 + $0x8] sm:$0xf]
      %v344 = vld [vmem:[%s1 + $0xc] sm:$0x3]
      %v345 = vld [vmem:[%s2] sm:$0x1]
      %v347 = vlaneseq
      %v348 = vshrl.u32 %v347, 7
      %v349 = vsub.s32 0, %v348
      %v350 = vrot.slane %v345, %v349
      %v480 = vunpack.c.l.b16 %v213
      %v481 = vunpack.c.l.b16 %v214
      %v482 = vunpack.c.l.b16 %v215
      %v483 = vunpack.c.l.b16 %v216
      %v484 = vunpack.c.l.b16 %v217
      %v485 = vunpack.c.l.b16 %v218
      %v486 = vunpack.c.l.b16 %v219
      %v487 = vunpack.c.l.b16 %v220
      %v488 = vunpack.c.l.b16 %v221
      %v489 = vunpack.c.l.b16 %v222
      %v490 = vunpack.c.l.b16 %v223
      %v491 = vunpack.c.l.b16 %v224
      %v492 = vunpack.c.l.b16 %v225
      %v493 = vunpack.c.l.b16 %v226
      %v494 = vunpack.c.l.b16 %v227
      %v495 = vunpack.c.l.b16 %v228
      %v496 = vunpack.c.l.b16 %v229
      %v497 = vunpack.c.l.b16 %v230
      %v498 = vunpack.c.l.b16 %v231
      %v499 = vunpack.c.l.b16 %v232
      %v500 = vunpack.c.l.b16 %v233
      %v501 = vunpack.c.l.b16 %v234
      %v502 = vunpack.c.l.b16 %v235
      %v503 = vunpack.c.l.b16 %v236
      %v504 = vunpack.c.l.b16 %v237
      %v505 = vunpack.c.l.b16 %v238
      %v506 = vunpack.c.l.b16 %v239
      %v507 = vunpack.c.l.b16 %v240
      %v508 = vunpack.c.l.b16 %v241
      %v509 = vunpack.c.l.b16 %v242
      %v510 = vunpack.c.l.b16 %v243
      %v511 = vunpack.c.l.b16 %v244
      %v512 = vunpack.c.l.b16 %v245
      %v513 = vunpack.c.l.b16 %v246
      %v514 = vunpack.c.l.b16 %v247
      %v515 = vunpack.c.l.b16 %v248
      %v516 = vunpack.c.l.b16 %v249
      %v517 = vunpack.c.l.b16 %v250
      %v518 = vunpack.c.l.b16 %v251
      %v519 = vunpack.c.l.b16 %v252
      %v520 = vunpack.c.l.b16 %v253
      %v521 = vunpack.c.l.b16 %v254
      %v522 = vunpack.c.l.b16 %v255
      %v523 = vunpack.c.l.b16 %v256
      %v524 = vunpack.c.l.b16 %v257
      %v525 = vunpack.c.l.b16 %v258
      %v526 = vunpack.c.l.b16 %v259
      %v527 = vunpack.c.l.b16 %v260
      %v528 = vunpack.c.l.b16 %v261
      %v529 = vunpack.c.l.b16 %v262
      %v530 = vunpack.c.l.b16 %v263
      %v531 = vunpack.c.l.b16 %v264
      %v532 = vunpack.c.l.b16 %v265
      %v533 = vunpack.c.l.b16 %v266
      %v534 = vunpack.c.l.b16 %v267
      %v535 = vunpack.c.l.b16 %v268
      %v536 = vunpack.c.l.b16 %v269
      %v537 = vunpack.c.l.b16 %v270
      %v538 = vunpack.c.l.b16 %v271
      %v539 = vunpack.c.l.b16 %v272
      %v540 = vunpack.c.l.b16 %v273
      %v541 = vunpack.c.l.b16 %v274
      %v542 = vunpack.c.l.b16 %v275
      %v543 = vunpack.c.l.b16 %v276
      %v544 = vunpack.c.l.b16 %v277
      %v545 = vunpack.c.l.b16 %v278
      %v546 = vunpack.c.l.b16 %v279
      %v547 = vunpack.c.l.b16 %v280
      %v548 = vunpack.c.l.b16 %v281
      %v549 = vunpack.c.l.b16 %v282
      %v550 = vunpack.c.l.b16 %v283
      %v551 = vunpack.c.l.b16 %v284
      %v552 = vunpack.c.l.b16 %v285
      %v553 = vunpack.c.l.b16 %v286
      %v554 = vunpack.c.l.b16 %v287
      %v555 = vunpack.c.l.b16 %v288
      %v556 = vunpack.c.l.b16 %v289
      %v557 = vunpack.c.l.b16 %v290
      %v558 = vunpack.c.l.b16 %v291
      %v559 = vunpack.c.l.b16 %v292
      %v560 = vunpack.c.l.b16 %v293
      %v561 = vunpack.c.l.b16 %v294
      %v562 = vunpack.c.l.b16 %v295
      %v563 = vunpack.c.l.b16 %v296
      %v564 = vunpack.c.l.b16 %v297
      %v565 = vunpack.c.l.b16 %v298
      %v566 = vunpack.c.l.b16 %v299
      %v567 = vunpack.c.l.b16 %v300
      %v568 = vunpack.c.l.b16 %v301
      %v569 = vunpack.c.l.b16 %v302
      %v570 = vunpack.c.l.b16 %v303
      %v571 = vunpack.c.l.b16 %v304
      %v572 = vunpack.c.l.b16 %v305
      %v573 = vunpack.c.l.b16 %v306
      %v574 = vunpack.c.l.b16 %v307
      %v575 = vunpack.c.l.b16 %v308
      %v576 = vunpack.c.l.b16 %v309
      %v577 = vunpack.c.l.b16 %v310
      %v578 = vunpack.c.l.b16 %v311
      %v579 = vunpack.c.l.b16 %v312
      %v580 = vunpack.c.l.b16 %v313
      %v581 = vunpack.c.l.b16 %v314
      %v582 = vunpack.c.l.b16 %v315
      %v583 = vunpack.c.l.b16 %v316
      %v584 = vunpack.c.l.b16 %v317
      %v585 = vunpack.c.l.b16 %v318
      %v586 = vunpack.c.l.b16 %v319
      %v587 = vunpack.c.l.b16 %v320
      %v588 = vunpack.c.l.b16 %v321
      %v589 = vunpack.c.l.b16 %v322
      %v590 = vunpack.c.l.b16 %v323
      %v591 = vunpack.c.l.b16 %v324
      %v592 = vunpack.c.l.b16 %v325
      %v593 = vunpack.c.l.b16 %v326
      %v594 = vunpack.c.l.b16 %v327
      %v595 = vunpack.c.l.b16 %v328
      %v596 = vunpack.c.l.b16 %v329
      %v597 = vunpack.c.l.b16 %v330
      %v598 = vunpack.c.l.b16 %v331
      %v599 = vunpack.c.l.b16 %v332
      %v600 = vunpack.c.l.b16 %v333
      %v601 = vunpack.c.l.b16 %v334
      %v602 = vunpack.c.l.b16 %v335
      %v603 = vunpack.c.l.b16 %v336
      %v604 = vunpack.c.l.b16 %v337
      %v605 = vunpack.c.l.b16 %v338
      %v606 = vunpack.c.l.b16 %v339
      %v607 = vunpack.c.l.b16 %v340
      %v608 = vpack.c.b16 %v481, %v480
      %v609 = vpack.c.b16 %v483, %v482
      %v610 = vpack.c.b16 %v485, %v484
      %v611 = vpack.c.b16 %v487, %v486
      %v612 = vpack.c.b16 %v489, %v488
      %v613 = vpack.c.b16 %v491, %v490
      %v614 = vpack.c.b16 %v493, %v492
      %v615 = vpack.c.b16 %v495, %v494
      %v616 = vpack.c.b16 %v497, %v496
      %v617 = vpack.c.b16 %v499, %v498
      %v618 = vpack.c.b16 %v501, %v500
      %v619 = vpack.c.b16 %v503, %v502
      %v620 = vpack.c.b16 %v505, %v504
      %v621 = vpack.c.b16 %v507, %v506
      %v622 = vpack.c.b16 %v509, %v508
      %v623 = vpack.c.b16 %v511, %v510
      %v624 = vpack.c.b16 %v513, %v512
      %v625 = vpack.c.b16 %v515, %v514
      %v626 = vpack.c.b16 %v517, %v516
      %v627 = vpack.c.b16 %v519, %v518
      %v628 = vpack.c.b16 %v521, %v520
      %v629 = vpack.c.b16 %v523, %v522
      %v630 = vpack.c.b16 %v525, %v524
      %v631 = vpack.c.b16 %v527, %v526
      %v632 = vpack.c.b16 %v529, %v528
      %v633 = vpack.c.b16 %v531, %v530
      %v634 = vpack.c.b16 %v533, %v532
      %v635 = vpack.c.b16 %v535, %v534
      %v636 = vpack.c.b16 %v537, %v536
      %v637 = vpack.c.b16 %v539, %v538
      %v638 = vpack.c.b16 %v541, %v540
      %v639 = vpack.c.b16 %v543, %v542
      %v640 = vpack.c.b16 %v545, %v544
      %v641 = vpack.c.b16 %v547, %v546
      %v642 = vpack.c.b16 %v549, %v548
      %v643 = vpack.c.b16 %v551, %v550
      %v644 = vpack.c.b16 %v553, %v552
      %v645 = vpack.c.b16 %v555, %v554
      %v646 = vpack.c.b16 %v557, %v556
      %v647 = vpack.c.b16 %v559, %v558
      %v648 = vpack.c.b16 %v561, %v560
      %v649 = vpack.c.b16 %v563, %v562
      %v650 = vpack.c.b16 %v565, %v564
      %v651 = vpack.c.b16 %v567, %v566
      %v652 = vpack.c.b16 %v569, %v568
      %v653 = vpack.c.b16 %v571, %v570
      %v654 = vpack.c.b16 %v573, %v572
      %v655 = vpack.c.b16 %v575, %v574
      %v656 = vpack.c.b16 %v577, %v576
      %v657 = vpack.c.b16 %v579, %v578
      %v658 = vpack.c.b16 %v581, %v580
      %v659 = vpack.c.b16 %v583, %v582
      %v660 = vpack.c.b16 %v585, %v584
      %v661 = vpack.c.b16 %v587, %v586
      %v662 = vpack.c.b16 %v589, %v588
      %v663 = vpack.c.b16 %v591, %v590
      %v664 = vpack.c.b16 %v593, %v592
      %v665 = vpack.c.b16 %v595, %v594
      %v666 = vpack.c.b16 %v597, %v596
      %v667 = vpack.c.b16 %v599, %v598
      %v668 = vpack.c.b16 %v601, %v600
      %v669 = vpack.c.b16 %v603, %v602
      %v670 = vpack.c.b16 %v605, %v604
      %v671 = vpack.c.b16 %v607, %v606
      %v676 = vunpack.c.l.b16 %v341
      %v677 = vunpack.c.l.b16 %v342
      %v678 = vunpack.c.l.b16 %v343
      %v679 = vunpack.c.l.b16 %v344
      %v680 = vpack.c.b16 %v677, %v676
      %v681 = vpack.c.b16 %v679, %v678
      %vm683 = vcmask 220160
      %v685 = vsel %vm683, %v608, 0
      %v688 = vsel %vm683, %v609, 0
      %v691 = vsel %vm683, %v610, 0
      %v694 = vsel %vm683, %v611, 0
      %v697 = vsel %vm683, %v612, 0
      %v700 = vsel %vm683, %v613, 0
      %v703 = vsel %vm683, %v614, 0
      %v706 = vsel %vm683, %v615, 0
      %v709 = vsel %vm683, %v616, 0
      %v712 = vsel %vm683, %v617, 0
      %v715 = vsel %vm683, %v618, 0
      %v718 = vsel %vm683, %v619, 0
      %v721 = vsel %vm683, %v620, 0
      %v724 = vsel %vm683, %v621, 0
      %v727 = vsel %vm683, %v622, 0
      %v730 = vsel %vm683, %v623, 0
      %v733 = vsel %vm683, %v624, 0
      %v736 = vsel %vm683, %v625, 0
      %v739 = vsel %vm683, %v626, 0
      %v742 = vsel %vm683, %v627, 0
      %v745 = vsel %vm683, %v628, 0
      %v748 = vsel %vm683, %v629, 0
      %v751 = vsel %vm683, %v630, 0
      %v754 = vsel %vm683, %v631, 0
      %v757 = vsel %vm683, %v632, 0
      %v760 = vsel %vm683, %v633, 0
      %v763 = vsel %vm683, %v634, 0
      %v766 = vsel %vm683, %v635, 0
      %v769 = vsel %vm683, %v636, 0
      %v772 = vsel %vm683, %v637, 0
      %v775 = vsel %vm683, %v638, 0
      %v778 = vsel %vm683, %v639, 0
      %v781 = vsel %vm683, %v640, 0
      %v784 = vsel %vm683, %v641, 0
      %v787 = vsel %vm683, %v642, 0
      %v790 = vsel %vm683, %v643, 0
      %v793 = vsel %vm683, %v644, 0
      %v796 = vsel %vm683, %v645, 0
      %v799 = vsel %vm683, %v646, 0
      %v802 = vsel %vm683, %v647, 0
      %v805 = vsel %vm683, %v648, 0
      %v808 = vsel %vm683, %v649, 0
      %v811 = vsel %vm683, %v650, 0
      %v814 = vsel %vm683, %v651, 0
      %v817 = vsel %vm683, %v652, 0
      %v820 = vsel %vm683, %v653, 0
      %v823 = vsel %vm683, %v654, 0
      %v826 = vsel %vm683, %v655, 0
      %v829 = vsel %vm683, %v656, 0
      %v832 = vsel %vm683, %v657, 0
      %v835 = vsel %vm683, %v658, 0
      %v838 = vsel %vm683, %v659, 0
      %v841 = vsel %vm683, %v660, 0
      %v844 = vsel %vm683, %v661, 0
      %v847 = vsel %vm683, %v662, 0
      %v850 = vsel %vm683, %v663, 0
      %v853 = vsel %vm683, %v664, 0
      %v856 = vsel %vm683, %v665, 0
      %v859 = vsel %vm683, %v666, 0
      %v862 = vsel %vm683, %v667, 0
      %v865 = vsel %vm683, %v668, 0
      %v868 = vsel %vm683, %v669, 0
      %v871 = vsel %vm683, %v670, 0
      %v874 = vsel %vm683, %v671, 0
      %vm876 = vcmask 1044480
      %vm877 = vcmask 1045504
      %v878 = vsel %vm876, 4294967295, 65535
      %v879 = vsel %vm877, %v878, 0
      %v881 = vand.u32 %v681, %v879
      %883 = vmatprep.subr.bf16.mxu0 0
      %884 = vmatpush1.bf16.msra.mxu0 %v680
      %885 = vmatprep.subr.bf16.mxu0 0
      %886 = vmatpush1.bf16.msra.mxu0 %v881
      %887 = vmatprep.subr.bf16.mxu0 0
      %888 = vmatpush1.bf16.msra.mxu0 0
      %889 = vmatprep.subr.bf16.mxu0 0
      %890 = vmatpush1.bf16.msra.mxu0 0
      %891 = vmatprep.subr.bf16.mxu0 0
      %892 = vmatpush1.bf16.msra.mxu0 0
      %893 = vmatprep.subr.bf16.mxu0 0
      %894 = vmatpush1.bf16.msra.mxu0 0
      %895 = vmatprep.subr.bf16.mxu0 0
      %896 = vmatpush1.bf16.msra.mxu0 0
      %897 = vmatprep.subr.bf16.mxu0 0
      %898 = vmatpush1.bf16.msra.mxu0 0
      %899 = vmatprep.subr.bf16.mxu0 0
      %900 = vmatpush1.bf16.msra.mxu0 0
      %901 = vmatprep.subr.bf16.mxu0 0
      %902 = vmatpush1.bf16.msra.mxu0 0
      %903 = vmatprep.subr.bf16.mxu0 0
      %904 = vmatpush1.bf16.msra.mxu0 0
      %905 = vmatprep.subr.bf16.mxu0 0
      %906 = vmatpush1.bf16.msra.mxu0 0
      %907 = vmatprep.subr.bf16.mxu0 0
      %908 = vmatpush1.bf16.msra.mxu0 0
      %909 = vmatprep.subr.bf16.mxu0 0
      %910 = vmatpush1.bf16.msra.mxu0 0
      %911 = vmatprep.subr.bf16.mxu0 0
      %912 = vmatpush1.bf16.msra.mxu0 0
      %913 = vmatprep.subr.bf16.mxu0 0
      %914 = vmatpush1.bf16.msra.mxu0 0
      %915 = vmatprep.mubr.bf16.mxu0 0
      %916 = vmatmul.mubr.bf16.gmra.mrb[0].mxu0 %v685
      %v917 = vpop.f32.mrb[0].mxu0
      %v918 = vadd.f32 %v350, %v917
      %v919 = vpop.f32.mrb[0].mxu0
      %v920 = vpop.f32.mrb[0].mxu0
      %v921 = vadd.f32 %v350, %v920
      %v922 = vpop.f32.mrb[0].mxu0
      %923 = vmatprep.mubr.bf16.mxu0 0
      %924 = vmatmul.mubr.bf16.gmra.mrb[0].mxu0 %v688
      %v925 = vpop.f32.mrb[0].mxu0
      %v926 = vadd.f32 %v350, %v925
      %v927 = vpop.f32.mrb[0].mxu0
      %v928 = vpop.f32.mrb[0].mxu0
      %v929 = vadd.f32 %v350, %v928
      %v930 = vpop.f32.mrb[0].mxu0
      %931 = vmatprep.mubr.bf16.mxu0 0
      %932 = vmatmul.mubr.bf16.gmra.mrb[0].mxu0 %v691
      %v933 = vpop.f32.mrb[0].mxu0
      %v934 = vadd.f32 %v350, %v933
      %v935 = vpop.f32.mrb[0].mxu0
      %v936 = vpop.f32.mrb[0].mxu0
      %v937 = vadd.f32 %v350, %v936
      %v938 = vpop.f32.mrb[0].mxu0
      %939 = vmatprep.mubr.bf16.mxu0 0
      %940 = vmatmul.mubr.bf16.gmra.mrb[0].mxu0 %v694
      %v941 = vpop.f32.mrb[0].mxu0
      %v942 = vadd.f32 %v350, %v941
      %v943 = vpop.f32.mrb[0].mxu0
      %v944 = vpop.f32.mrb[0].mxu0
      %v945 = vadd.f32 %v350, %v944
      %v946 = vpop.f32.mrb[0].mxu0
      %947 = vmatprep.mubr.bf16.mxu0 0
      %948 = vmatmul.mubr.bf16.gmra.mrb[0].mxu0 %v697
      %v949 = vpop.f32.mrb[0].mxu0
      %v950 = vadd.f32 %v350, %v949
      %v951 = vpop.f32.mrb[0].mxu0
      %v952 = vpop.f32.mrb[0].mxu0
      %v953 = vadd.f32 %v350, %v952
      %v954 = vpop.f32.mrb[0].mxu0
      %955 = vmatprep.mubr.bf16.mxu0 0
      %956 = vmatmul.mubr.bf16.gmra.mrb[0].mxu0 %v700
      %v957 = vpop.f32.mrb[0].mxu0
      %v958 = vadd.f32 %v350, %v957
      %v959 = vpop.f32.mrb[0].mxu0
      %v960 = vpop.f32.mrb[0].mxu0
      %v961 = vadd.f32 %v350, %v960
      %v962 = vpop.f32.mrb[0].mxu0
      %963 = vmatprep.mubr.bf16.mxu0 0
      %964 = vmatmul.mubr.bf16.gmra.mrb[0].mxu0 %v703
      %v965 = vpop.f32.mrb[0].mxu0
      %v966 = vadd.f32 %v350, %v965
      %v967 = vpop.f32.mrb[0].mxu0
      %v968 = vpop.f32.mrb[0].mxu0
      %v969 = vadd.f32 %v350, %v968
      %v970 = vpop.f32.mrb[0].mxu0
      %971 = vmatprep.mubr.bf16.mxu0 0
      %972 = vmatmul.mubr.bf16.gmra.mrb[0].mxu0 %v706
      %v973 = vpop.f32.mrb[0].mxu0
      %v974 = vadd.f32 %v350, %v973
      %v975 = vpop.f32.mrb[0].mxu0
      %v976 = vpop.f32.mrb[0].mxu0
      %v977 = vadd.f32 %v350, %v976
      %v978 = vpop.f32.mrb[0].mxu0
      %979 = vmatprep.mubr.bf16.mxu0 0
      %980 = vmatmul.mubr.bf16.gmra.mrb[0].mxu0 %v709
      %v981 = vpop.f32.mrb[0].mxu0
      %v982 = vadd.f32 %v350, %v981
      %v983 = vpop.f32.mrb[0].mxu0
      %v984 = vpop.f32.mrb[0].mxu0
      %v985 = vadd.f32 %v350, %v984
      %v986 = vpop.f32.mrb[0].mxu0
      %987 = vmatprep.mubr.bf16.mxu0 0
      %988 = vmatmul.mubr.bf16.gmra.mrb[0].mxu0 %v712
      %v989 = vpop.f32.mrb[0].mxu0
      %v990 = vadd.f32 %v350, %v989
      %v991 = vpop.f32.mrb[0].mxu0
      %v992 = vpop.f32.mrb[0].mxu0
      %v993 = vadd.f32 %v350, %v992
      %v994 = vpop.f32.mrb[0].mxu0
      %995 = vmatprep.mubr.bf16.mxu0 0
      %996 = vmatmul.mubr.bf16.gmra.mrb[0].mxu0 %v715
      %v997 = vpop.f32.mrb[0].mxu0
      %v998 = vadd.f32 %v350, %v997
      %v999 = vpop.f32.mrb[0].mxu0
      %v1000 = vpop.f32.mrb[0].mxu0
      %v1001 = vadd.f32 %v350, %v1000
      %v1002 = vpop.f32.mrb[0].mxu0
      %1003 = vmatprep.mubr.bf16.mxu0 0
      %1004 = vmatmul.mubr.bf16.gmra.mrb[0].mxu0 %v718
      %v1005 = vpop.f32.mrb[0].mxu0
      %v1006 = vadd.f32 %v350, %v1005
      %v1007 = vpop.f32.mrb[0].mxu0
      %v1008 = vpop.f32.mrb[0].mxu0
      %v1009 = vadd.f32 %v350, %v1008
      %v1010 = vpop.f32.mrb[0].mxu0
      %1011 = vmatprep.mubr.bf16.mxu0 0
      %1012 = vmatmul.mubr.bf16.gmra.mrb[0].mxu0 %v721
      %v1013 = vpop.f32.mrb[0].mxu0
      %v1014 = vadd.f32 %v350, %v1013
      %v1015 = vpop.f32.mrb[0].mxu0
      %v1016 = vpop.f32.mrb[0].mxu0
      %v1017 = vadd.f32 %v350, %v1016
      %v1018 = vpop.f32.mrb[0].mxu0
      %1019 = vmatprep.mubr.bf16.mxu0 0
      %1020 = vmatmul.mubr.bf16.gmra.mrb[0].mxu0 %v724
      %v1021 = vpop.f32.mrb[0].mxu0
      %v1022 = vadd.f32 %v350, %v1021
      %v1023 = vpop.f32.mrb[0].mxu0
      %v1024 = vpop.f32.mrb[0].mxu0
      %v1025 = vadd.f32 %v350, %v1024
      %v1026 = vpop.f32.mrb[0].mxu0
      %1027 = vmatprep.mubr.bf16.mxu0 0
      %1028 = vmatmul.mubr.bf16.gmra.mrb[0].mxu0 %v727
      %v1029 = vpop.f32.mrb[0].mxu0
      %v1030 = vadd.f32 %v350, %v1029
      %v1031 = vpop.f32.mrb[0].mxu0
      %v1032 = vpop.f32.mrb[0].mxu0
      %v1033 = vadd.f32 %v350, %v1032
      %v1034 = vpop.f32.mrb[0].mxu0
      %1035 = vmatprep.mubr.bf16.mxu0 0
      %1036 = vmatmul.mubr.bf16.gmra.mrb[0].mxu0 %v730
      %v1037 = vpop.f32.mrb[0].mxu0
      %v1038 = vadd.f32 %v350, %v1037
      %v1039 = vpop.f32.mrb[0].mxu0
      %v1040 = vpop.f32.mrb[0].mxu0
      %v1041 = vadd.f32 %v350, %v1040
      %v1042 = vpop.f32.mrb[0].mxu0
      %1043 = vmatprep.mubr.bf16.mxu0 0
      %1044 = vmatmul.mubr.bf16.gmra.mrb[0].mxu0 %v733
      %v1045 = vpop.f32.mrb[0].mxu0
      %v1046 = vadd.f32 %v350, %v1045
      %v1047 = vpop.f32.mrb[0].mxu0
      %v1048 = vpop.f32.mrb[0].mxu0
      %v1049 = vadd.f32 %v350, %v1048
      %v1050 = vpop.f32.mrb[0].mxu0
      %1051 = vmatprep.mubr.bf16.mxu0 0
      %1052 = vmatmul.mubr.bf16.gmra.mrb[0].mxu0 %v736
      %v1053 = vpop.f32.mrb[0].mxu0
      %v1054 = vadd.f32 %v350, %v1053
      %v1055 = vpop.f32.mrb[0].mxu0
      %v1056 = vpop.f32.mrb[0].mxu0
      %v1057 = vadd.f32 %v350, %v1056
      %v1058 = vpop.f32.mrb[0].mxu0
      %1059 = vmatprep.mubr.bf16.mxu0 0
      %1060 = vmatmul.mubr.bf16.gmra.mrb[0].mxu0 %v739
      %v1061 = vpop.f32.mrb[0].mxu0
      %v1062 = vadd.f32 %v350, %v1061
      %v1063 = vpop.f32.mrb[0].mxu0
      %v1064 = vpop.f32.mrb[0].mxu0
      %v1065 = vadd.f32 %v350, %v1064
      %v1066 = vpop.f32.mrb[0].mxu0
      %1067 = vmatprep.mubr.bf16.mxu0 0
      %1068 = vmatmul.mubr.bf16.gmra.mrb[0].mxu0 %v742
      %v1069 = vpop.f32.mrb[0].mxu0
      %v1070 = vadd.f32 %v350, %v1069
      %v1071 = vpop.f32.mrb[0].mxu0
      %v1072 = vpop.f32.mrb[0].mxu0
      %v1073 = vadd.f32 %v350, %v1072
      %v1074 = vpop.f32.mrb[0].mxu0
      %1075 = vmatprep.mubr.bf16.mxu0 0
      %1076 = vmatmul.mubr.bf16.gmra.mrb[0].mxu0 %v745
      %v1077 = vpop.f32.mrb[0].mxu0
      %v1078 = vadd.f32 %v350, %v1077
      %v1079 = vpop.f32.mrb[0].mxu0
      %v1080 = vpop.f32.mrb[0].mxu0
      %v1081 = vadd.f32 %v350, %v1080
      %v1082 = vpop.f32.mrb[0].mxu0
      %1083 = vmatprep.mubr.bf16.mxu0 0
      %1084 = vmatmul.mubr.bf16.gmra.mrb[0].mxu0 %v748
      %v1085 = vpop.f32.mrb[0].mxu0
      %v1086 = vadd.f32 %v350, %v1085
      %v1087 = vpop.f32.mrb[0].mxu0
      %v1088 = vpop.f32.mrb[0].mxu0
      %v1089 = vadd.f32 %v350, %v1088
      %v1090 = vpop.f32.mrb[0].mxu0
      %1091 = vmatprep.mubr.bf16.mxu0 0
      %1092 = vmatmul.mubr.bf16.gmra.mrb[0].mxu0 %v751
      %v1093 = vpop.f32.mrb[0].mxu0
      %v1094 = vadd.f32 %v350, %v1093
      %v1095 = vpop.f32.mrb[0].mxu0
      %v1096 = vpop.f32.mrb[0].mxu0
      %v1097 = vadd.f32 %v350, %v1096
      %v1098 = vpop.f32.mrb[0].mxu0
      %1099 = vmatprep.mubr.bf16.mxu0 0
      %1100 = vmatmul.mubr.bf16.gmra.mrb[0].mxu0 %v754
      %v1101 = vpop.f32.mrb[0].mxu0
      %v1102 = vadd.f32 %v350, %v1101
      %v1103 = vpop.f32.mrb[0].mxu0
      %v1104 = vpop.f32.mrb[0].mxu0
      %v1105 = vadd.f32 %v350, %v1104
      %v1106 = vpop.f32.mrb[0].mxu0
      %1107 = vmatprep.mubr.bf16.mxu0 0
      %1108 = vmatmul.mubr.bf16.gmra.mrb[0].mxu0 %v757
      %v1109 = vpop.f32.mrb[0].mxu0
      %v1110 = vadd.f32 %v350, %v1109
      %v1111 = vpop.f32.mrb[0].mxu0
      %v1112 = vpop.f32.mrb[0].mxu0
      %v1113 = vadd.f32 %v350, %v1112
      %v1114 = vpop.f32.mrb[0].mxu0
      %1115 = vmatprep.mubr.bf16.mxu0 0
      %1116 = vmatmul.mubr.bf16.gmra.mrb[0].mxu0 %v760
      %v1117 = vpop.f32.mrb[0].mxu0
      %v1118 = vadd.f32 %v350, %v1117
      %v1119 = vpop.f32.mrb[0].mxu0
      %v1120 = vpop.f32.mrb[0].mxu0
      %v1121 = vadd.f32 %v350, %v1120
      %v1122 = vpop.f32.mrb[0].mxu0
      %1123 = vmatprep.mubr.bf16.mxu0 0
      %1124 = vmatmul.mubr.bf16.gmra.mrb[0].mxu0 %v763
      %v1125 = vpop.f32.mrb[0].mxu0
      %v1126 = vadd.f32 %v350, %v1125
      %v1127 = vpop.f32.mrb[0].mxu0
      %v1128 = vpop.f32.mrb[0].mxu0
      %v1129 = vadd.f32 %v350, %v1128
      %v1130 = vpop.f32.mrb[0].mxu0
      %1131 = vmatprep.mubr.bf16.mxu0 0
      %1132 = vmatmul.mubr.bf16.gmra.mrb[0].mxu0 %v766
      %v1133 = vpop.f32.mrb[0].mxu0
      %v1134 = vadd.f32 %v350, %v1133
      %v1135 = vpop.f32.mrb[0].mxu0
      %v1136 = vpop.f32.mrb[0].mxu0
      %v1137 = vadd.f32 %v350, %v1136
      %v1138 = vpop.f32.mrb[0].mxu0
      %1139 = vmatprep.mubr.bf16.mxu0 0
      %1140 = vmatmul.mubr.bf16.gmra.mrb[0].mxu0 %v769
      %v1141 = vpop.f32.mrb[0].mxu0
      %v1142 = vadd.f32 %v350, %v1141
      %v1143 = vpop.f32.mrb[0].mxu0
      %v1144 = vpop.f32.mrb[0].mxu0
      %v1145 = vadd.f32 %v350, %v1144
      %v1146 = vpop.f32.mrb[0].mxu0
      %1147 = vmatprep.mubr.bf16.mxu0 0
      %1148 = vmatmul.mubr.bf16.gmra.mrb[0].mxu0 %v772
      %v1149 = vpop.f32.mrb[0].mxu0
      %v1150 = vadd.f32 %v350, %v1149
      %v1151 = vpop.f32.mrb[0].mxu0
      %v1152 = vpop.f32.mrb[0].mxu0
      %v1153 = vadd.f32 %v350, %v1152
      %v1154 = vpop.f32.mrb[0].mxu0
      %1155 = vmatprep.mubr.bf16.mxu0 0
      %1156 = vmatmul.mubr.bf16.gmra.mrb[0].mxu0 %v775
      %v1157 = vpop.f32.mrb[0].mxu0
      %v1158 = vadd.f32 %v350, %v1157
      %v1159 = vpop.f32.mrb[0].mxu0
      %v1160 = vpop.f32.mrb[0].mxu0
      %v1161 = vadd.f32 %v350, %v1160
      %v1162 = vpop.f32.mrb[0].mxu0
      %1163 = vmatprep.mubr.bf16.mxu0 0
      %1164 = vmatmul.mubr.bf16.gmra.mrb[0].mxu0 %v778
      %v1165 = vpop.f32.mrb[0].mxu0
      %v1166 = vadd.f32 %v350, %v1165
      %v1167 = vpop.f32.mrb[0].mxu0
      %v1168 = vpop.f32.mrb[0].mxu0
      %v1169 = vadd.f32 %v350, %v1168
      %v1170 = vpop.f32.mrb[0].mxu0
      %1171 = vmatprep.mubr.bf16.mxu0 0
      %1172 = vmatmul.mubr.bf16.gmra.mrb[0].mxu0 %v781
      %v1173 = vpop.f32.mrb[0].mxu0
      %v1174 = vadd.f32 %v350, %v1173
      %v1175 = vpop.f32.mrb[0].mxu0
      %v1176 = vpop.f32.mrb[0].mxu0
      %v1177 = vadd.f32 %v350, %v1176
      %v1178 = vpop.f32.mrb[0].mxu0
      %1179 = vmatprep.mubr.bf16.mxu0 0
      %1180 = vmatmul.mubr.bf16.gmra.mrb[0].mxu0 %v784
      %v1181 = vpop.f32.mrb[0].mxu0
      %v1182 = vadd.f32 %v350, %v1181
      %v1183 = vpop.f32.mrb[0].mxu0
      %v1184 = vpop.f32.mrb[0].mxu0
      %v1185 = vadd.f32 %v350, %v1184
      %v1186 = vpop.f32.mrb[0].mxu0
      %1187 = vmatprep.mubr.bf16.mxu0 0
      %1188 = vmatmul.mubr.bf16.gmra.mrb[0].mxu0 %v787
      %v1189 = vpop.f32.mrb[0].mxu0
      %v1190 = vadd.f32 %v350, %v1189
      %v1191 = vpop.f32.mrb[0].mxu0
      %v1192 = vpop.f32.mrb[0].mxu0
      %v1193 = vadd.f32 %v350, %v1192
      %v1194 = vpop.f32.mrb[0].mxu0
      %1195 = vmatprep.mubr.bf16.mxu0 0
      %1196 = vmatmul.mubr.bf16.gmra.mrb[0].mxu0 %v790
      %v1197 = vpop.f32.mrb[0].mxu0
      %v1198 = vadd.f32 %v350, %v1197
      %v1199 = vpop.f32.mrb[0].mxu0
      %v1200 = vpop.f32.mrb[0].mxu0
      %v1201 = vadd.f32 %v350, %v1200
      %v1202 = vpop.f32.mrb[0].mxu0
      %1203 = vmatprep.mubr.bf16.mxu0 0
      %1204 = vmatmul.mubr.bf16.gmra.mrb[0].mxu0 %v793
      %v1205 = vpop.f32.mrb[0].mxu0
      %v1206 = vadd.f32 %v350, %v1205
      %v1207 = vpop.f32.mrb[0].mxu0
      %v1208 = vpop.f32.mrb[0].mxu0
      %v1209 = vadd.f32 %v350, %v1208
      %v1210 = vpop.f32.mrb[0].mxu0
      %1211 = vmatprep.mubr.bf16.mxu0 0
      %1212 = vmatmul.mubr.bf16.gmra.mrb[0].mxu0 %v796
      %v1213 = vpop.f32.mrb[0].mxu0
      %v1214 = vadd.f32 %v350, %v1213
      %v1215 = vpop.f32.mrb[0].mxu0
      %v1216 = vpop.f32.mrb[0].mxu0
      %v1217 = vadd.f32 %v350, %v1216
      %v1218 = vpop.f32.mrb[0].mxu0
      %1219 = vmatprep.mubr.bf16.mxu0 0
      %1220 = vmatmul.mubr.bf16.gmra.mrb[0].mxu0 %v799
      %v1221 = vpop.f32.mrb[0].mxu0
      %v1222 = vadd.f32 %v350, %v1221
      %v1223 = vpop.f32.mrb[0].mxu0
      %v1224 = vpop.f32.mrb[0].mxu0
      %v1225 = vadd.f32 %v350, %v1224
      %v1226 = vpop.f32.mrb[0].mxu0
      %1227 = vmatprep.mubr.bf16.mxu0 0
      %1228 = vmatmul.mubr.bf16.gmra.mrb[0].mxu0 %v802
      %v1229 = vpop.f32.mrb[0].mxu0
      %v1230 = vadd.f32 %v350, %v1229
      %v1231 = vpop.f32.mrb[0].mxu0
      %v1232 = vpop.f32.mrb[0].mxu0
      %v1233 = vadd.f32 %v350, %v1232
      %v1234 = vpop.f32.mrb[0].mxu0
      %1235 = vmatprep.mubr.bf16.mxu0 0
      %1236 = vmatmul.mubr.bf16.gmra.mrb[0].mxu0 %v805
      %v1237 = vpop.f32.mrb[0].mxu0
      %v1238 = vadd.f32 %v350, %v1237
      %v1239 = vpop.f32.mrb[0].mxu0
      %v1240 = vpop.f32.mrb[0].mxu0
      %v1241 = vadd.f32 %v350, %v1240
      %v1242 = vpop.f32.mrb[0].mxu0
      %1243 = vmatprep.mubr.bf16.mxu0 0
      %1244 = vmatmul.mubr.bf16.gmra.mrb[0].mxu0 %v808
      %v1245 = vpop.f32.mrb[0].mxu0
      %v1246 = vadd.f32 %v350, %v1245
      %v1247 = vpop.f32.mrb[0].mxu0
      %v1248 = vpop.f32.mrb[0].mxu0
      %v1249 = vadd.f32 %v350, %v1248
      %v1250 = vpop.f32.mrb[0].mxu0
      %1251 = vmatprep.mubr.bf16.mxu0 0
      %1252 = vmatmul.mubr.bf16.gmra.mrb[0].mxu0 %v811
      %v1253 = vpop.f32.mrb[0].mxu0
      %v1254 = vadd.f32 %v350, %v1253
      %v1255 = vpop.f32.mrb[0].mxu0
      %v1256 = vpop.f32.mrb[0].mxu0
      %v1257 = vadd.f32 %v350, %v1256
      %v1258 = vpop.f32.mrb[0].mxu0
      %1259 = vmatprep.mubr.bf16.mxu0 0
      %1260 = vmatmul.mubr.bf16.gmra.mrb[0].mxu0 %v814
      %v1261 = vpop.f32.mrb[0].mxu0
      %v1262 = vadd.f32 %v350, %v1261
      %v1263 = vpop.f32.mrb[0].mxu0
      %v1264 = vpop.f32.mrb[0].mxu0
      %v1265 = vadd.f32 %v350, %v1264
      %v1266 = vpop.f32.mrb[0].mxu0
      %1267 = vmatprep.mubr.bf16.mxu0 0
      %1268 = vmatmul.mubr.bf16.gmra.mrb[0].mxu0 %v817
      %v1269 = vpop.f32.mrb[0].mxu0
      %v1270 = vadd.f32 %v350, %v1269
      %v1271 = vpop.f32.mrb[0].mxu0
      %v1272 = vpop.f32.mrb[0].mxu0
      %v1273 = vadd.f32 %v350, %v1272
      %v1274 = vpop.f32.mrb[0].mxu0
      %1275 = vmatprep.mubr.bf16.mxu0 0
      %1276 = vmatmul.mubr.bf16.gmra.mrb[0].mxu0 %v820
      %v1277 = vpop.f32.mrb[0].mxu0
      %v1278 = vadd.f32 %v350, %v1277
      %v1279 = vpop.f32.mrb[0].mxu0
      %v1280 = vpop.f32.mrb[0].mxu0
      %v1281 = vadd.f32 %v350, %v1280
      %v1282 = vpop.f32.mrb[0].mxu0
      %1283 = vmatprep.mubr.bf16.mxu0 0
      %1284 = vmatmul.mubr.bf16.gmra.mrb[0].mxu0 %v823
      %v1285 = vpop.f32.mrb[0].mxu0
      %v1286 = vadd.f32 %v350, %v1285
      %v1287 = vpop.f32.mrb[0].mxu0
      %v1288 = vpop.f32.mrb[0].mxu0
      %v1289 = vadd.f32 %v350, %v1288
      %v1290 = vpop.f32.mrb[0].mxu0
      %1291 = vmatprep.mubr.bf16.mxu0 0
      %1292 = vmatmul.mubr.bf16.gmra.mrb[0].mxu0 %v826
      %v1293 = vpop.f32.mrb[0].mxu0
      %v1294 = vadd.f32 %v350, %v1293
      %v1295 = vpop.f32.mrb[0].mxu0
      %v1296 = vpop.f32.mrb[0].mxu0
      %v1297 = vadd.f32 %v350, %v1296
      %v1298 = vpop.f32.mrb[0].mxu0
      %1299 = vmatprep.mubr.bf16.mxu0 0
      %1300 = vmatmul.mubr.bf16.gmra.mrb[0].mxu0 %v829
      %v1301 = vpop.f32.mrb[0].mxu0
      %v1302 = vadd.f32 %v350, %v1301
      %v1303 = vpop.f32.mrb[0].mxu0
      %v1304 = vpop.f32.mrb[0].mxu0
      %v1305 = vadd.f32 %v350, %v1304
      %v1306 = vpop.f32.mrb[0].mxu0
      %1307 = vmatprep.mubr.bf16.mxu0 0
      %1308 = vmatmul.mubr.bf16.gmra.mrb[0].mxu0 %v832
      %v1309 = vpop.f32.mrb[0].mxu0
      %v1310 = vadd.f32 %v350, %v1309
      %v1311 = vpop.f32.mrb[0].mxu0
      %v1312 = vpop.f32.mrb[0].mxu0
      %v1313 = vadd.f32 %v350, %v1312
      %v1314 = vpop.f32.mrb[0].mxu0
      %1315 = vmatprep.mubr.bf16.mxu0 0
      %1316 = vmatmul.mubr.bf16.gmra.mrb[0].mxu0 %v835
      %v1317 = vpop.f32.mrb[0].mxu0
      %v1318 = vadd.f32 %v350, %v1317
      %v1319 = vpop.f32.mrb[0].mxu0
      %v1320 = vpop.f32.mrb[0].mxu0
      %v1321 = vadd.f32 %v350, %v1320
      %v1322 = vpop.f32.mrb[0].mxu0
      %1323 = vmatprep.mubr.bf16.mxu0 0
      %1324 = vmatmul.mubr.bf16.gmra.mrb[0].mxu0 %v838
      %v1325 = vpop.f32.mrb[0].mxu0
      %v1326 = vadd.f32 %v350, %v1325
      %v1327 = vpop.f32.mrb[0].mxu0
      %v1328 = vpop.f32.mrb[0].mxu0
      %v1329 = vadd.f32 %v350, %v1328
      %v1330 = vpop.f32.mrb[0].mxu0
      %1331 = vmatprep.mubr.bf16.mxu0 0
      %1332 = vmatmul.mubr.bf16.gmra.mrb[0].mxu0 %v841
      %v1333 = vpop.f32.mrb[0].mxu0
      %v1334 = vadd.f32 %v350, %v1333
      %v1335 = vpop.f32.mrb[0].mxu0
      %v1336 = vpop.f32.mrb[0].mxu0
      %v1337 = vadd.f32 %v350, %v1336
      %v1338 = vpop.f32.mrb[0].mxu0
      %1339 = vmatprep.mubr.bf16.mxu0 0
      %1340 = vmatmul.mubr.bf16.gmra.mrb[0].mxu0 %v844
      %v1341 = vpop.f32.mrb[0].mxu0
      %v1342 = vadd.f32 %v350, %v1341
      %v1343 = vpop.f32.mrb[0].mxu0
      %v1344 = vpop.f32.mrb[0].mxu0
      %v1345 = vadd.f32 %v350, %v1344
      %v1346 = vpop.f32.mrb[0].mxu0
      %1347 = vmatprep.mubr.bf16.mxu0 0
      %1348 = vmatmul.mubr.bf16.gmra.mrb[0].mxu0 %v847
      %v1349 = vpop.f32.mrb[0].mxu0
      %v1350 = vadd.f32 %v350, %v1349
      %v1351 = vpop.f32.mrb[0].mxu0
      %v1352 = vpop.f32.mrb[0].mxu0
      %v1353 = vadd.f32 %v350, %v1352
      %v1354 = vpop.f32.mrb[0].mxu0
      %1355 = vmatprep.mubr.bf16.mxu0 0
      %1356 = vmatmul.mubr.bf16.gmra.mrb[0].mxu0 %v850
      %v1357 = vpop.f32.mrb[0].mxu0
      %v1358 = vadd.f32 %v350, %v1357
      %v1359 = vpop.f32.mrb[0].mxu0
      %v1360 = vpop.f32.mrb[0].mxu0
      %v1361 = vadd.f32 %v350, %v1360
      %v1362 = vpop.f32.mrb[0].mxu0
      %1363 = vmatprep.mubr.bf16.mxu0 0
      %1364 = vmatmul.mubr.bf16.gmra.mrb[0].mxu0 %v853
      %v1365 = vpop.f32.mrb[0].mxu0
      %v1366 = vadd.f32 %v350, %v1365
      %v1367 = vpop.f32.mrb[0].mxu0
      %v1368 = vpop.f32.mrb[0].mxu0
      %v1369 = vadd.f32 %v350, %v1368
      %v1370 = vpop.f32.mrb[0].mxu0
      %1371 = vmatprep.mubr.bf16.mxu0 0
      %1372 = vmatmul.mubr.bf16.gmra.mrb[0].mxu0 %v856
      %v1373 = vpop.f32.mrb[0].mxu0
      %v1374 = vadd.f32 %v350, %v1373
      %v1375 = vpop.f32.mrb[0].mxu0
      %v1376 = vpop.f32.mrb[0].mxu0
      %v1377 = vadd.f32 %v350, %v1376
      %v1378 = vpop.f32.mrb[0].mxu0
      %1379 = vmatprep.mubr.bf16.mxu0 0
      %1380 = vmatmul.mubr.bf16.gmra.mrb[0].mxu0 %v859
      %v1381 = vpop.f32.mrb[0].mxu0
      %v1382 = vadd.f32 %v350, %v1381
      %v1383 = vpop.f32.mrb[0].mxu0
      %v1384 = vpop.f32.mrb[0].mxu0
      %v1385 = vadd.f32 %v350, %v1384
      %v1386 = vpop.f32.mrb[0].mxu0
      %1387 = vmatprep.mubr.bf16.mxu0 0
      %1388 = vmatmul.mubr.bf16.gmra.mrb[0].mxu0 %v862
      %v1389 = vpop.f32.mrb[0].mxu0
      %v1390 = vadd.f32 %v350, %v1389
      %v1391 = vpop.f32.mrb[0].mxu0
      %v1392 = vpop.f32.mrb[0].mxu0
      %v1393 = vadd.f32 %v350, %v1392
      %v1394 = vpop.f32.mrb[0].mxu0
      %1395 = vmatprep.mubr.bf16.mxu0 0
      %1396 = vmatmul.mubr.bf16.gmra.mrb[0].mxu0 %v865
      %v1397 = vpop.f32.mrb[0].mxu0
      %v1398 = vadd.f32 %v350, %v1397
      %v1399 = vpop.f32.mrb[0].mxu0
      %v1400 = vpop.f32.mrb[0].mxu0
      %v1401 = vadd.f32 %v350, %v1400
      %v1402 = vpop.f32.mrb[0].mxu0
      %1403 = vmatprep.mubr.bf16.mxu0 0
      %1404 = vmatmul.mubr.bf16.gmra.mrb[0].mxu0 %v868
      %v1405 = vpop.f32.mrb[0].mxu0
      %v1406 = vadd.f32 %v350, %v1405
      %v1407 = vpop.f32.mrb[0].mxu0
      %v1408 = vpop.f32.mrb[0].mxu0
      %v1409 = vadd.f32 %v350, %v1408
      %v1410 = vpop.f32.mrb[0].mxu0
      %1411 = vmatprep.mubr.bf16.mxu0 0
      %1412 = vmatmul.mubr.bf16.gmra.mrb[0].mxu0 %v871
      %v1413 = vpop.f32.mrb[0].mxu0
      %v1414 = vadd.f32 %v350, %v1413
      %v1415 = vpop.f32.mrb[0].mxu0
      %v1416 = vpop.f32.mrb[0].mxu0
      %v1417 = vadd.f32 %v350, %v1416
      %v1418 = vpop.f32.mrb[0].mxu0
      %1419 = vmatprep.mubr.bf16.mxu0 0
      %1420 = vmatmul.mubr.bf16.gmra.mrb[0].mxu0 %v874
      %v1421 = vpop.f32.mrb[0].mxu0
      %v1422 = vadd.f32 %v350, %v1421
      %v1423 = vpop.f32.mrb[0].mxu0
      %v1424 = vpop.f32.mrb[0].mxu0
      %v1425 = vadd.f32 %v350, %v1424
      %v1426 = vpop.f32.mrb[0].mxu0
      %1427 = vdwg.mxu0
      %v1428 = vmax.f32 %v918, 0.0
      %v1429 = vmax.f32 %v921, 0.0
      %v1430 = vmax.f32 %v926, 0.0
      %v1431 = vmax.f32 %v929, 0.0
      %v1432 = vmax.f32 %v934, 0.0
      %v1433 = vmax.f32 %v937, 0.0
      %v1434 = vmax.f32 %v942, 0.0
      %v1435 = vmax.f32 %v945, 0.0
      %v1436 = vmax.f32 %v950, 0.0
      %v1437 = vmax.f32 %v953, 0.0
      %v1438 = vmax.f32 %v958, 0.0
      %v1439 = vmax.f32 %v961, 0.0
      %v1440 = vmax.f32 %v966, 0.0
      %v1441 = vmax.f32 %v969, 0.0
      %v1442 = vmax.f32 %v974, 0.0
      %v1443 = vmax.f32 %v977, 0.0
      %v1444 = vmax.f32 %v982, 0.0
      %v1445 = vmax.f32 %v985, 0.0
      %v1446 = vmax.f32 %v990, 0.0
      %v1447 = vmax.f32 %v993, 0.0
      %v1448 = vmax.f32 %v998, 0.0
      %v1449 = vmax.f32 %v1001, 0.0
      %v1450 = vmax.f32 %v1006, 0.0
      %v1451 = vmax.f32 %v1009, 0.0
      %v1452 = vmax.f32 %v1014, 0.0
      %v1453 = vmax.f32 %v1017, 0.0
      %v1454 = vmax.f32 %v1022, 0.0
      %v1455 = vmax.f32 %v1025, 0.0
      %v1456 = vmax.f32 %v1030, 0.0
      %v1457 = vmax.f32 %v1033, 0.0
      %v1458 = vmax.f32 %v1038, 0.0
      %v1459 = vmax.f32 %v1041, 0.0
      %v1460 = vmax.f32 %v1046, 0.0
      %v1461 = vmax.f32 %v1049, 0.0
      %v1462 = vmax.f32 %v1054, 0.0
      %v1463 = vmax.f32 %v1057, 0.0
      %v1464 = vmax.f32 %v1062, 0.0
      %v1465 = vmax.f32 %v1065, 0.0
      %v1466 = vmax.f32 %v1070, 0.0
      %v1467 = vmax.f32 %v1073, 0.0
      %v1468 = vmax.f32 %v1078, 0.0
      %v1469 = vmax.f32 %v1081, 0.0
      %v1470 = vmax.f32 %v1086, 0.0
      %v1471 = vmax.f32 %v1089, 0.0
      %v1472 = vmax.f32 %v1094, 0.0
      %v1473 = vmax.f32 %v1097, 0.0
      %v1474 = vmax.f32 %v1102, 0.0
      %v1475 = vmax.f32 %v1105, 0.0
      %v1476 = vmax.f32 %v1110, 0.0
      %v1477 = vmax.f32 %v1113, 0.0
      %v1478 = vmax.f32 %v1118, 0.0
      %v1479 = vmax.f32 %v1121, 0.0
      %v1480 = vmax.f32 %v1126, 0.0
      %v1481 = vmax.f32 %v1129, 0.0
      %v1482 = vmax.f32 %v1134, 0.0
      %v1483 = vmax.f32 %v1137, 0.0
      %v1484 = vmax.f32 %v1142, 0.0
      %v1485 = vmax.f32 %v1145, 0.0
      %v1486 = vmax.f32 %v1150, 0.0
      %v1487 = vmax.f32 %v1153, 0.0
      %v1488 = vmax.f32 %v1158, 0.0
      %v1489 = vmax.f32 %v1161, 0.0
      %v1490 = vmax.f32 %v1166, 0.0
      %v1491 = vmax.f32 %v1169, 0.0
      %v1492 = vmax.f32 %v1174, 0.0
      %v1493 = vmax.f32 %v1177, 0.0
      %v1494 = vmax.f32 %v1182, 0.0
      %v1495 = vmax.f32 %v1185, 0.0
      %v1496 = vmax.f32 %v1190, 0.0
      %v1497 = vmax.f32 %v1193, 0.0
      %v1498 = vmax.f32 %v1198, 0.0
      %v1499 = vmax.f32 %v1201, 0.0
      %v1500 = vmax.f32 %v1206, 0.0
      %v1501 = vmax.f32 %v1209, 0.0
      %v1502 = vmax.f32 %v1214, 0.0
      %v1503 = vmax.f32 %v1217, 0.0
      %v1504 = vmax.f32 %v1222, 0.0
      %v1505 = vmax.f32 %v1225, 0.0
      %v1506 = vmax.f32 %v1230, 0.0
      %v1507 = vmax.f32 %v1233, 0.0
      %v1508 = vmax.f32 %v1238, 0.0
      %v1509 = vmax.f32 %v1241, 0.0
      %v1510 = vmax.f32 %v1246, 0.0
      %v1511 = vmax.f32 %v1249, 0.0
      %v1512 = vmax.f32 %v1254, 0.0
      %v1513 = vmax.f32 %v1257, 0.0
      %v1514 = vmax.f32 %v1262, 0.0
      %v1515 = vmax.f32 %v1265, 0.0
      %v1516 = vmax.f32 %v1270, 0.0
      %v1517 = vmax.f32 %v1273, 0.0
      %v1518 = vmax.f32 %v1278, 0.0
      %v1519 = vmax.f32 %v1281, 0.0
      %v1520 = vmax.f32 %v1286, 0.0
      %v1521 = vmax.f32 %v1289, 0.0
      %v1522 = vmax.f32 %v1294, 0.0
      %v1523 = vmax.f32 %v1297, 0.0
      %v1524 = vmax.f32 %v1302, 0.0
      %v1525 = vmax.f32 %v1305, 0.0
      %v1526 = vmax.f32 %v1310, 0.0
      %v1527 = vmax.f32 %v1313, 0.0
      %v1528 = vmax.f32 %v1318, 0.0
      %v1529 = vmax.f32 %v1321, 0.0
      %v1530 = vmax.f32 %v1326, 0.0
      %v1531 = vmax.f32 %v1329, 0.0
      %v1532 = vmax.f32 %v1334, 0.0
      %v1533 = vmax.f32 %v1337, 0.0
      %v1534 = vmax.f32 %v1342, 0.0
      %v1535 = vmax.f32 %v1345, 0.0
      %v1536 = vmax.f32 %v1350, 0.0
      %v1537 = vmax.f32 %v1353, 0.0
      %v1538 = vmax.f32 %v1358, 0.0
      %v1539 = vmax.f32 %v1361, 0.0
      %v1540 = vmax.f32 %v1366, 0.0
      %v1541 = vmax.f32 %v1369, 0.0
      %v1542 = vmax.f32 %v1374, 0.0
      %v1543 = vmax.f32 %v1377, 0.0
      %v1544 = vmax.f32 %v1382, 0.0
      %v1545 = vmax.f32 %v1385, 0.0
      %v1546 = vmax.f32 %v1390, 0.0
      %v1547 = vmax.f32 %v1393, 0.0
      %v1548 = vmax.f32 %v1398, 0.0
      %v1549 = vmax.f32 %v1401, 0.0
      %v1550 = vmax.f32 %v1406, 0.0
      %v1551 = vmax.f32 %v1409, 0.0
      %v1552 = vmax.f32 %v1414, 0.0
      %v1553 = vmax.f32 %v1417, 0.0
      %v1554 = vmax.f32 %v1422, 0.0
      %v1555 = vmax.f32 %v1425, 0.0
      %v1556 = vpack.c.bf16 %v1429, %v1428
      %v1557 = vpack.c.bf16 %v1431, %v1430
      %v1558 = vpack.c.bf16 %v1433, %v1432
      %v1559 = vpack.c.bf16 %v1435, %v1434
      %v1560 = vpack.c.bf16 %v1437, %v1436
      %v1561 = vpack.c.bf16 %v1439, %v1438
      %v1562 = vpack.c.bf16 %v1441, %v1440
      %v1563 = vpack.c.bf16 %v1443, %v1442
      %v1564 = vpack.c.bf16 %v1445, %v1444
      %v1565 = vpack.c.bf16 %v1447, %v1446
      %v1566 = vpack.c.bf16 %v1449, %v1448
      %v1567 = vpack.c.bf16 %v1451, %v1450
      %v1568 = vpack.c.bf16 %v1453, %v1452
      %v1569 = vpack.c.bf16 %v1455, %v1454
      %v1570 = vpack.c.bf16 %v1457, %v1456
      %v1571 = vpack.c.bf16 %v1459, %v1458
      %v1572 = vpack.c.bf16 %v1461, %v1460
      %v1573 = vpack.c.bf16 %v1463, %v1462
      %v1574 = vpack.c.bf16 %v1465, %v1464
      %v1575 = vpack.c.bf16 %v1467, %v1466
      %v1576 = vpack.c.bf16 %v1469, %v1468
      %v1577 = vpack.c.bf16 %v1471, %v1470
      %v1578 = vpack.c.bf16 %v1473, %v1472
      %v1579 = vpack.c.bf16 %v1475, %v1474
      %v1580 = vpack.c.bf16 %v1477, %v1476
      %v1581 = vpack.c.bf16 %v1479, %v1478
      %v1582 = vpack.c.bf16 %v1481, %v1480
      %v1583 = vpack.c.bf16 %v1483, %v1482
      %v1584 = vpack.c.bf16 %v1485, %v1484
      %v1585 = vpack.c.bf16 %v1487, %v1486
      %v1586 = vpack.c.bf16 %v1489, %v1488
      %v1587 = vpack.c.bf16 %v1491, %v1490
      %v1588 = vpack.c.bf16 %v1493, %v1492
      %v1589 = vpack.c.bf16 %v1495, %v1494
      %v1590 = vpack.c.bf16 %v1497, %v1496
      %v1591 = vpack.c.bf16 %v1499, %v1498
      %v1592 = vpack.c.bf16 %v1501, %v1500
      %v1593 = vpack.c.bf16 %v1503, %v1502
      %v1594 = vpack.c.bf16 %v1505, %v1504
      %v1595 = vpack.c.bf16 %v1507, %v1506
      %v1596 = vpack.c.bf16 %v1509, %v1508
      %v1597 = vpack.c.bf16 %v1511, %v1510
      %v1598 = vpack.c.bf16 %v1513, %v1512
      %v1599 = vpack.c.bf16 %v1515, %v1514
      %v1600 = vpack.c.bf16 %v1517, %v1516
      %v1601 = vpack.c.bf16 %v1519, %v1518
      %v1602 = vpack.c.bf16 %v1521, %v1520
      %v1603 = vpack.c.bf16 %v1523, %v1522
      %v1604 = vpack.c.bf16 %v1525, %v1524
      %v1605 = vpack.c.bf16 %v1527, %v1526
      %v1606 = vpack.c.bf16 %v1529, %v1528
      %v1607 = vpack.c.bf16 %v1531, %v1530
      %v1608 = vpack.c.bf16 %v1533, %v1532
      %v1609 = vpack.c.bf16 %v1535, %v1534
      %v1610 = vpack.c.bf16 %v1537, %v1536
      %v1611 = vpack.c.bf16 %v1539, %v1538
      %v1612 = vpack.c.bf16 %v1541, %v1540
      %v1613 = vpack.c.bf16 %v1543, %v1542
      %v1614 = vpack.c.bf16 %v1545, %v1544
      %v1615 = vpack.c.bf16 %v1547, %v1546
      %v1616 = vpack.c.bf16 %v1549, %v1548
      %v1617 = vpack.c.bf16 %v1551, %v1550
      %v1618 = vpack.c.bf16 %v1553, %v1552
      %v1619 = vpack.c.bf16 %v1555, %v1554
      %v1684 = vunpack.c.l.b16 %v1556
      %v1685 = vunpack.c.h.b16 %v1556
      %v1686 = vunpack.c.l.b16 %v1557
      %v1687 = vunpack.c.h.b16 %v1557
      %v1688 = vunpack.c.l.b16 %v1558
      %v1689 = vunpack.c.h.b16 %v1558
      %v1690 = vunpack.c.l.b16 %v1559
      %v1691 = vunpack.c.h.b16 %v1559
      %v1692 = vunpack.c.l.b16 %v1560
      %v1693 = vunpack.c.h.b16 %v1560
      %v1694 = vunpack.c.l.b16 %v1561
      %v1695 = vunpack.c.h.b16 %v1561
      %v1696 = vunpack.c.l.b16 %v1562
      %v1697 = vunpack.c.h.b16 %v1562
      %v1698 = vunpack.c.l.b16 %v1563
      %v1699 = vunpack.c.h.b16 %v1563
      %v1700 = vunpack.c.l.b16 %v1564
      %v1701 = vunpack.c.h.b16 %v1564
      %v1702 = vunpack.c.l.b16 %v1565
      %v1703 = vunpack.c.h.b16 %v1565
      %v1704 = vunpack.c.l.b16 %v1566
      %v1705 = vunpack.c.h.b16 %v1566
      %v1706 = vunpack.c.l.b16 %v1567
      %v1707 = vunpack.c.h.b16 %v1567
      %v1708 = vunpack.c.l.b16 %v1568
      %v1709 = vunpack.c.h.b16 %v1568
      %v1710 = vunpack.c.l.b16 %v1569
      %v1711 = vunpack.c.h.b16 %v1569
      %v1712 = vunpack.c.l.b16 %v1570
      %v1713 = vunpack.c.h.b16 %v1570
      %v1714 = vunpack.c.l.b16 %v1571
      %v1715 = vunpack.c.h.b16 %v1571
      %v1716 = vunpack.c.l.b16 %v1572
      %v1717 = vunpack.c.h.b16 %v1572
      %v1718 = vunpack.c.l.b16 %v1573
      %v1719 = vunpack.c.h.b16 %v1573
      %v1720 = vunpack.c.l.b16 %v1574
      %v1721 = vunpack.c.h.b16 %v1574
      %v1722 = vunpack.c.l.b16 %v1575
      %v1723 = vunpack.c.h.b16 %v1575
      %v1724 = vunpack.c.l.b16 %v1576
      %v1725 = vunpack.c.h.b16 %v1576
      %v1726 = vunpack.c.l.b16 %v1577
      %v1727 = vunpack.c.h.b16 %v1577
      %v1728 = vunpack.c.l.b16 %v1578
      %v1729 = vunpack.c.h.b16 %v1578
      %v1730 = vunpack.c.l.b16 %v1579
      %v1731 = vunpack.c.h.b16 %v1579
      %v1732 = vunpack.c.l.b16 %v1580
      %v1733 = vunpack.c.h.b16 %v1580
      %v1734 = vunpack.c.l.b16 %v1581
      %v1735 = vunpack.c.h.b16 %v1581
      %v1736 = vunpack.c.l.b16 %v1582
      %v1737 = vunpack.c.h.b16 %v1582
      %v1738 = vunpack.c.l.b16 %v1583
      %v1739 = vunpack.c.h.b16 %v1583
      %v1740 = vunpack.c.l.b16 %v1584
      %v1741 = vunpack.c.h.b16 %v1584
      %v1742 = vunpack.c.l.b16 %v1585
      %v1743 = vunpack.c.h.b16 %v1585
      %v1744 = vunpack.c.l.b16 %v1586
      %v1745 = vunpack.c.h.b16 %v1586
      %v1746 = vunpack.c.l.b16 %v1587
      %v1747 = vunpack.c.h.b16 %v1587
      %v1748 = vunpack.c.l.b16 %v1588
      %v1749 = vunpack.c.h.b16 %v1588
      %v1750 = vunpack.c.l.b16 %v1589
      %v1751 = vunpack.c.h.b16 %v1589
      %v1752 = vunpack.c.l.b16 %v1590
      %v1753 = vunpack.c.h.b16 %v1590
      %v1754 = vunpack.c.l.b16 %v1591
      %v1755 = vunpack.c.h.b16 %v1591
      %v1756 = vunpack.c.l.b16 %v1592
      %v1757 = vunpack.c.h.b16 %v1592
      %v1758 = vunpack.c.l.b16 %v1593
      %v1759 = vunpack.c.h.b16 %v1593
      %v1760 = vunpack.c.l.b16 %v1594
      %v1761 = vunpack.c.h.b16 %v1594
      %v1762 = vunpack.c.l.b16 %v1595
      %v1763 = vunpack.c.h.b16 %v1595
      %v1764 = vunpack.c.l.b16 %v1596
      %v1765 = vunpack.c.h.b16 %v1596
      %v1766 = vunpack.c.l.b16 %v1597
      %v1767 = vunpack.c.h.b16 %v1597
      %v1768 = vunpack.c.l.b16 %v1598
      %v1769 = vunpack.c.h.b16 %v1598
      %v1770 = vunpack.c.l.b16 %v1599
      %v1771 = vunpack.c.h.b16 %v1599
      %v1772 = vunpack.c.l.b16 %v1600
      %v1773 = vunpack.c.h.b16 %v1600
      %v1774 = vunpack.c.l.b16 %v1601
      %v1775 = vunpack.c.h.b16 %v1601
      %v1776 = vunpack.c.l.b16 %v1602
      %v1777 = vunpack.c.h.b16 %v1602
      %v1778 = vunpack.c.l.b16 %v1603
      %v1779 = vunpack.c.h.b16 %v1603
      %v1780 = vunpack.c.l.b16 %v1604
      %v1781 = vunpack.c.h.b16 %v1604
      %v1782 = vunpack.c.l.b16 %v1605
      %v1783 = vunpack.c.h.b16 %v1605
      %v1784 = vunpack.c.l.b16 %v1606
      %v1785 = vunpack.c.h.b16 %v1606
      %v1786 = vunpack.c.l.b16 %v1607
      %v1787 = vunpack.c.h.b16 %v1607
      %v1788 = vunpack.c.l.b16 %v1608
      %v1789 = vunpack.c.h.b16 %v1608
      %v1790 = vunpack.c.l.b16 %v1609
      %v1791 = vunpack.c.h.b16 %v1609
      %v1792 = vunpack.c.l.b16 %v1610
      %v1793 = vunpack.c.h.b16 %v1610
      %v1794 = vunpack.c.l.b16 %v1611
      %v1795 = vunpack.c.h.b16 %v1611
      %v1796 = vunpack.c.l.b16 %v1612
      %v1797 = vunpack.c.h.b16 %v1612
      %v1798 = vunpack.c.l.b16 %v1613
      %v1799 = vunpack.c.h.b16 %v1613
      %v1800 = vunpack.c.l.b16 %v1614
      %v1801 = vunpack.c.h.b16 %v1614
      %v1802 = vunpack.c.l.b16 %v1615
      %v1803 = vunpack.c.h.b16 %v1615
      %v1804 = vunpack.c.l.b16 %v1616
      %v1805 = vunpack.c.h.b16 %v1616
      %v1806 = vunpack.c.l.b16 %v1617
      %v1807 = vunpack.c.h.b16 %v1617
      %v1808 = vunpack.c.l.b16 %v1618
      %v1809 = vunpack.c.h.b16 %v1618
      %v1810 = vunpack.c.l.b16 %v1619
      %v1811 = vunpack.c.h.b16 %v1619
      %v1812 = vpack.c.b16 %v1684, %v1684
      %v1813 = vpack.c.b16 %v1685, %v1685
      %v1814 = vpack.c.b16 %v1686, %v1686
      %v1815 = vpack.c.b16 %v1687, %v1687
      %v1816 = vpack.c.b16 %v1688, %v1688
      %v1817 = vpack.c.b16 %v1689, %v1689
      %v1818 = vpack.c.b16 %v1690, %v1690
      %v1819 = vpack.c.b16 %v1691, %v1691
      %v1820 = vpack.c.b16 %v1692, %v1692
      %v1821 = vpack.c.b16 %v1693, %v1693
      %v1822 = vpack.c.b16 %v1694, %v1694
      %v1823 = vpack.c.b16 %v1695, %v1695
      %v1824 = vpack.c.b16 %v1696, %v1696
      %v1825 = vpack.c.b16 %v1697, %v1697
      %v1826 = vpack.c.b16 %v1698, %v1698
      %v1827 = vpack.c.b16 %v1699, %v1699
      %v1828 = vpack.c.b16 %v1700, %v1700
      %v1829 = vpack.c.b16 %v1701, %v1701
      %v1830 = vpack.c.b16 %v1702, %v1702
      %v1831 = vpack.c.b16 %v1703, %v1703
      %v1832 = vpack.c.b16 %v1704, %v1704
      %v1833 = vpack.c.b16 %v1705, %v1705
      %v1834 = vpack.c.b16 %v1706, %v1706
      %v1835 = vpack.c.b16 %v1707, %v1707
      %v1836 = vpack.c.b16 %v1708, %v1708
      %v1837 = vpack.c.b16 %v1709, %v1709
      %v1838 = vpack.c.b16 %v1710, %v1710
      %v1839 = vpack.c.b16 %v1711, %v1711
      %v1840 = vpack.c.b16 %v1712, %v1712
      %v1841 = vpack.c.b16 %v1713, %v1713
      %v1842 = vpack.c.b16 %v1714, %v1714
      %v1843 = vpack.c.b16 %v1715, %v1715
      %v1844 = vpack.c.b16 %v1716, %v1716
      %v1845 = vpack.c.b16 %v1717, %v1717
      %v1846 = vpack.c.b16 %v1718, %v1718
      %v1847 = vpack.c.b16 %v1719, %v1719
      %v1848 = vpack.c.b16 %v1720, %v1720
      %v1849 = vpack.c.b16 %v1721, %v1721
      %v1850 = vpack.c.b16 %v1722, %v1722
      %v1851 = vpack.c.b16 %v1723, %v1723
      %v1852 = vpack.c.b16 %v1724, %v1724
      %v1853 = vpack.c.b16 %v1725, %v1725
      %v1854 = vpack.c.b16 %v1726, %v1726
      %v1855 = vpack.c.b16 %v1727, %v1727
      %v1856 = vpack.c.b16 %v1728, %v1728
      %v1857 = vpack.c.b16 %v1729, %v1729
      %v1858 = vpack.c.b16 %v1730, %v1730
      %v1859 = vpack.c.b16 %v1731, %v1731
      %v1860 = vpack.c.b16 %v1732, %v1732
      %v1861 = vpack.c.b16 %v1733, %v1733
      %v1862 = vpack.c.b16 %v1734, %v1734
      %v1863 = vpack.c.b16 %v1735, %v1735
      %v1864 = vpack.c.b16 %v1736, %v1736
      %v1865 = vpack.c.b16 %v1737, %v1737
      %v1866 = vpack.c.b16 %v1738, %v1738
      %v1867 = vpack.c.b16 %v1739, %v1739
      %v1868 = vpack.c.b16 %v1740, %v1740
      %v1869 = vpack.c.b16 %v1741, %v1741
      %v1870 = vpack.c.b16 %v1742, %v1742
      %v1871 = vpack.c.b16 %v1743, %v1743
      %v1872 = vpack.c.b16 %v1744, %v1744
      %v1873 = vpack.c.b16 %v1745, %v1745
      %v1874 = vpack.c.b16 %v1746, %v1746
      %v1875 = vpack.c.b16 %v1747, %v1747
      %v1876 = vpack.c.b16 %v1748, %v1748
      %v1877 = vpack.c.b16 %v1749, %v1749
      %v1878 = vpack.c.b16 %v1750, %v1750
      %v1879 = vpack.c.b16 %v1751, %v1751
      %v1880 = vpack.c.b16 %v1752, %v1752
      %v1881 = vpack.c.b16 %v1753, %v1753
      %v1882 = vpack.c.b16 %v1754, %v1754
      %v1883 = vpack.c.b16 %v1755, %v1755
      %v1884 = vpack.c.b16 %v1756, %v1756
      %v1885 = vpack.c.b16 %v1757, %v1757
      %v1886 = vpack.c.b16 %v1758, %v1758
      %v1887 = vpack.c.b16 %v1759, %v1759
      %v1888 = vpack.c.b16 %v1760, %v1760
      %v1889 = vpack.c.b16 %v1761, %v1761
      %v1890 = vpack.c.b16 %v1762, %v1762
      %v1891 = vpack.c.b16 %v1763, %v1763
      %v1892 = vpack.c.b16 %v1764, %v1764
      %v1893 = vpack.c.b16 %v1765, %v1765
      %v1894 = vpack.c.b16 %v1766, %v1766
      %v1895 = vpack.c.b16 %v1767, %v1767
      %v1896 = vpack.c.b16 %v1768, %v1768
      %v1897 = vpack.c.b16 %v1769, %v1769
      %v1898 = vpack.c.b16 %v1770, %v1770
      %v1899 = vpack.c.b16 %v1771, %v1771
      %v1900 = vpack.c.b16 %v1772, %v1772
      %v1901 = vpack.c.b16 %v1773, %v1773
      %v1902 = vpack.c.b16 %v1774, %v1774
      %v1903 = vpack.c.b16 %v1775, %v1775
      %v1904 = vpack.c.b16 %v1776, %v1776
      %v1905 = vpack.c.b16 %v1777, %v1777
      %v1906 = vpack.c.b16 %v1778, %v1778
      %v1907 = vpack.c.b16 %v1779, %v1779
      %v1908 = vpack.c.b16 %v1780, %v1780
      %v1909 = vpack.c.b16 %v1781, %v1781
      %v1910 = vpack.c.b16 %v1782, %v1782
      %v1911 = vpack.c.b16 %v1783, %v1783
      %v1912 = vpack.c.b16 %v1784, %v1784
      %v1913 = vpack.c.b16 %v1785, %v1785
      %v1914 = vpack.c.b16 %v1786, %v1786
      %v1915 = vpack.c.b16 %v1787, %v1787
      %v1916 = vpack.c.b16 %v1788, %v1788
      %v1917 = vpack.c.b16 %v1789, %v1789
      %v1918 = vpack.c.b16 %v1790, %v1790
      %v1919 = vpack.c.b16 %v1791, %v1791
      %v1920 = vpack.c.b16 %v1792, %v1792
      %v1921 = vpack.c.b16 %v1793, %v1793
      %v1922 = vpack.c.b16 %v1794, %v1794
      %v1923 = vpack.c.b16 %v1795, %v1795
      %v1924 = vpack.c.b16 %v1796, %v1796
      %v1925 = vpack.c.b16 %v1797, %v1797
      %v1926 = vpack.c.b16 %v1798, %v1798
      %v1927 = vpack.c.b16 %v1799, %v1799
      %v1928 = vpack.c.b16 %v1800, %v1800
      %v1929 = vpack.c.b16 %v1801, %v1801
      %v1930 = vpack.c.b16 %v1802, %v1802
      %v1931 = vpack.c.b16 %v1803, %v1803
      %v1932 = vpack.c.b16 %v1804, %v1804
      %v1933 = vpack.c.b16 %v1805, %v1805
      %v1934 = vpack.c.b16 %v1806, %v1806
      %v1935 = vpack.c.b16 %v1807, %v1807
      %v1936 = vpack.c.b16 %v1808, %v1808
      %v1937 = vpack.c.b16 %v1809, %v1809
      %v1938 = vpack.c.b16 %v1810, %v1810
      %v1939 = vpack.c.b16 %v1811, %v1811
      %2068 = vst [vmem:[%s206] sm:$0xf] %v1812
      %2069 = vst [vmem:[%s206 + $0x4] sm:$0xf] %v1813
      %2070 = vst [vmem:[%s206 + $0x8] sm:$0xf] %v1814
      %2071 = vst [vmem:[%s206 + $0xc] sm:$0xf] %v1815
      %2072 = vst [vmem:[%s206 + $0x10] sm:$0xf] %v1816
      %2073 = vst [vmem:[%s206 + $0x14] sm:$0xf] %v1817
      %2074 = vst [vmem:[%s206 + $0x18] sm:$0xf] %v1818
      %2075 = vst [vmem:[%s206 + $0x1c] sm:$0xf] %v1819
      %2076 = vst [vmem:[%s206 + $0x20] sm:$0xf] %v1820
      %2077 = vst [vmem:[%s206 + $0x24] sm:$0xf] %v1821
      %2078 = vst [vmem:[%s206 + $0x28] sm:$0xf] %v1822
      %2079 = vst [vmem:[%s206 + $0x2c] sm:$0xf] %v1823
      %2080 = vst [vmem:[%s206 + $0x30] sm:$0xf] %v1824
      %2081 = vst [vmem:[%s206 + $0x34] sm:$0xf] %v1825
      %2082 = vst [vmem:[%s206 + $0x38] sm:$0xf] %v1826
      %2083 = vst [vmem:[%s206 + $0x3c] sm:$0xf] %v1827
      %2084 = vst [vmem:[%s206 + $0x40] sm:$0xf] %v1828
      %2085 = vst [vmem:[%s206 + $0x44] sm:$0xf] %v1829
      %2086 = vst [vmem:[%s206 + $0x48] sm:$0xf] %v1830
      %2087 = vst [vmem:[%s206 + $0x4c] sm:$0xf] %v1831
      %2088 = vst [vmem:[%s206 + $0x50] sm:$0xf] %v1832
      %2089 = vst [vmem:[%s206 + $0x54] sm:$0xf] %v1833
      %2090 = vst [vmem:[%s206 + $0x58] sm:$0xf] %v1834
      %2091 = vst [vmem:[%s206 + $0x5c] sm:$0xf] %v1835
      %2092 = vst [vmem:[%s206 + $0x60] sm:$0xf] %v1836
      %2093 = vst [vmem:[%s206 + $0x64] sm:$0xf] %v1837
      %2094 = vst [vmem:[%s206 + $0x68] sm:$0xf] %v1838
      %2095 = vst [vmem:[%s206 + $0x6c] sm:$0xf] %v1839
      %2096 = vst [vmem:[%s206 + $0x70] sm:$0xf] %v1840
      %2097 = vst [vmem:[%s206 + $0x74] sm:$0xf] %v1841
      %2098 = vst [vmem:[%s206 + $0x78] sm:$0xf] %v1842
      %2099 = vst [vmem:[%s206 + $0x7c] sm:$0xf] %v1843
      %2100 = vst [vmem:[%s206 + $0x80] sm:$0xf] %v1844
      %2101 = vst [vmem:[%s206 + $0x84] sm:$0xf] %v1845
      %2102 = vst [vmem:[%s206 + $0x88] sm:$0xf] %v1846
      %2103 = vst [vmem:[%s206 + $0x8c] sm:$0xf] %v1847
      %2104 = vst [vmem:[%s206 + $0x90] sm:$0xf] %v1848
      %2105 = vst [vmem:[%s206 + $0x94] sm:$0xf] %v1849
      %2106 = vst [vmem:[%s206 + $0x98] sm:$0xf] %v1850
      %2107 = vst [vmem:[%s206 + $0x9c] sm:$0xf] %v1851
      %2108 = vst [vmem:[%s206 + $0xa0] sm:$0xf] %v1852
      %2109 = vst [vmem:[%s206 + $0xa4] sm:$0xf] %v1853
      %2110 = vst [vmem:[%s206 + $0xa8] sm:$0xf] %v1854
      %2111 = vst [vmem:[%s206 + $0xac] sm:$0xf] %v1855
      %2112 = vst [vmem:[%s206 + $0xb0] sm:$0xf] %v1856
      %2113 = vst [vmem:[%s206 + $0xb4] sm:$0xf] %v1857
      %2114 = vst [vmem:[%s206 + $0xb8] sm:$0xf] %v1858
      %2115 = vst [vmem:[%s206 + $0xbc] sm:$0xf] %v1859
      %2116 = vst [vmem:[%s206 + $0xc0] sm:$0xf] %v1860
      %2117 = vst [vmem:[%s206 + $0xc4] sm:$0xf] %v1861
      %2118 = vst [vmem:[%s206 + $0xc8] sm:$0xf] %v1862
      %2119 = vst [vmem:[%s206 + $0xcc] sm:$0xf] %v1863
      %2120 = vst [vmem:[%s206 + $0xd0] sm:$0xf] %v1864
      %2121 = vst [vmem:[%s206 + $0xd4] sm:$0xf] %v1865
      %2122 = vst [vmem:[%s206 + $0xd8] sm:$0xf] %v1866
      %2123 = vst [vmem:[%s206 + $0xdc] sm:$0xf] %v1867
      %2124 = vst [vmem:[%s206 + $0xe0] sm:$0xf] %v1868
      %2125 = vst [vmem:[%s206 + $0xe4] sm:$0xf] %v1869
      %2126 = vst [vmem:[%s206 + $0xe8] sm:$0xf] %v1870
      %2127 = vst [vmem:[%s206 + $0xec] sm:$0xf] %v1871
      %2128 = vst [vmem:[%s206 + $0xf0] sm:$0xf] %v1872
      %2129 = vst [vmem:[%s206 + $0xf4] sm:$0xf] %v1873
      %2130 = vst [vmem:[%s206 + $0xf8] sm:$0xf] %v1874
      %2131 = vst [vmem:[%s206 + $0xfc] sm:$0xf] %v1875
      %2132 = vst [vmem:[%s206 + $0x100] sm:$0xf] %v1876
      %2133 = vst [vmem:[%s206 + $0x104] sm:$0xf] %v1877
      %2134 = vst [vmem:[%s206 + $0x108] sm:$0xf] %v1878
      %2135 = vst [vmem:[%s206 + $0x10c] sm:$0xf] %v1879
      %2136 = vst [vmem:[%s206 + $0x110] sm:$0xf] %v1880
      %2137 = vst [vmem:[%s206 + $0x114] sm:$0xf] %v1881
      %2138 = vst [vmem:[%s206 + $0x118] sm:$0xf] %v1882
      %2139 = vst [vmem:[%s206 + $0x11c] sm:$0xf] %v1883
      %2140 = vst [vmem:[%s206 + $0x120] sm:$0xf] %v1884
      %2141 = vst [vmem:[%s206 + $0x124] sm:$0xf] %v1885
      %2142 = vst [vmem:[%s206 + $0x128] sm:$0xf] %v1886
      %2143 = vst [vmem:[%s206 + $0x12c] sm:$0xf] %v1887
      %2144 = vst [vmem:[%s206 + $0x130] sm:$0xf] %v1888
      %2145 = vst [vmem:[%s206 + $0x134] sm:$0xf] %v1889
      %2146 = vst [vmem:[%s206 + $0x138] sm:$0xf] %v1890
      %2147 = vst [vmem:[%s206 + $0x13c] sm:$0xf] %v1891
      %2148 = vst [vmem:[%s206 + $0x140] sm:$0xf] %v1892
      %2149 = vst [vmem:[%s206 + $0x144] sm:$0xf] %v1893
      %2150 = vst [vmem:[%s206 + $0x148] sm:$0xf] %v1894
      %2151 = vst [vmem:[%s206 + $0x14c] sm:$0xf] %v1895
      %2152 = vst [vmem:[%s206 + $0x150] sm:$0xf] %v1896
      %2153 = vst [vmem:[%s206 + $0x154] sm:$0xf] %v1897
      %2154 = vst [vmem:[%s206 + $0x158] sm:$0xf] %v1898
      %2155 = vst [vmem:[%s206 + $0x15c] sm:$0xf] %v1899
      %2156 = vst [vmem:[%s206 + $0x160] sm:$0xf] %v1900
      %2157 = vst [vmem:[%s206 + $0x164] sm:$0xf] %v1901
      %2158 = vst [vmem:[%s206 + $0x168] sm:$0xf] %v1902
      %2159 = vst [vmem:[%s206 + $0x16c] sm:$0xf] %v1903
      %2160 = vst [vmem:[%s206 + $0x170] sm:$0xf] %v1904
      %2161 = vst [vmem:[%s206 + $0x174] sm:$0xf] %v1905
      %2162 = vst [vmem:[%s206 + $0x178] sm:$0xf] %v1906
      %2163 = vst [vmem:[%s206 + $0x17c] sm:$0xf] %v1907
      %2164 = vst [vmem:[%s206 + $0x180] sm:$0xf] %v1908
      %2165 = vst [vmem:[%s206 + $0x184] sm:$0xf] %v1909
      %2166 = vst [vmem:[%s206 + $0x188] sm:$0xf] %v1910
      %2167 = vst [vmem:[%s206 + $0x18c] sm:$0xf] %v1911
      %2168 = vst [vmem:[%s206 + $0x190] sm:$0xf] %v1912
      %2169 = vst [vmem:[%s206 + $0x194] sm:$0xf] %v1913
      %2170 = vst [vmem:[%s206 + $0x198] sm:$0xf] %v1914
      %2171 = vst [vmem:[%s206 + $0x19c] sm:$0xf] %v1915
      %2172 = vst [vmem:[%s206 + $0x1a0] sm:$0xf] %v1916
      %2173 = vst [vmem:[%s206 + $0x1a4] sm:$0xf] %v1917
      %2174 = vst [vmem:[%s206 + $0x1a8] sm:$0xf] %v1918
      %2175 = vst [vmem:[%s206 + $0x1ac] sm:$0xf] %v1919
      %2176 = vst [vmem:[%s206 + $0x1b0] sm:$0xf] %v1920
      %2177 = vst [vmem:[%s206 + $0x1b4] sm:$0xf] %v1921
      %2178 = vst [vmem:[%s206 + $0x1b8] sm:$0xf] %v1922
      %2179 = vst [vmem:[%s206 + $0x1bc] sm:$0xf] %v1923
      %2180 = vst [vmem:[%s206 + $0x1c0] sm:$0xf] %v1924
      %2181 = vst [vmem:[%s206 + $0x1c4] sm:$0xf] %v1925
      %2182 = vst [vmem:[%s206 + $0x1c8] sm:$0xf] %v1926
      %2183 = vst [vmem:[%s206 + $0x1cc] sm:$0xf] %v1927
      %2184 = vst [vmem:[%s206 + $0x1d0] sm:$0xf] %v1928
      %2185 = vst [vmem:[%s206 + $0x1d4] sm:$0xf] %v1929
      %2186 = vst [vmem:[%s206 + $0x1d8] sm:$0xf] %v1930
      %2187 = vst [vmem:[%s206 + $0x1dc] sm:$0xf] %v1931
      %2188 = vst [vmem:[%s206 + $0x1e0] sm:$0xf] %v1932
      %2189 = vst [vmem:[%s206 + $0x1e4] sm:$0xf] %v1933
      %2190 = vst [vmem:[%s206 + $0x1e8] sm:$0xf] %v1934
      %2191 = vst [vmem:[%s206 + $0x1ec] sm:$0xf] %v1935
      %2192 = vst [vmem:[%s206 + $0x1f0] sm:$0xf] %v1936
      %2193 = vst [vmem:[%s206 + $0x1f4] sm:$0xf] %v1937
      %2194 = vst [vmem:[%s206 + $0x1f8] sm:$0xf] %v1938
      %2195 = vst [vmem:[%s206 + $0x1fc] sm:$0xf] %v1939
      %v2196 = vlaneseq
      %v2197 = vshrl.u32 %v2196, 7
      %v2198 = vadd.s32 %v2197, 8
      %v2199 = vadd.s32 %v2197, 16
      %v2200 = vadd.s32 %v2197, 24
      %v2201 = vadd.s32 %v2197, 32
      %v2202 = vadd.s32 %v2197, 40
      %v2203 = vadd.s32 %v2197, 48
      %v2204 = vadd.s32 %v2197, 56
      %v2205 = vadd.s32 %v2197, 64
      %v2206 = vadd.s32 %v2197, 72
      %v2207 = vadd.s32 %v2197, 80
      %v2208 = vadd.s32 %v2197, 88
      %v2209 = vadd.s32 %v2197, 96
      %v2210 = vadd.s32 %v2197, 104
      %v2211 = vadd.s32 %v2197, 112
      %v2212 = vadd.s32 %v2197, 120
      %v2213 = vadd.s32 %v2197, 128
      %v2214 = vadd.s32 %v2197, 136
      %v2215 = vadd.s32 %v2197, 144
      %v2216 = vadd.s32 %v2197, 152
      %v2217 = vadd.s32 %v2197, 160
      %v2218 = vadd.s32 %v2197, 168
      %v2219 = vadd.s32 %v2197, 176
      %v2220 = vadd.s32 %v2197, 184
      %v2221 = vadd.s32 %v2197, 192
      %v2222 = vadd.s32 %v2197, 200
      %v2223 = vadd.s32 %v2197, 208
      %v2224 = vadd.s32 %v2197, 216
      %v2225 = vadd.s32 %v2197, 224
      %v2226 = vadd.s32 %v2197, 232
      %v2227 = vadd.s32 %v2197, 240
      %v2228 = vadd.s32 %v2197, 248
      %v2229 = vadd.s32 %v2197, 256
      %v2230 = vadd.s32 %v2197, 264
      %v2231 = vadd.s32 %v2197, 272
      %v2232 = vadd.s32 %v2197, 280
      %v2233 = vadd.s32 %v2197, 288
      %v2234 = vadd.s32 %v2197, 296
      %v2235 = vadd.s32 %v2197, 304
      %v2236 = vadd.s32 %v2197, 312
      %v2237 = vadd.s32 %v2197, 320
      %v2238 = vadd.s32 %v2197, 328
      %v2239 = vadd.s32 %v2197, 336
      %v2240 = vadd.s32 %v2197, 344
      %v2241 = vadd.s32 %v2197, 352
      %v2242 = vadd.s32 %v2197, 360
      %v2243 = vadd.s32 %v2197, 368
      %v2244 = vadd.s32 %v2197, 376
      %v2245 = vadd.s32 %v2197, 384
      %v2246 = vadd.s32 %v2197, 392
      %v2247 = vadd.s32 %v2197, 400
      %v2248 = vadd.s32 %v2197, 408
      %v2249 = vadd.s32 %v2197, 416
      %v2250 = vadd.s32 %v2197, 424
      %v2251 = vadd.s32 %v2197, 432
      %v2252 = vadd.s32 %v2197, 440
      %v2253 = vadd.s32 %v2197, 448
      %v2254 = vadd.s32 %v2197, 456
      %v2255 = vadd.s32 %v2197, 464
      %v2256 = vadd.s32 %v2197, 472
      %v2257 = vadd.s32 %v2197, 480
      %v2258 = vadd.s32 %v2197, 488
      %v2259 = vadd.s32 %v2197, 496
      %v2260 = vadd.s32 %v2197, 504
      %v2261 = vadd.s32 %v2197, 512
      %v2262 = vadd.s32 %v2197, 520
      %v2263 = vadd.s32 %v2197, 528
      %v2264 = vadd.s32 %v2197, 536
      %v2265 = vadd.s32 %v2197, 544
      %v2266 = vadd.s32 %v2197, 552
      %v2267 = vadd.s32 %v2197, 560
      %v2268 = vadd.s32 %v2197, 568
      %v2269 = vadd.s32 %v2197, 576
      %v2270 = vadd.s32 %v2197, 584
      %v2271 = vadd.s32 %v2197, 592
      %v2272 = vadd.s32 %v2197, 600
      %v2273 = vadd.s32 %v2197, 608
      %v2274 = vadd.s32 %v2197, 616
      %v2275 = vadd.s32 %v2197, 624
      %v2276 = vadd.s32 %v2197, 632
      %v2277 = vadd.s32 %v2197, 640
      %v2278 = vadd.s32 %v2197, 648
      %v2279 = vadd.s32 %v2197, 656
      %v2280 = vadd.s32 %v2197, 664
      %v2281 = vadd.s32 %v2197, 672
      %v2282 = vadd.s32 %v2197, 680
      %v2283 = vadd.s32 %v2197, 688
      %v2284 = vadd.s32 %v2197, 696
      %v2285 = vadd.s32 %v2197, 704
      %v2286 = vadd.s32 %v2197, 712
      %v2287 = vadd.s32 %v2197, 720
      %v2288 = vadd.s32 %v2197, 728
      %v2289 = vadd.s32 %v2197, 736
      %v2290 = vadd.s32 %v2197, 744
      %v2291 = vadd.s32 %v2197, 752
      %v2292 = vadd.s32 %v2197, 760
      %v2293 = vadd.s32 %v2197, 768
      %v2294 = vadd.s32 %v2197, 776
      %v2295 = vadd.s32 %v2197, 784
      %v2296 = vadd.s32 %v2197, 792
      %v2297 = vadd.s32 %v2197, 800
      %v2298 = vadd.s32 %v2197, 808
      %v2299 = vadd.s32 %v2197, 816
      %v2300 = vadd.s32 %v2197, 824
      %v2301 = vadd.s32 %v2197, 832
      %v2302 = vadd.s32 %v2197, 840
      %v2303 = vadd.s32 %v2197, 848
      %v2304 = vadd.s32 %v2197, 856
      %v2305 = vadd.s32 %v2197, 864
      %v2306 = vadd.s32 %v2197, 872
      %v2307 = vadd.s32 %v2197, 880
      %v2308 = vadd.s32 %v2197, 888
      %v2309 = vadd.s32 %v2197, 896
      %v2310 = vadd.s32 %v2197, 904
      %v2311 = vadd.s32 %v2197, 912
      %v2312 = vadd.s32 %v2197, 920
      %v2313 = vadd.s32 %v2197, 928
      %v2314 = vadd.s32 %v2197, 936
      %v2315 = vadd.s32 %v2197, 944
      %v2316 = vadd.s32 %v2197, 952
      %v2317 = vadd.s32 %v2197, 960
      %v2318 = vadd.s32 %v2197, 968
      %v2319 = vadd.s32 %v2197, 976
      %v2320 = vadd.s32 %v2197, 984
      %v2321 = vadd.s32 %v2197, 992
      %v2322 = vadd.s32 %v2197, 1000
      %v2323 = vadd.s32 %v2197, 1008
      %v2324 = vadd.s32 %v2197, 1016
      %s2325 = smul.u32 %s16, 1024
      %v2326 = vstv %s2325
      %v2327 = vadd.s32 %v2197, %v2326
      %v2328 = vadd.s32 %v2198, %v2326
      %v2329 = vadd.s32 %v2199, %v2326
      %v2330 = vadd.s32 %v2200, %v2326
      %v2331 = vadd.s32 %v2201, %v2326
      %v2332 = vadd.s32 %v2202, %v2326
      %v2333 = vadd.s32 %v2203, %v2326
      %v2334 = vadd.s32 %v2204, %v2326
      %v2335 = vadd.s32 %v2205, %v2326
      %v2336 = vadd.s32 %v2206, %v2326
      %v2337 = vadd.s32 %v2207, %v2326
      %v2338 = vadd.s32 %v2208, %v2326
      %v2339 = vadd.s32 %v2209, %v2326
      %v2340 = vadd.s32 %v2210, %v2326
      %v2341 = vadd.s32 %v2211, %v2326
      %v2342 = vadd.s32 %v2212, %v2326
      %v2343 = vadd.s32 %v2213, %v2326
      %v2344 = vadd.s32 %v2214, %v2326
      %v2345 = vadd.s32 %v2215, %v2326
      %v2346 = vadd.s32 %v2216, %v2326
      %v2347 = vadd.s32 %v2217, %v2326
      %v2348 = vadd.s32 %v2218, %v2326
      %v2349 = vadd.s32 %v2219, %v2326
      %v2350 = vadd.s32 %v2220, %v2326
      %v2351 = vadd.s32 %v2221, %v2326
      %v2352 = vadd.s32 %v2222, %v2326
      %v2353 = vadd.s32 %v2223, %v2326
      %v2354 = vadd.s32 %v2224, %v2326
      %v2355 = vadd.s32 %v2225, %v2326
      %v2356 = vadd.s32 %v2226, %v2326
      %v2357 = vadd.s32 %v2227, %v2326
      %v2358 = vadd.s32 %v2228, %v2326
      %v2359 = vadd.s32 %v2229, %v2326
      %v2360 = vadd.s32 %v2230, %v2326
      %v2361 = vadd.s32 %v2231, %v2326
      %v2362 = vadd.s32 %v2232, %v2326
      %v2363 = vadd.s32 %v2233, %v2326
      %v2364 = vadd.s32 %v2234, %v2326
      %v2365 = vadd.s32 %v2235, %v2326
      %v2366 = vadd.s32 %v2236, %v2326
      %v2367 = vadd.s32 %v2237, %v2326
      %v2368 = vadd.s32 %v2238, %v2326
      %v2369 = vadd.s32 %v2239, %v2326
      %v2370 = vadd.s32 %v2240, %v2326
      %v2371 = vadd.s32 %v2241, %v2326
      %v2372 = vadd.s32 %v2242, %v2326
      %v2373 = vadd.s32 %v2243, %v2326
      %v2374 = vadd.s32 %v2244, %v2326
      %v2375 = vadd.s32 %v2245, %v2326
      %v2376 = vadd.s32 %v2246, %v2326
      %v2377 = vadd.s32 %v2247, %v2326
      %v2378 = vadd.s32 %v2248, %v2326
      %v2379 = vadd.s32 %v2249, %v2326
      %v2380 = vadd.s32 %v2250, %v2326
      %v2381 = vadd.s32 %v2251, %v2326
      %v2382 = vadd.s32 %v2252, %v2326
      %v2383 = vadd.s32 %v2253, %v2326
      %v2384 = vadd.s32 %v2254, %v2326
      %v2385 = vadd.s32 %v2255, %v2326
      %v2386 = vadd.s32 %v2256, %v2326
      %v2387 = vadd.s32 %v2257, %v2326
      %v2388 = vadd.s32 %v2258, %v2326
      %v2389 = vadd.s32 %v2259, %v2326
      %v2390 = vadd.s32 %v2260, %v2326
      %v2391 = vadd.s32 %v2261, %v2326
      %v2392 = vadd.s32 %v2262, %v2326
      %v2393 = vadd.s32 %v2263, %v2326
      %v2394 = vadd.s32 %v2264, %v2326
      %v2395 = vadd.s32 %v2265, %v2326
      %v2396 = vadd.s32 %v2266, %v2326
      %v2397 = vadd.s32 %v2267, %v2326
      %v2398 = vadd.s32 %v2268, %v2326
      %v2399 = vadd.s32 %v2269, %v2326
      %v2400 = vadd.s32 %v2270, %v2326
      %v2401 = vadd.s32 %v2271, %v2326
      %v2402 = vadd.s32 %v2272, %v2326
      %v2403 = vadd.s32 %v2273, %v2326
      %v2404 = vadd.s32 %v2274, %v2326
      %v2405 = vadd.s32 %v2275, %v2326
      %v2406 = vadd.s32 %v2276, %v2326
      %v2407 = vadd.s32 %v2277, %v2326
      %v2408 = vadd.s32 %v2278, %v2326
      %v2409 = vadd.s32 %v2279, %v2326
      %v2410 = vadd.s32 %v2280, %v2326
      %v2411 = vadd.s32 %v2281, %v2326
      %v2412 = vadd.s32 %v2282, %v2326
      %v2413 = vadd.s32 %v2283, %v2326
      %v2414 = vadd.s32 %v2284, %v2326
      %v2415 = vadd.s32 %v2285, %v2326
      %v2416 = vadd.s32 %v2286, %v2326
      %v2417 = vadd.s32 %v2287, %v2326
      %v2418 = vadd.s32 %v2288, %v2326
      %v2419 = vadd.s32 %v2289, %v2326
      %v2420 = vadd.s32 %v2290, %v2326
      %v2421 = vadd.s32 %v2291, %v2326
      %v2422 = vadd.s32 %v2292, %v2326
      %v2423 = vadd.s32 %v2293, %v2326
      %v2424 = vadd.s32 %v2294, %v2326
      %v2425 = vadd.s32 %v2295, %v2326
      %v2426 = vadd.s32 %v2296, %v2326
      %v2427 = vadd.s32 %v2297, %v2326
      %v2428 = vadd.s32 %v2298, %v2326
      %v2429 = vadd.s32 %v2299, %v2326
      %v2430 = vadd.s32 %v2300, %v2326
      %v2431 = vadd.s32 %v2301, %v2326
      %v2432 = vadd.s32 %v2302, %v2326
      %v2433 = vadd.s32 %v2303, %v2326
      %v2434 = vadd.s32 %v2304, %v2326
      %v2435 = vadd.s32 %v2305, %v2326
      %v2436 = vadd.s32 %v2306, %v2326
      %v2437 = vadd.s32 %v2307, %v2326
      %v2438 = vadd.s32 %v2308, %v2326
      %v2439 = vadd.s32 %v2309, %v2326
      %v2440 = vadd.s32 %v2310, %v2326
      %v2441 = vadd.s32 %v2311, %v2326
      %v2442 = vadd.s32 %v2312, %v2326
      %v2443 = vadd.s32 %v2313, %v2326
      %v2444 = vadd.s32 %v2314, %v2326
      %v2445 = vadd.s32 %v2315, %v2326
      %v2446 = vadd.s32 %v2316, %v2326
      %v2447 = vadd.s32 %v2317, %v2326
      %v2448 = vadd.s32 %v2318, %v2326
      %v2449 = vadd.s32 %v2319, %v2326
      %v2450 = vadd.s32 %v2320, %v2326
      %v2451 = vadd.s32 %v2321, %v2326
      %v2452 = vadd.s32 %v2322, %v2326
      %v2453 = vadd.s32 %v2323, %v2326
      %v2454 = vadd.s32 %v2324, %v2326
      %vm2455 = vcmp.lt.s32.totalorder %v2327, 1800
      %vm2456 = vcmp.lt.s32.totalorder %v2328, 1800
      %vm2457 = vcmp.lt.s32.totalorder %v2329, 1800
      %vm2458 = vcmp.lt.s32.totalorder %v2330, 1800
      %vm2459 = vcmp.lt.s32.totalorder %v2331, 1800
      %vm2460 = vcmp.lt.s32.totalorder %v2332, 1800
      %vm2461 = vcmp.lt.s32.totalorder %v2333, 1800
      %vm2462 = vcmp.lt.s32.totalorder %v2334, 1800
      %vm2463 = vcmp.lt.s32.totalorder %v2335, 1800
      %vm2464 = vcmp.lt.s32.totalorder %v2336, 1800
      %vm2465 = vcmp.lt.s32.totalorder %v2337, 1800
      %vm2466 = vcmp.lt.s32.totalorder %v2338, 1800
      %vm2467 = vcmp.lt.s32.totalorder %v2339, 1800
      %vm2468 = vcmp.lt.s32.totalorder %v2340, 1800
      %vm2469 = vcmp.lt.s32.totalorder %v2341, 1800
      %vm2470 = vcmp.lt.s32.totalorder %v2342, 1800
      %vm2471 = vcmp.lt.s32.totalorder %v2343, 1800
      %vm2472 = vcmp.lt.s32.totalorder %v2344, 1800
      %vm2473 = vcmp.lt.s32.totalorder %v2345, 1800
      %vm2474 = vcmp.lt.s32.totalorder %v2346, 1800
      %vm2475 = vcmp.lt.s32.totalorder %v2347, 1800
      %vm2476 = vcmp.lt.s32.totalorder %v2348, 1800
      %vm2477 = vcmp.lt.s32.totalorder %v2349, 1800
      %vm2478 = vcmp.lt.s32.totalorder %v2350, 1800
      %vm2479 = vcmp.lt.s32.totalorder %v2351, 1800
      %vm2480 = vcmp.lt.s32.totalorder %v2352, 1800
      %vm2481 = vcmp.lt.s32.totalorder %v2353, 1800
      %vm2482 = vcmp.lt.s32.totalorder %v2354, 1800
      %vm2483 = vcmp.lt.s32.totalorder %v2355, 1800
      %vm2484 = vcmp.lt.s32.totalorder %v2356, 1800
      %vm2485 = vcmp.lt.s32.totalorder %v2357, 1800
      %vm2486 = vcmp.lt.s32.totalorder %v2358, 1800
      %vm2487 = vcmp.lt.s32.totalorder %v2359, 1800
      %vm2488 = vcmp.lt.s32.totalorder %v2360, 1800
      %vm2489 = vcmp.lt.s32.totalorder %v2361, 1800
      %vm2490 = vcmp.lt.s32.totalorder %v2362, 1800
      %vm2491 = vcmp.lt.s32.totalorder %v2363, 1800
      %vm2492 = vcmp.lt.s32.totalorder %v2364, 1800
      %vm2493 = vcmp.lt.s32.totalorder %v2365, 1800
      %vm2494 = vcmp.lt.s32.totalorder %v2366, 1800
      %vm2495 = vcmp.lt.s32.totalorder %v2367, 1800
      %vm2496 = vcmp.lt.s32.totalorder %v2368, 1800
      %vm2497 = vcmp.lt.s32.totalorder %v2369, 1800
      %vm2498 = vcmp.lt.s32.totalorder %v2370, 1800
      %vm2499 = vcmp.lt.s32.totalorder %v2371, 1800
      %vm2500 = vcmp.lt.s32.totalorder %v2372, 1800
      %vm2501 = vcmp.lt.s32.totalorder %v2373, 1800
      %vm2502 = vcmp.lt.s32.totalorder %v2374, 1800
      %vm2503 = vcmp.lt.s32.totalorder %v2375, 1800
      %vm2504 = vcmp.lt.s32.totalorder %v2376, 1800
      %vm2505 = vcmp.lt.s32.totalorder %v2377, 1800
      %vm2506 = vcmp.lt.s32.totalorder %v2378, 1800
      %vm2507 = vcmp.lt.s32.totalorder %v2379, 1800
      %vm2508 = vcmp.lt.s32.totalorder %v2380, 1800
      %vm2509 = vcmp.lt.s32.totalorder %v2381, 1800
      %vm2510 = vcmp.lt.s32.totalorder %v2382, 1800
      %vm2511 = vcmp.lt.s32.totalorder %v2383, 1800
      %vm2512 = vcmp.lt.s32.totalorder %v2384, 1800
      %vm2513 = vcmp.lt.s32.totalorder %v2385, 1800
      %vm2514 = vcmp.lt.s32.totalorder %v2386, 1800
      %vm2515 = vcmp.lt.s32.totalorder %v2387, 1800
      %vm2516 = vcmp.lt.s32.totalorder %v2388, 1800
      %vm2517 = vcmp.lt.s32.totalorder %v2389, 1800
      %vm2518 = vcmp.lt.s32.totalorder %v2390, 1800
      %vm2519 = vcmp.lt.s32.totalorder %v2391, 1800
      %vm2520 = vcmp.lt.s32.totalorder %v2392, 1800
      %vm2521 = vcmp.lt.s32.totalorder %v2393, 1800
      %vm2522 = vcmp.lt.s32.totalorder %v2394, 1800
      %vm2523 = vcmp.lt.s32.totalorder %v2395, 1800
      %vm2524 = vcmp.lt.s32.totalorder %v2396, 1800
      %vm2525 = vcmp.lt.s32.totalorder %v2397, 1800
      %vm2526 = vcmp.lt.s32.totalorder %v2398, 1800
      %vm2527 = vcmp.lt.s32.totalorder %v2399, 1800
      %vm2528 = vcmp.lt.s32.totalorder %v2400, 1800
      %vm2529 = vcmp.lt.s32.totalorder %v2401, 1800
      %vm2530 = vcmp.lt.s32.totalorder %v2402, 1800
      %vm2531 = vcmp.lt.s32.totalorder %v2403, 1800
      %vm2532 = vcmp.lt.s32.totalorder %v2404, 1800
      %vm2533 = vcmp.lt.s32.totalorder %v2405, 1800
      %vm2534 = vcmp.lt.s32.totalorder %v2406, 1800
      %vm2535 = vcmp.lt.s32.totalorder %v2407, 1800
      %vm2536 = vcmp.lt.s32.totalorder %v2408, 1800
      %vm2537 = vcmp.lt.s32.totalorder %v2409, 1800
      %vm2538 = vcmp.lt.s32.totalorder %v2410, 1800
      %vm2539 = vcmp.lt.s32.totalorder %v2411, 1800
      %vm2540 = vcmp.lt.s32.totalorder %v2412, 1800
      %vm2541 = vcmp.lt.s32.totalorder %v2413, 1800
      %vm2542 = vcmp.lt.s32.totalorder %v2414, 1800
      %vm2543 = vcmp.lt.s32.totalorder %v2415, 1800
      %vm2544 = vcmp.lt.s32.totalorder %v2416, 1800
      %vm2545 = vcmp.lt.s32.totalorder %v2417, 1800
      %vm2546 = vcmp.lt.s32.totalorder %v2418, 1800
      %vm2547 = vcmp.lt.s32.totalorder %v2419, 1800
      %vm2548 = vcmp.lt.s32.totalorder %v2420, 1800
      %vm2549 = vcmp.lt.s32.totalorder %v2421, 1800
      %vm2550 = vcmp.lt.s32.totalorder %v2422, 1800
      %vm2551 = vcmp.lt.s32.totalorder %v2423, 1800
      %vm2552 = vcmp.lt.s32.totalorder %v2424, 1800
      %vm2553 = vcmp.lt.s32.totalorder %v2425, 1800
      %vm2554 = vcmp.lt.s32.totalorder %v2426, 1800
      %vm2555 = vcmp.lt.s32.totalorder %v2427, 1800
      %vm2556 = vcmp.lt.s32.totalorder %v2428, 1800
      %vm2557 = vcmp.lt.s32.totalorder %v2429, 1800
      %vm2558 = vcmp.lt.s32.totalorder %v2430, 1800
      %vm2559 = vcmp.lt.s32.totalorder %v2431, 1800
      %vm2560 = vcmp.lt.s32.totalorder %v2432, 1800
      %vm2561 = vcmp.lt.s32.totalorder %v2433, 1800
      %vm2562 = vcmp.lt.s32.totalorder %v2434, 1800
      %vm2563 = vcmp.lt.s32.totalorder %v2435, 1800
      %vm2564 = vcmp.lt.s32.totalorder %v2436, 1800
      %vm2565 = vcmp.lt.s32.totalorder %v2437, 1800
      %vm2566 = vcmp.lt.s32.totalorder %v2438, 1800
      %vm2567 = vcmp.lt.s32.totalorder %v2439, 1800
      %vm2568 = vcmp.lt.s32.totalorder %v2440, 1800
      %vm2569 = vcmp.lt.s32.totalorder %v2441, 1800
      %vm2570 = vcmp.lt.s32.totalorder %v2442, 1800
      %vm2571 = vcmp.lt.s32.totalorder %v2443, 1800
      %vm2572 = vcmp.lt.s32.totalorder %v2444, 1800
      %vm2573 = vcmp.lt.s32.totalorder %v2445, 1800
      %vm2574 = vcmp.lt.s32.totalorder %v2446, 1800
      %vm2575 = vcmp.lt.s32.totalorder %v2447, 1800
      %vm2576 = vcmp.lt.s32.totalorder %v2448, 1800
      %vm2577 = vcmp.lt.s32.totalorder %v2449, 1800
      %vm2578 = vcmp.lt.s32.totalorder %v2450, 1800
      %vm2579 = vcmp.lt.s32.totalorder %v2451, 1800
      %vm2580 = vcmp.lt.s32.totalorder %v2452, 1800
      %vm2581 = vcmp.lt.s32.totalorder %v2453, 1800
      %vm2582 = vcmp.lt.s32.totalorder %v2454, 1800
      %v2583 = vsel %vm2455, 1, 0
      %v2584 = vsel %vm2456, 1, 0
      %v2585 = vsel %vm2457, 1, 0
      %v2586 = vsel %vm2458, 1, 0
      %v2587 = vsel %vm2459, 1, 0
      %v2588 = vsel %vm2460, 1, 0
      %v2589 = vsel %vm2461, 1, 0
      %v2590 = vsel %vm2462, 1, 0
      %v2591 = vsel %vm2463, 1, 0
      %v2592 = vsel %vm2464, 1, 0
      %v2593 = vsel %vm2465, 1, 0
      %v2594 = vsel %vm2466, 1, 0
      %v2595 = vsel %vm2467, 1, 0
      %v2596 = vsel %vm2468, 1, 0
      %v2597 = vsel %vm2469, 1, 0
      %v2598 = vsel %vm2470, 1, 0
      %v2599 = vsel %vm2471, 1, 0
      %v2600 = vsel %vm2472, 1, 0
      %v2601 = vsel %vm2473, 1, 0
      %v2602 = vsel %vm2474, 1, 0
      %v2603 = vsel %vm2475, 1, 0
      %v2604 = vsel %vm2476, 1, 0
      %v2605 = vsel %vm2477, 1, 0
      %v2606 = vsel %vm2478, 1, 0
      %v2607 = vsel %vm2479, 1, 0
      %v2608 = vsel %vm2480, 1, 0
      %v2609 = vsel %vm2481, 1, 0
      %v2610 = vsel %vm2482, 1, 0
      %v2611 = vsel %vm2483, 1, 0
      %v2612 = vsel %vm2484, 1, 0
      %v2613 = vsel %vm2485, 1, 0
      %v2614 = vsel %vm2486, 1, 0
      %v2615 = vsel %vm2487, 1, 0
      %v2616 = vsel %vm2488, 1, 0
      %v2617 = vsel %vm2489, 1, 0
      %v2618 = vsel %vm2490, 1, 0
      %v2619 = vsel %vm2491, 1, 0
      %v2620 = vsel %vm2492, 1, 0
      %v2621 = vsel %vm2493, 1, 0
      %v2622 = vsel %vm2494, 1, 0
      %v2623 = vsel %vm2495, 1, 0
      %v2624 = vsel %vm2496, 1, 0
      %v2625 = vsel %vm2497, 1, 0
      %v2626 = vsel %vm2498, 1, 0
      %v2627 = vsel %vm2499, 1, 0
      %v2628 = vsel %vm2500, 1, 0
      %v2629 = vsel %vm2501, 1, 0
      %v2630 = vsel %vm2502, 1, 0
      %v2631 = vsel %vm2503, 1, 0
      %v2632 = vsel %vm2504, 1, 0
      %v2633 = vsel %vm2505, 1, 0
      %v2634 = vsel %vm2506, 1, 0
      %v2635 = vsel %vm2507, 1, 0
      %v2636 = vsel %vm2508, 1, 0
      %v2637 = vsel %vm2509, 1, 0
      %v2638 = vsel %vm2510, 1, 0
      %v2639 = vsel %vm2511, 1, 0
      %v2640 = vsel %vm2512, 1, 0
      %v2641 = vsel %vm2513, 1, 0
      %v2642 = vsel %vm2514, 1, 0
      %v2643 = vsel %vm2515, 1, 0
      %v2644 = vsel %vm2516, 1, 0
      %v2645 = vsel %vm2517, 1, 0
      %v2646 = vsel %vm2518, 1, 0
      %v2647 = vsel %vm2519, 1, 0
      %v2648 = vsel %vm2520, 1, 0
      %v2649 = vsel %vm2521, 1, 0
      %v2650 = vsel %vm2522, 1, 0
      %v2651 = vsel %vm2523, 1, 0
      %v2652 = vsel %vm2524, 1, 0
      %v2653 = vsel %vm2525, 1, 0
      %v2654 = vsel %vm2526, 1, 0
      %v2655 = vsel %vm2527, 1, 0
      %v2656 = vsel %vm2528, 1, 0
      %v2657 = vsel %vm2529, 1, 0
      %v2658 = vsel %vm2530, 1, 0
      %v2659 = vsel %vm2531, 1, 0
      %v2660 = vsel %vm2532, 1, 0
      %v2661 = vsel %vm2533, 1, 0
      %v2662 = vsel %vm2534, 1, 0
      %v2663 = vsel %vm2535, 1, 0
      %v2664 = vsel %vm2536, 1, 0
      %v2665 = vsel %vm2537, 1, 0
      %v2666 = vsel %vm2538, 1, 0
      %v2667 = vsel %vm2539, 1, 0
      %v2668 = vsel %vm2540, 1, 0
      %v2669 = vsel %vm2541, 1, 0
      %v2670 = vsel %vm2542, 1, 0
      %v2671 = vsel %vm2543, 1, 0
      %v2672 = vsel %vm2544, 1, 0
      %v2673 = vsel %vm2545, 1, 0
      %v2674 = vsel %vm2546, 1, 0
      %v2675 = vsel %vm2547, 1, 0
      %v2676 = vsel %vm2548, 1, 0
      %v2677 = vsel %vm2549, 1, 0
      %v2678 = vsel %vm2550, 1, 0
      %v2679 = vsel %vm2551, 1, 0
      %v2680 = vsel %vm2552, 1, 0
      %v2681 = vsel %vm2553, 1, 0
      %v2682 = vsel %vm2554, 1, 0
      %v2683 = vsel %vm2555, 1, 0
      %v2684 = vsel %vm2556, 1, 0
      %v2685 = vsel %vm2557, 1, 0
      %v2686 = vsel %vm2558, 1, 0
      %v2687 = vsel %vm2559, 1, 0
      %v2688 = vsel %vm2560, 1, 0
      %v2689 = vsel %vm2561, 1, 0
      %v2690 = vsel %vm2562, 1, 0
      %v2691 = vsel %vm2563, 1, 0
      %v2692 = vsel %vm2564, 1, 0
      %v2693 = vsel %vm2565, 1, 0
      %v2694 = vsel %vm2566, 1, 0
      %v2695 = vsel %vm2567, 1, 0
      %v2696 = vsel %vm2568, 1, 0
      %v2697 = vsel %vm2569, 1, 0
      %v2698 = vsel %vm2570, 1, 0
      %v2699 = vsel %vm2571, 1, 0
      %v2700 = vsel %vm2572, 1, 0
      %v2701 = vsel %vm2573, 1, 0
      %v2702 = vsel %vm2574, 1, 0
      %v2703 = vsel %vm2575, 1, 0
      %v2704 = vsel %vm2576, 1, 0
      %v2705 = vsel %vm2577, 1, 0
      %v2706 = vsel %vm2578, 1, 0
      %v2707 = vsel %vm2579, 1, 0
      %v2708 = vsel %vm2580, 1, 0
      %v2709 = vsel %vm2581, 1, 0
      %v2710 = vsel %vm2582, 1, 0
      %v2711 = vcvt.s32.f32 %v2583
      %v2712 = vcvt.s32.f32 %v2584
      %v2713 = vcvt.s32.f32 %v2585
      %v2714 = vcvt.s32.f32 %v2586
      %v2715 = vcvt.s32.f32 %v2587
      %v2716 = vcvt.s32.f32 %v2588
      %v2717 = vcvt.s32.f32 %v2589
      %v2718 = vcvt.s32.f32 %v2590
      %v2719 = vcvt.s32.f32 %v2591
      %v2720 = vcvt.s32.f32 %v2592
      %v2721 = vcvt.s32.f32 %v2593
      %v2722 = vcvt.s32.f32 %v2594
      %v2723 = vcvt.s32.f32 %v2595
      %v2724 = vcvt.s32.f32 %v2596
      %v2725 = vcvt.s32.f32 %v2597
      %v2726 = vcvt.s32.f32 %v2598
      %v2727 = vcvt.s32.f32 %v2599
      %v2728 = vcvt.s32.f32 %v2600
      %v2729 = vcvt.s32.f32 %v2601
      %v2730 = vcvt.s32.f32 %v2602
      %v2731 = vcvt.s32.f32 %v2603
      %v2732 = vcvt.s32.f32 %v2604
      %v2733 = vcvt.s32.f32 %v2605
      %v2734 = vcvt.s32.f32 %v2606
      %v2735 = vcvt.s32.f32 %v2607
      %v2736 = vcvt.s32.f32 %v2608
      %v2737 = vcvt.s32.f32 %v2609
      %v2738 = vcvt.s32.f32 %v2610
      %v2739 = vcvt.s32.f32 %v2611
      %v2740 = vcvt.s32.f32 %v2612
      %v2741 = vcvt.s32.f32 %v2613
      %v2742 = vcvt.s32.f32 %v2614
      %v2743 = vcvt.s32.f32 %v2615
      %v2744 = vcvt.s32.f32 %v2616
      %v2745 = vcvt.s32.f32 %v2617
      %v2746 = vcvt.s32.f32 %v2618
      %v2747 = vcvt.s32.f32 %v2619
      %v2748 = vcvt.s32.f32 %v2620
      %v2749 = vcvt.s32.f32 %v2621
      %v2750 = vcvt.s32.f32 %v2622
      %v2751 = vcvt.s32.f32 %v2623
      %v2752 = vcvt.s32.f32 %v2624
      %v2753 = vcvt.s32.f32 %v2625
      %v2754 = vcvt.s32.f32 %v2626
      %v2755 = vcvt.s32.f32 %v2627
      %v2756 = vcvt.s32.f32 %v2628
      %v2757 = vcvt.s32.f32 %v2629
      %v2758 = vcvt.s32.f32 %v2630
      %v2759 = vcvt.s32.f32 %v2631
      %v2760 = vcvt.s32.f32 %v2632
      %v2761 = vcvt.s32.f32 %v2633
      %v2762 = vcvt.s32.f32 %v2634
      %v2763 = vcvt.s32.f32 %v2635
      %v2764 = vcvt.s32.f32 %v2636
      %v2765 = vcvt.s32.f32 %v2637
      %v2766 = vcvt.s32.f32 %v2638
      %v2767 = vcvt.s32.f32 %v2639
      %v2768 = vcvt.s32.f32 %v2640
      %v2769 = vcvt.s32.f32 %v2641
      %v2770 = vcvt.s32.f32 %v2642
      %v2771 = vcvt.s32.f32 %v2643
      %v2772 = vcvt.s32.f32 %v2644
      %v2773 = vcvt.s32.f32 %v2645
      %v2774 = vcvt.s32.f32 %v2646
      %v2775 = vcvt.s32.f32 %v2647
      %v2776 = vcvt.s32.f32 %v2648
      %v2777 = vcvt.s32.f32 %v2649
      %v2778 = vcvt.s32.f32 %v2650
      %v2779 = vcvt.s32.f32 %v2651
      %v2780 = vcvt.s32.f32 %v2652
      %v2781 = vcvt.s32.f32 %v2653
      %v2782 = vcvt.s32.f32 %v2654
      %v2783 = vcvt.s32.f32 %v2655
      %v2784 = vcvt.s32.f32 %v2656
      %v2785 = vcvt.s32.f32 %v2657
      %v2786 = vcvt.s32.f32 %v2658
      %v2787 = vcvt.s32.f32 %v2659
      %v2788 = vcvt.s32.f32 %v2660
      %v2789 = vcvt.s32.f32 %v2661
      %v2790 = vcvt.s32.f32 %v2662
      %v2791 = vcvt.s32.f32 %v2663
      %v2792 = vcvt.s32.f32 %v2664
      %v2793 = vcvt.s32.f32 %v2665
      %v2794 = vcvt.s32.f32 %v2666
      %v2795 = vcvt.s32.f32 %v2667
      %v2796 = vcvt.s32.f32 %v2668
      %v2797 = vcvt.s32.f32 %v2669
      %v2798 = vcvt.s32.f32 %v2670
      %v2799 = vcvt.s32.f32 %v2671
      %v2800 = vcvt.s32.f32 %v2672
      %v2801 = vcvt.s32.f32 %v2673
      %v2802 = vcvt.s32.f32 %v2674
      %v2803 = vcvt.s32.f32 %v2675
      %v2804 = vcvt.s32.f32 %v2676
      %v2805 = vcvt.s32.f32 %v2677
      %v2806 = vcvt.s32.f32 %v2678
      %v2807 = vcvt.s32.f32 %v2679
      %v2808 = vcvt.s32.f32 %v2680
      %v2809 = vcvt.s32.f32 %v2681
      %v2810 = vcvt.s32.f32 %v2682
      %v2811 = vcvt.s32.f32 %v2683
      %v2812 = vcvt.s32.f32 %v2684
      %v2813 = vcvt.s32.f32 %v2685
      %v2814 = vcvt.s32.f32 %v2686
      %v2815 = vcvt.s32.f32 %v2687
      %v2816 = vcvt.s32.f32 %v2688
      %v2817 = vcvt.s32.f32 %v2689
      %v2818 = vcvt.s32.f32 %v2690
      %v2819 = vcvt.s32.f32 %v2691
      %v2820 = vcvt.s32.f32 %v2692
      %v2821 = vcvt.s32.f32 %v2693
      %v2822 = vcvt.s32.f32 %v2694
      %v2823 = vcvt.s32.f32 %v2695
      %v2824 = vcvt.s32.f32 %v2696
      %v2825 = vcvt.s32.f32 %v2697
      %v2826 = vcvt.s32.f32 %v2698
      %v2827 = vcvt.s32.f32 %v2699
      %v2828 = vcvt.s32.f32 %v2700
      %v2829 = vcvt.s32.f32 %v2701
      %v2830 = vcvt.s32.f32 %v2702
      %v2831 = vcvt.s32.f32 %v2703
      %v2832 = vcvt.s32.f32 %v2704
      %v2833 = vcvt.s32.f32 %v2705
      %v2834 = vcvt.s32.f32 %v2706
      %v2835 = vcvt.s32.f32 %v2707
      %v2836 = vcvt.s32.f32 %v2708
      %v2837 = vcvt.s32.f32 %v2709
      %v2838 = vcvt.s32.f32 %v2710
      %v2839 = vmul.f32 %v1428, %v2711
      %v2840 = vmul.f32 %v1429, %v2712
      %v2841 = vmul.f32 %v1430, %v2713
      %v2842 = vmul.f32 %v1431, %v2714
      %v2843 = vmul.f32 %v1432, %v2715
      %v2844 = vmul.f32 %v1433, %v2716
      %v2845 = vmul.f32 %v1434, %v2717
      %v2846 = vmul.f32 %v1435, %v2718
      %v2847 = vmul.f32 %v1436, %v2719
      %v2848 = vmul.f32 %v1437, %v2720
      %v2849 = vmul.f32 %v1438, %v2721
      %v2850 = vmul.f32 %v1439, %v2722
      %v2851 = vmul.f32 %v1440, %v2723
      %v2852 = vmul.f32 %v1441, %v2724
      %v2853 = vmul.f32 %v1442, %v2725
      %v2854 = vmul.f32 %v1443, %v2726
      %v2855 = vmul.f32 %v1444, %v2727
      %v2856 = vmul.f32 %v1445, %v2728
      %v2857 = vmul.f32 %v1446, %v2729
      %v2858 = vmul.f32 %v1447, %v2730
      %v2859 = vmul.f32 %v1448, %v2731
      %v2860 = vmul.f32 %v1449, %v2732
      %v2861 = vmul.f32 %v1450, %v2733
      %v2862 = vmul.f32 %v1451, %v2734
      %v2863 = vmul.f32 %v1452, %v2735
      %v2864 = vmul.f32 %v1453, %v2736
      %v2865 = vmul.f32 %v1454, %v2737
      %v2866 = vmul.f32 %v1455, %v2738
      %v2867 = vmul.f32 %v1456, %v2739
      %v2868 = vmul.f32 %v1457, %v2740
      %v2869 = vmul.f32 %v1458, %v2741
      %v2870 = vmul.f32 %v1459, %v2742
      %v2871 = vmul.f32 %v1460, %v2743
      %v2872 = vmul.f32 %v1461, %v2744
      %v2873 = vmul.f32 %v1462, %v2745
      %v2874 = vmul.f32 %v1463, %v2746
      %v2875 = vmul.f32 %v1464, %v2747
      %v2876 = vmul.f32 %v1465, %v2748
      %v2877 = vmul.f32 %v1466, %v2749
      %v2878 = vmul.f32 %v1467, %v2750
      %v2879 = vmul.f32 %v1468, %v2751
      %v2880 = vmul.f32 %v1469, %v2752
      %v2881 = vmul.f32 %v1470, %v2753
      %v2882 = vmul.f32 %v1471, %v2754
      %v2883 = vmul.f32 %v1472, %v2755
      %v2884 = vmul.f32 %v1473, %v2756
      %v2885 = vmul.f32 %v1474, %v2757
      %v2886 = vmul.f32 %v1475, %v2758
      %v2887 = vmul.f32 %v1476, %v2759
      %v2888 = vmul.f32 %v1477, %v2760
      %v2889 = vmul.f32 %v1478, %v2761
      %v2890 = vmul.f32 %v1479, %v2762
      %v2891 = vmul.f32 %v1480, %v2763
      %v2892 = vmul.f32 %v1481, %v2764
      %v2893 = vmul.f32 %v1482, %v2765
      %v2894 = vmul.f32 %v1483, %v2766
      %v2895 = vmul.f32 %v1484, %v2767
      %v2896 = vmul.f32 %v1485, %v2768
      %v2897 = vmul.f32 %v1486, %v2769
      %v2898 = vmul.f32 %v1487, %v2770
      %v2899 = vmul.f32 %v1488, %v2771
      %v2900 = vmul.f32 %v1489, %v2772
      %v2901 = vmul.f32 %v1490, %v2773
      %v2902 = vmul.f32 %v1491, %v2774
      %v2903 = vmul.f32 %v1492, %v2775
      %v2904 = vmul.f32 %v1493, %v2776
      %v2905 = vmul.f32 %v1494, %v2777
      %v2906 = vmul.f32 %v1495, %v2778
      %v2907 = vmul.f32 %v1496, %v2779
      %v2908 = vmul.f32 %v1497, %v2780
      %v2909 = vmul.f32 %v1498, %v2781
      %v2910 = vmul.f32 %v1499, %v2782
      %v2911 = vmul.f32 %v1500, %v2783
      %v2912 = vmul.f32 %v1501, %v2784
      %v2913 = vmul.f32 %v1502, %v2785
      %v2914 = vmul.f32 %v1503, %v2786
      %v2915 = vmul.f32 %v1504, %v2787
      %v2916 = vmul.f32 %v1505, %v2788
      %v2917 = vmul.f32 %v1506, %v2789
      %v2918 = vmul.f32 %v1507, %v2790
      %v2919 = vmul.f32 %v1508, %v2791
      %v2920 = vmul.f32 %v1509, %v2792
      %v2921 = vmul.f32 %v1510, %v2793
      %v2922 = vmul.f32 %v1511, %v2794
      %v2923 = vmul.f32 %v1512, %v2795
      %v2924 = vmul.f32 %v1513, %v2796
      %v2925 = vmul.f32 %v1514, %v2797
      %v2926 = vmul.f32 %v1515, %v2798
      %v2927 = vmul.f32 %v1516, %v2799
      %v2928 = vmul.f32 %v1517, %v2800
      %v2929 = vmul.f32 %v1518, %v2801
      %v2930 = vmul.f32 %v1519, %v2802
      %v2931 = vmul.f32 %v1520, %v2803
      %v2932 = vmul.f32 %v1521, %v2804
      %v2933 = vmul.f32 %v1522, %v2805
      %v2934 = vmul.f32 %v1523, %v2806
      %v2935 = vmul.f32 %v1524, %v2807
      %v2936 = vmul.f32 %v1525, %v2808
      %v2937 = vmul.f32 %v1526, %v2809
      %v2938 = vmul.f32 %v1527, %v2810
      %v2939 = vmul.f32 %v1528, %v2811
      %v2940 = vmul.f32 %v1529, %v2812
      %v2941 = vmul.f32 %v1530, %v2813
      %v2942 = vmul.f32 %v1531, %v2814
      %v2943 = vmul.f32 %v1532, %v2815
      %v2944 = vmul.f32 %v1533, %v2816
      %v2945 = vmul.f32 %v1534, %v2817
      %v2946 = vmul.f32 %v1535, %v2818
      %v2947 = vmul.f32 %v1536, %v2819
      %v2948 = vmul.f32 %v1537, %v2820
      %v2949 = vmul.f32 %v1538, %v2821
      %v2950 = vmul.f32 %v1539, %v2822
      %v2951 = vmul.f32 %v1540, %v2823
      %v2952 = vmul.f32 %v1541, %v2824
      %v2953 = vmul.f32 %v1542, %v2825
      %v2954 = vmul.f32 %v1543, %v2826
      %v2955 = vmul.f32 %v1544, %v2827
      %v2956 = vmul.f32 %v1545, %v2828
      %v2957 = vmul.f32 %v1546, %v2829
      %v2958 = vmul.f32 %v1547, %v2830
      %v2959 = vmul.f32 %v1548, %v2831
      %v2960 = vmul.f32 %v1549, %v2832
      %v2961 = vmul.f32 %v1550, %v2833
      %v2962 = vmul.f32 %v1551, %v2834
      %v2963 = vmul.f32 %v1552, %v2835
      %v2964 = vmul.f32 %v1553, %v2836
      %v2965 = vmul.f32 %v1554, %v2837
      %v2966 = vmul.f32 %v1555, %v2838
      %v2967 = vadd.f32 %v2839, %v2840
      %v2968 = vadd.f32 %v2967, %v2841
      %v2969 = vadd.f32 %v2968, %v2842
      %v2970 = vadd.f32 %v2969, %v2843
      %v2971 = vadd.f32 %v2970, %v2844
      %v2972 = vadd.f32 %v2971, %v2845
      %v2973 = vadd.f32 %v2972, %v2846
      %v2974 = vadd.f32 %v2973, %v2847
      %v2975 = vadd.f32 %v2974, %v2848
      %v2976 = vadd.f32 %v2975, %v2849
      %v2977 = vadd.f32 %v2976, %v2850
      %v2978 = vadd.f32 %v2977, %v2851
      %v2979 = vadd.f32 %v2978, %v2852
      %v2980 = vadd.f32 %v2979, %v2853
      %v2981 = vadd.f32 %v2980, %v2854
      %v2982 = vadd.f32 %v2981, %v2855
      %v2983 = vadd.f32 %v2982, %v2856
      %v2984 = vadd.f32 %v2983, %v2857
      %v2985 = vadd.f32 %v2984, %v2858
      %v2986 = vadd.f32 %v2985, %v2859
      %v2987 = vadd.f32 %v2986, %v2860
      %v2988 = vadd.f32 %v2987, %v2861
      %v2989 = vadd.f32 %v2988, %v2862
      %v2990 = vadd.f32 %v2989, %v2863
      %v2991 = vadd.f32 %v2990, %v2864
      %v2992 = vadd.f32 %v2991, %v2865
      %v2993 = vadd.f32 %v2992, %v2866
      %v2994 = vadd.f32 %v2993, %v2867
      %v2995 = vadd.f32 %v2994, %v2868
      %v2996 = vadd.f32 %v2995, %v2869
      %v2997 = vadd.f32 %v2996, %v2870
      %v2998 = vadd.f32 %v2997, %v2871
      %v2999 = vadd.f32 %v2998, %v2872
      %v3000 = vadd.f32 %v2999, %v2873
      %v3001 = vadd.f32 %v3000, %v2874
      %v3002 = vadd.f32 %v3001, %v2875
      %v3003 = vadd.f32 %v3002, %v2876
      %v3004 = vadd.f32 %v3003, %v2877
      %v3005 = vadd.f32 %v3004, %v2878
      %v3006 = vadd.f32 %v3005, %v2879
      %v3007 = vadd.f32 %v3006, %v2880
      %v3008 = vadd.f32 %v3007, %v2881
      %v3009 = vadd.f32 %v3008, %v2882
      %v3010 = vadd.f32 %v3009, %v2883
      %v3011 = vadd.f32 %v3010, %v2884
      %v3012 = vadd.f32 %v3011, %v2885
      %v3013 = vadd.f32 %v3012, %v2886
      %v3014 = vadd.f32 %v3013, %v2887
      %v3015 = vadd.f32 %v3014, %v2888
      %v3016 = vadd.f32 %v3015, %v2889
      %v3017 = vadd.f32 %v3016, %v2890
      %v3018 = vadd.f32 %v3017, %v2891
      %v3019 = vadd.f32 %v3018, %v2892
      %v3020 = vadd.f32 %v3019, %v2893
      %v3021 = vadd.f32 %v3020, %v2894
      %v3022 = vadd.f32 %v3021, %v2895
      %v3023 = vadd.f32 %v3022, %v2896
      %v3024 = vadd.f32 %v3023, %v2897
      %v3025 = vadd.f32 %v3024, %v2898
      %v3026 = vadd.f32 %v3025, %v2899
      %v3027 = vadd.f32 %v3026, %v2900
      %v3028 = vadd.f32 %v3027, %v2901
      %v3029 = vadd.f32 %v3028, %v2902
      %v3030 = vadd.f32 %v3029, %v2903
      %v3031 = vadd.f32 %v3030, %v2904
      %v3032 = vadd.f32 %v3031, %v2905
      %v3033 = vadd.f32 %v3032, %v2906
      %v3034 = vadd.f32 %v3033, %v2907
      %v3035 = vadd.f32 %v3034, %v2908
      %v3036 = vadd.f32 %v3035, %v2909
      %v3037 = vadd.f32 %v3036, %v2910
      %v3038 = vadd.f32 %v3037, %v2911
      %v3039 = vadd.f32 %v3038, %v2912
      %v3040 = vadd.f32 %v3039, %v2913
      %v3041 = vadd.f32 %v3040, %v2914
      %v3042 = vadd.f32 %v3041, %v2915
      %v3043 = vadd.f32 %v3042, %v2916
      %v3044 = vadd.f32 %v3043, %v2917
      %v3045 = vadd.f32 %v3044, %v2918
      %v3046 = vadd.f32 %v3045, %v2919
      %v3047 = vadd.f32 %v3046, %v2920
      %v3048 = vadd.f32 %v3047, %v2921
      %v3049 = vadd.f32 %v3048, %v2922
      %v3050 = vadd.f32 %v3049, %v2923
      %v3051 = vadd.f32 %v3050, %v2924
      %v3052 = vadd.f32 %v3051, %v2925
      %v3053 = vadd.f32 %v3052, %v2926
      %v3054 = vadd.f32 %v3053, %v2927
      %v3055 = vadd.f32 %v3054, %v2928
      %v3056 = vadd.f32 %v3055, %v2929
      %v3057 = vadd.f32 %v3056, %v2930
      %v3058 = vadd.f32 %v3057, %v2931
      %v3059 = vadd.f32 %v3058, %v2932
      %v3060 = vadd.f32 %v3059, %v2933
      %v3061 = vadd.f32 %v3060, %v2934
      %v3062 = vadd.f32 %v3061, %v2935
      %v3063 = vadd.f32 %v3062, %v2936
      %v3064 = vadd.f32 %v3063, %v2937
      %v3065 = vadd.f32 %v3064, %v2938
      %v3066 = vadd.f32 %v3065, %v2939
      %v3067 = vadd.f32 %v3066, %v2940
      %v3068 = vadd.f32 %v3067, %v2941
      %v3069 = vadd.f32 %v3068, %v2942
      %v3070 = vadd.f32 %v3069, %v2943
      %v3071 = vadd.f32 %v3070, %v2944
      %v3072 = vadd.f32 %v3071, %v2945
      %v3073 = vadd.f32 %v3072, %v2946
      %v3074 = vadd.f32 %v3073, %v2947
      %v3075 = vadd.f32 %v3074, %v2948
      %v3076 = vadd.f32 %v3075, %v2949
      %v3077 = vadd.f32 %v3076, %v2950
      %v3078 = vadd.f32 %v3077, %v2951
      %v3079 = vadd.f32 %v3078, %v2952
      %v3080 = vadd.f32 %v3079, %v2953
      %v3081 = vadd.f32 %v3080, %v2954
      %v3082 = vadd.f32 %v3081, %v2955
      %v3083 = vadd.f32 %v3082, %v2956
      %v3084 = vadd.f32 %v3083, %v2957
      %v3085 = vadd.f32 %v3084, %v2958
      %v3086 = vadd.f32 %v3085, %v2959
      %v3087 = vadd.f32 %v3086, %v2960
      %v3088 = vadd.f32 %v3087, %v2961
      %v3089 = vadd.f32 %v3088, %v2962
      %v3090 = vadd.f32 %v3089, %v2963
      %v3091 = vadd.f32 %v3090, %v2964
      %v3092 = vadd.f32 %v3091, %v2965
      %v3093 = vadd.f32 %v3092, %v2966
      %v3094 = vrot.slane %v3093, 4
      %v3095 = vadd.f32 %v3093, %v3094
      %v3096 = vrot.slane %v3095, 2
      %v3097 = vadd.f32 %v3095, %v3096
      %v3098 = vrot.slane %v3097, 1
      %v3099 = vadd.f32 %v3097, %v3098
      %3100 = vst [vmem:[%s211] sm:$0x1] %v3099
      %v3101 = vmul.f32 %v2839, %v1428
      %v3102 = vmul.f32 %v2840, %v1429
      %v3103 = vmul.f32 %v2841, %v1430
      %v3104 = vmul.f32 %v2842, %v1431
      %v3105 = vmul.f32 %v2843, %v1432
      %v3106 = vmul.f32 %v2844, %v1433
      %v3107 = vmul.f32 %v2845, %v1434
      %v3108 = vmul.f32 %v2846, %v1435
      %v3109 = vmul.f32 %v2847, %v1436
      %v3110 = vmul.f32 %v2848, %v1437
      %v3111 = vmul.f32 %v2849, %v1438
      %v3112 = vmul.f32 %v2850, %v1439
      %v3113 = vmul.f32 %v2851, %v1440
      %v3114 = vmul.f32 %v2852, %v1441
      %v3115 = vmul.f32 %v2853, %v1442
      %v3116 = vmul.f32 %v2854, %v1443
      %v3117 = vmul.f32 %v2855, %v1444
      %v3118 = vmul.f32 %v2856, %v1445
      %v3119 = vmul.f32 %v2857, %v1446
      %v3120 = vmul.f32 %v2858, %v1447
      %v3121 = vmul.f32 %v2859, %v1448
      %v3122 = vmul.f32 %v2860, %v1449
      %v3123 = vmul.f32 %v2861, %v1450
      %v3124 = vmul.f32 %v2862, %v1451
      %v3125 = vmul.f32 %v2863, %v1452
      %v3126 = vmul.f32 %v2864, %v1453
      %v3127 = vmul.f32 %v2865, %v1454
      %v3128 = vmul.f32 %v2866, %v1455
      %v3129 = vmul.f32 %v2867, %v1456
      %v3130 = vmul.f32 %v2868, %v1457
      %v3131 = vmul.f32 %v2869, %v1458
      %v3132 = vmul.f32 %v2870, %v1459
      %v3133 = vmul.f32 %v2871, %v1460
      %v3134 = vmul.f32 %v2872, %v1461
      %v3135 = vmul.f32 %v2873, %v1462
      %v3136 = vmul.f32 %v2874, %v1463
      %v3137 = vmul.f32 %v2875, %v1464
      %v3138 = vmul.f32 %v2876, %v1465
      %v3139 = vmul.f32 %v2877, %v1466
      %v3140 = vmul.f32 %v2878, %v1467
      %v3141 = vmul.f32 %v2879, %v1468
      %v3142 = vmul.f32 %v2880, %v1469
      %v3143 = vmul.f32 %v2881, %v1470
      %v3144 = vmul.f32 %v2882, %v1471
      %v3145 = vmul.f32 %v2883, %v1472
      %v3146 = vmul.f32 %v2884, %v1473
      %v3147 = vmul.f32 %v2885, %v1474
      %v3148 = vmul.f32 %v2886, %v1475
      %v3149 = vmul.f32 %v2887, %v1476
      %v3150 = vmul.f32 %v2888, %v1477
      %v3151 = vmul.f32 %v2889, %v1478
      %v3152 = vmul.f32 %v2890, %v1479
      %v3153 = vmul.f32 %v2891, %v1480
      %v3154 = vmul.f32 %v2892, %v1481
      %v3155 = vmul.f32 %v2893, %v1482
      %v3156 = vmul.f32 %v2894, %v1483
      %v3157 = vmul.f32 %v2895, %v1484
      %v3158 = vmul.f32 %v2896, %v1485
      %v3159 = vmul.f32 %v2897, %v1486
      %v3160 = vmul.f32 %v2898, %v1487
      %v3161 = vmul.f32 %v2899, %v1488
      %v3162 = vmul.f32 %v2900, %v1489
      %v3163 = vmul.f32 %v2901, %v1490
      %v3164 = vmul.f32 %v2902, %v1491
      %v3165 = vmul.f32 %v2903, %v1492
      %v3166 = vmul.f32 %v2904, %v1493
      %v3167 = vmul.f32 %v2905, %v1494
      %v3168 = vmul.f32 %v2906, %v1495
      %v3169 = vmul.f32 %v2907, %v1496
      %v3170 = vmul.f32 %v2908, %v1497
      %v3171 = vmul.f32 %v2909, %v1498
      %v3172 = vmul.f32 %v2910, %v1499
      %v3173 = vmul.f32 %v2911, %v1500
      %v3174 = vmul.f32 %v2912, %v1501
      %v3175 = vmul.f32 %v2913, %v1502
      %v3176 = vmul.f32 %v2914, %v1503
      %v3177 = vmul.f32 %v2915, %v1504
      %v3178 = vmul.f32 %v2916, %v1505
      %v3179 = vmul.f32 %v2917, %v1506
      %v3180 = vmul.f32 %v2918, %v1507
      %v3181 = vmul.f32 %v2919, %v1508
      %v3182 = vmul.f32 %v2920, %v1509
      %v3183 = vmul.f32 %v2921, %v1510
      %v3184 = vmul.f32 %v2922, %v1511
      %v3185 = vmul.f32 %v2923, %v1512
      %v3186 = vmul.f32 %v2924, %v1513
      %v3187 = vmul.f32 %v2925, %v1514
      %v3188 = vmul.f32 %v2926, %v1515
      %v3189 = vmul.f32 %v2927, %v1516
      %v3190 = vmul.f32 %v2928, %v1517
      %v3191 = vmul.f32 %v2929, %v1518
      %v3192 = vmul.f32 %v2930, %v1519
      %v3193 = vmul.f32 %v2931, %v1520
      %v3194 = vmul.f32 %v2932, %v1521
      %v3195 = vmul.f32 %v2933, %v1522
      %v3196 = vmul.f32 %v2934, %v1523
      %v3197 = vmul.f32 %v2935, %v1524
      %v3198 = vmul.f32 %v2936, %v1525
      %v3199 = vmul.f32 %v2937, %v1526
      %v3200 = vmul.f32 %v2938, %v1527
      %v3201 = vmul.f32 %v2939, %v1528
      %v3202 = vmul.f32 %v2940, %v1529
      %v3203 = vmul.f32 %v2941, %v1530
      %v3204 = vmul.f32 %v2942, %v1531
      %v3205 = vmul.f32 %v2943, %v1532
      %v3206 = vmul.f32 %v2944, %v1533
      %v3207 = vmul.f32 %v2945, %v1534
      %v3208 = vmul.f32 %v2946, %v1535
      %v3209 = vmul.f32 %v2947, %v1536
      %v3210 = vmul.f32 %v2948, %v1537
      %v3211 = vmul.f32 %v2949, %v1538
      %v3212 = vmul.f32 %v2950, %v1539
      %v3213 = vmul.f32 %v2951, %v1540
      %v3214 = vmul.f32 %v2952, %v1541
      %v3215 = vmul.f32 %v2953, %v1542
      %v3216 = vmul.f32 %v2954, %v1543
      %v3217 = vmul.f32 %v2955, %v1544
      %v3218 = vmul.f32 %v2956, %v1545
      %v3219 = vmul.f32 %v2957, %v1546
      %v3220 = vmul.f32 %v2958, %v1547
      %v3221 = vmul.f32 %v2959, %v1548
      %v3222 = vmul.f32 %v2960, %v1549
      %v3223 = vmul.f32 %v2961, %v1550
      %v3224 = vmul.f32 %v2962, %v1551
      %v3225 = vmul.f32 %v2963, %v1552
      %v3226 = vmul.f32 %v2964, %v1553
      %v3227 = vmul.f32 %v2965, %v1554
      %v3228 = vmul.f32 %v2966, %v1555
      %v3229 = vadd.f32 %v3101, %v3102
      %v3230 = vadd.f32 %v3229, %v3103
      %v3231 = vadd.f32 %v3230, %v3104
      %v3232 = vadd.f32 %v3231, %v3105
      %v3233 = vadd.f32 %v3232, %v3106
      %v3234 = vadd.f32 %v3233, %v3107
      %v3235 = vadd.f32 %v3234, %v3108
      %v3236 = vadd.f32 %v3235, %v3109
      %v3237 = vadd.f32 %v3236, %v3110
      %v3238 = vadd.f32 %v3237, %v3111
      %v3239 = vadd.f32 %v3238, %v3112
      %v3240 = vadd.f32 %v3239, %v3113
      %v3241 = vadd.f32 %v3240, %v3114
      %v3242 = vadd.f32 %v3241, %v3115
      %v3243 = vadd.f32 %v3242, %v3116
      %v3244 = vadd.f32 %v3243, %v3117
      %v3245 = vadd.f32 %v3244, %v3118
      %v3246 = vadd.f32 %v3245, %v3119
      %v3247 = vadd.f32 %v3246, %v3120
      %v3248 = vadd.f32 %v3247, %v3121
      %v3249 = vadd.f32 %v3248, %v3122
      %v3250 = vadd.f32 %v3249, %v3123
      %v3251 = vadd.f32 %v3250, %v3124
      %v3252 = vadd.f32 %v3251, %v3125
      %v3253 = vadd.f32 %v3252, %v3126
      %v3254 = vadd.f32 %v3253, %v3127
      %v3255 = vadd.f32 %v3254, %v3128
      %v3256 = vadd.f32 %v3255, %v3129
      %v3257 = vadd.f32 %v3256, %v3130
      %v3258 = vadd.f32 %v3257, %v3131
      %v3259 = vadd.f32 %v3258, %v3132
      %v3260 = vadd.f32 %v3259, %v3133
      %v3261 = vadd.f32 %v3260, %v3134
      %v3262 = vadd.f32 %v3261, %v3135
      %v3263 = vadd.f32 %v3262, %v3136
      %v3264 = vadd.f32 %v3263, %v3137
      %v3265 = vadd.f32 %v3264, %v3138
      %v3266 = vadd.f32 %v3265, %v3139
      %v3267 = vadd.f32 %v3266, %v3140
      %v3268 = vadd.f32 %v3267, %v3141
      %v3269 = vadd.f32 %v3268, %v3142
      %v3270 = vadd.f32 %v3269, %v3143
      %v3271 = vadd.f32 %v3270, %v3144
      %v3272 = vadd.f32 %v3271, %v3145
      %v3273 = vadd.f32 %v3272, %v3146
      %v3274 = vadd.f32 %v3273, %v3147
      %v3275 = vadd.f32 %v3274, %v3148
      %v3276 = vadd.f32 %v3275, %v3149
      %v3277 = vadd.f32 %v3276, %v3150
      %v3278 = vadd.f32 %v3277, %v3151
      %v3279 = vadd.f32 %v3278, %v3152
      %v3280 = vadd.f32 %v3279, %v3153
      %v3281 = vadd.f32 %v3280, %v3154
      %v3282 = vadd.f32 %v3281, %v3155
      %v3283 = vadd.f32 %v3282, %v3156
      %v3284 = vadd.f32 %v3283, %v3157
      %v3285 = vadd.f32 %v3284, %v3158
      %v3286 = vadd.f32 %v3285, %v3159
      %v3287 = vadd.f32 %v3286, %v3160
      %v3288 = vadd.f32 %v3287, %v3161
      %v3289 = vadd.f32 %v3288, %v3162
      %v3290 = vadd.f32 %v3289, %v3163
      %v3291 = vadd.f32 %v3290, %v3164
      %v3292 = vadd.f32 %v3291, %v3165
      %v3293 = vadd.f32 %v3292, %v3166
      %v3294 = vadd.f32 %v3293, %v3167
      %v3295 = vadd.f32 %v3294, %v3168
      %v3296 = vadd.f32 %v3295, %v3169
      %v3297 = vadd.f32 %v3296, %v3170
      %v3298 = vadd.f32 %v3297, %v3171
      %v3299 = vadd.f32 %v3298, %v3172
      %v3300 = vadd.f32 %v3299, %v3173
      %v3301 = vadd.f32 %v3300, %v3174
      %v3302 = vadd.f32 %v3301, %v3175
      %v3303 = vadd.f32 %v3302, %v3176
      %v3304 = vadd.f32 %v3303, %v3177
      %v3305 = vadd.f32 %v3304, %v3178
      %v3306 = vadd.f32 %v3305, %v3179
      %v3307 = vadd.f32 %v3306, %v3180
      %v3308 = vadd.f32 %v3307, %v3181
      %v3309 = vadd.f32 %v3308, %v3182
      %v3310 = vadd.f32 %v3309, %v3183
      %v3311 = vadd.f32 %v3310, %v3184
      %v3312 = vadd.f32 %v3311, %v3185
      %v3313 = vadd.f32 %v3312, %v3186
      %v3314 = vadd.f32 %v3313, %v3187
      %v3315 = vadd.f32 %v3314, %v3188
      %v3316 = vadd.f32 %v3315, %v3189
      %v3317 = vadd.f32 %v3316, %v3190
      %v3318 = vadd.f32 %v3317, %v3191
      %v3319 = vadd.f32 %v3318, %v3192
      %v3320 = vadd.f32 %v3319, %v3193
      %v3321 = vadd.f32 %v3320, %v3194
      %v3322 = vadd.f32 %v3321, %v3195
      %v3323 = vadd.f32 %v3322, %v3196
      %v3324 = vadd.f32 %v3323, %v3197
      %v3325 = vadd.f32 %v3324, %v3198
      %v3326 = vadd.f32 %v3325, %v3199
      %v3327 = vadd.f32 %v3326, %v3200
      %v3328 = vadd.f32 %v3327, %v3201
      %v3329 = vadd.f32 %v3328, %v3202
      %v3330 = vadd.f32 %v3329, %v3203
      %v3331 = vadd.f32 %v3330, %v3204
      %v3332 = vadd.f32 %v3331, %v3205
      %v3333 = vadd.f32 %v3332, %v3206
      %v3334 = vadd.f32 %v3333, %v3207
      %v3335 = vadd.f32 %v3334, %v3208
      %v3336 = vadd.f32 %v3335, %v3209
      %v3337 = vadd.f32 %v3336, %v3210
      %v3338 = vadd.f32 %v3337, %v3211
      %v3339 = vadd.f32 %v3338, %v3212
      %v3340 = vadd.f32 %v3339, %v3213
      %v3341 = vadd.f32 %v3340, %v3214
      %v3342 = vadd.f32 %v3341, %v3215
      %v3343 = vadd.f32 %v3342, %v3216
      %v3344 = vadd.f32 %v3343, %v3217
      %v3345 = vadd.f32 %v3344, %v3218
      %v3346 = vadd.f32 %v3345, %v3219
      %v3347 = vadd.f32 %v3346, %v3220
      %v3348 = vadd.f32 %v3347, %v3221
      %v3349 = vadd.f32 %v3348, %v3222
      %v3350 = vadd.f32 %v3349, %v3223
      %v3351 = vadd.f32 %v3350, %v3224
      %v3352 = vadd.f32 %v3351, %v3225
      %v3353 = vadd.f32 %v3352, %v3226
      %v3354 = vadd.f32 %v3353, %v3227
      %v3355 = vadd.f32 %v3354, %v3228
      %v3356 = vrot.slane %v3355, 4
      %v3357 = vadd.f32 %v3355, %v3356
      %v3358 = vrot.slane %v3357, 2
      %v3359 = vadd.f32 %v3357, %v3358
      %v3360 = vrot.slane %v3359, 1
      %v3361 = vadd.f32 %v3359, %v3360
      %3362 = vst [vmem:[%s211 + $0x1] sm:$0x1] %v3361
      %s3363 = smul.u32 128, %s16
      %p3364 = scmp.lt.s32.totalorder %s3363, 255
      %s3365 = scalar_select %p3364, %s3363, 255
      %s3366 = smul.addr %s3365, 4
      %s3367 = scalar_lea.vmem %s3, %s3366
      %p3368 = scmp.lt.s32.totalorder %s16, 1
      %s3369 = scalar_select %p3368, %s16, 1
      %s3370 = smul.addr %s3369, 2
      %s3371 = scalar_lea.vmem %s4, %s3370
      // Predicated region
      $region33: #{net_forward.4} parent=31 // pred_check
        %p3372 = pneg %p102
      $region34: #{net_forward.4} parent=31 // pred_check_branch
        %3374 = sbr.rel (%p3372) target = $region36
      $region35: #{net_forward.4} parent=31 // pred_region
        %s3375 = smul.u32 128, %s16
      $region36: #{net_forward.4} parent=31 // pred_fallthru
        _
      // Predicated region
      $region37: #{net_forward.4} parent=31 // pred_check
        %p3376 = pneg %p128
      $region38: #{net_forward.4} parent=31 // pred_check_branch
        %3378 = sbr.rel (%p3376) target = $region40
      $region39: #{net_forward.4} parent=31 // pred_region
        _
      $region40: #{net_forward.4} parent=31 // pred_fallthru
        _
    $region32: #{net_forward.4} parent=5 // pred_fallthru
      _
    %p3379 = scmp.le.s32.totalorder 2, %s11
    // Predicated region
    $region41: #{net_forward.4} parent=5 // pred_check
      %p3380 = pneg %p3379
    $region42: #{net_forward.4} parent=5 // pred_check_branch
      %3382 = sbr.rel (%p3380) target = $region44
    $region43: #{net_forward.4} parent=5 // pred_region
      %s3383 = ssub.s32 %s11, 2
      // Predicated region
      $region45: #{net_forward.4} parent=43 // pred_check
        %p3384 = pneg %p108
      $region46: #{net_forward.4} parent=43 // pred_check_branch
        %3386 = sbr.rel (%p3384) target = $region48
      $region47: #{net_forward.4} parent=43 // pred_region
        %s3387 = smul.u32 128, %s17
        %p3388 = scmp.lt.s32.totalorder %s3387, 255
        %s3389 = scalar_select %p3388, %s3387, 255
        %s3390 = smul.addr %s3389, 4
        %s3391 = scalar_lea.vmem %s3, %s3390
      $region48: #{net_forward.4} parent=43 // pred_fallthru
        _
      // Predicated region
      $region49: #{net_forward.4} parent=43 // pred_check
        %p3392 = pneg %p134
      $region50: #{net_forward.4} parent=43 // pred_check_branch
        %3394 = sbr.rel (%p3392) target = $region52
      $region51: #{net_forward.4} parent=43 // pred_region
        %p3395 = scmp.lt.s32.totalorder %s17, 1
        %s3396 = scalar_select %p3395, %s17, 1
        %s3397 = smul.addr %s3396, 2
        %s3398 = scalar_lea.vmem %s4, %s3397
      $region52: #{net_forward.4} parent=43 // pred_fallthru
        _
    $region44: #{net_forward.4} parent=5 // pred_fallthru
      _
  $region6: #{net_forward.4} parent=0 // loop_footer
    %s15 = sadd.s32 1, %s11
  $region7: #{net_forward.4} parent=0 // loop_footer_branch
    %10 = sbr.rel target = $region3
  $region8: #{net_forward.4} parent=0 // loop_exit
    _

// kernel: tile.27
$region0: #{tile.27}
  #allocation0 [shape = 's32[1]{0}', space=sflag, size = 0x4, scoped, tag = 'scoped memory for tile.27']
  %s0 = inlined_call_operand.vmem [shape: f32[4], index: 0, kind: input, shape index: {}]
  %s1 = inlined_call_operand.vmem [shape: f32[16,4], index: 1, kind: output, shape index: {}]
  // Predicated region
  $region2: #{tile.27} parent=0 // pred_check
    _
  $region3: #{tile.27} parent=0 // pred_check_branch
    %3 = sbr.rel (0) target = $region5
  $region4: #{tile.27} parent=0 // pred_region
    _
  $region5: #{tile.27} parent=0 // pred_fallthru
    _
  %v4 = vld [vmem:[%s0] ss:$0 sm:$0xff]
  %5 = vst [vmem:[%s1] sm:$0xff] %v4
  %s6 = scalar_lea.vmem %s1, 8
  %7 = vst [vmem:[%s6] sm:$0xff] %v4

// kernel: tile.28
$region0: #{tile.28}
  %s0 = inlined_call_operand.vmem [shape: f32[16,4], index: 0, kind: input, shape index: {}]
  %s1 = inlined_call_operand.vmem [shape: f32[64], index: 1, kind: output, shape index: {}]
  $region1: #{tile.28} parent=0
    #allocation0 [shape = 'u8[4096]{0}', space=vmem, size = 0x1000, scoped, tag = 'scoped mem for output reshape']
    %v2 = vld [vmem:[%s0] sm:$0x1]
    %vm3 = vcmask 31744
    %4 = vst.msk [vmem:[#allocation0] sm:$0x1] %vm3, %v2
    %s5 = scalar_lea.vmem %s0, 15
    %v6 = vld [vmem:[%s5] sm:$0x1]
    %7 = vrot.lane.b32.xlu0 %v6, 60
    %v8 = vpop.permute.xlu0 %7
    %vm9 = vcmask 523744
    %10 = vst.msk [vmem:[#allocation0] sm:$0x1] %vm9, %v8
    %s11 = scalar_lea.vmem %s0, 14
    %v12 = vld [vmem:[%s11] sm:$0x1]
    %13 = vrot.lane.b32.xlu0 %v12, 56
    %v14 = vpop.permute.xlu0 %13
    %vm15 = vcmask 490944
    %16 = vst.msk [vmem:[#allocation0] sm:$0x1] %vm15, %v14
    %s17 = scalar_lea.vmem %s0, 13
    %v18 = vld [vmem:[%s17] sm:$0x1]
    %19 = vrot.lane.b32.xlu0 %v18, 52
    %v20 = vpop.permute.xlu0 %19
    %vm21 = vcmask 458144
    %22 = vst.msk [vmem:[#allocation0] sm:$0x1] %vm21, %v20
    %s23 = scalar_lea.vmem %s0, 12
    %v24 = vld [vmem:[%s23] sm:$0x1]
    %25 = vrot.lane.b32.xlu0 %v24, 48
    %v26 = vpop.permute.xlu0 %25
    %vm27 = vcmask 425344
    %28 = vst.msk [vmem:[#allocation0] sm:$0x1] %vm27, %v26
    %s29 = scalar_lea.vmem %s0, 11
    %v30 = vld [vmem:[%s29] sm:$0x1]
    %31 = vrot.lane.b32.xlu0 %v30, 44
    %v32 = vpop.permute.xlu0 %31
    %vm33 = vcmask 392544
    %34 = vst.msk [vmem:[#allocation0] sm:$0x1] %vm33, %v32
    %s35 = scalar_lea.vmem %s0, 10
    %v36 = vld [vmem:[%s35] sm:$0x1]
    %37 = vrot.lane.b32.xlu0 %v36, 40
    %v38 = vpop.permute.xlu0 %37
    %vm39 = vcmask 359744
    %40 = vst.msk [vmem:[#allocation0] sm:$0x1] %vm39, %v38
    %s41 = scalar_lea.vmem %s0, 9
    %v42 = vld [vmem:[%s41] sm:$0x1]
    %43 = vrot.lane.b32.xlu0 %v42, 36
    %v44 = vpop.permute.xlu0 %43
    %vm45 = vcmask 326944
    %46 = vst.msk [vmem:[#allocation0] sm:$0x1] %vm45, %v44
    %s47 = scalar_lea.vmem %s0, 8
    %v48 = vld [vmem:[%s47] sm:$0x1]
    %49 = vrot.lane.b32.xlu0 %v48, 32
    %v50 = vpop.permute.xlu0 %49
    %vm51 = vcmask 294144
    %52 = vst.msk [vmem:[#allocation0] sm:$0x1] %vm51, %v50
    %s53 = scalar_lea.vmem %s0, 7
    %v54 = vld [vmem:[%s53] sm:$0x1]
    %55 = vrot.lane.b32.xlu0 %v54, 28
    %v56 = vpop.permute.xlu0 %55
    %vm57 = vcmask 261344
    %58 = vst.msk [vmem:[#allocation0] sm:$0x1] %vm57, %v56
    %s59 = scalar_lea.vmem %s0, 6
    %v60 = vld [vmem:[%s59] sm:$0x1]
    %61 = vrot.lane.b32.xlu0 %v60, 24
    %v62 = vpop.permute.xlu0 %61
    %vm63 = vcmask 228544
    %64 = vst.msk [vmem:[#allocation0] sm:$0x1] %vm63, %v62
    %s65 = scalar_lea.vmem %s0, 5
    %v66 = vld [vmem:[%s65] sm:$0x1]
    %67 = vrot.lane.b32.xlu0 %v66, 20
    %v68 = vpop.permute.xlu0 %67
    %vm69 = vcmask 195744
    %70 = vst.msk [vmem:[#allocation0] sm:$0x1] %vm69, %v68
    %s71 = scalar_lea.vmem %s0, 4
    %v72 = vld [vmem:[%s71] sm:$0x1]
    %73 = vrot.lane.b32.xlu0 %v72, 16
    %v74 = vpop.permute.xlu0 %73
    %vm75 = vcmask 162944
    %76 = vst.msk [vmem:[#allocation0] sm:$0x1] %vm75, %v74
    %s77 = scalar_lea.vmem %s0, 3
    %v78 = vld [vmem:[%s77] sm:$0x1]
    %79 = vrot.lane.b32.xlu0 %v78, 12
    %v80 = vpop.permute.xlu0 %79
    %vm81 = vcmask 130144
    %82 = vst.msk [vmem:[#allocation0] sm:$0x1] %vm81, %v80
    %s83 = scalar_lea.vmem %s0, 2
    %v84 = vld [vmem:[%s83] sm:$0x1]
    %85 = vrot.lane.b32.xlu0 %v84, 8
    %v86 = vpop.permute.xlu0 %85
    %vm87 = vcmask 97344
    %88 = vst.msk [vmem:[#allocation0] sm:$0x1] %vm87, %v86
    %s89 = scalar_lea.vmem %s0, 1
    %v90 = vld [vmem:[%s89] sm:$0x1]
    %91 = vrot.lane.b32.xlu0 %v90, 4
    %v92 = vpop.permute.xlu0 %91
    %vm93 = vcmask 64544
    %94 = vst.msk [vmem:[#allocation0] sm:$0x1] %vm93, %v92
    %s96 = sshllo.u32 0, 1
    %v98 = vld [vmem:[#allocation0] sm:%s96]
    %s99 = sshllo.u32 0, 1
    %100 = vst [vmem:[%s1] sm:%s99] %v98

// kernel: net_forward.5
$region0: #{net_forward.5}
  #allocation0 [shape = 'u32[]', space=smem, size = 0x4, offset = 0x4, fixed_abs, tag = 'smem constant byte address 0x4 - core index']
  #allocation1 [shape = 'u32[144,128]{1,0:T(1,128)}', space=vmem, size = 0x12000, scoped, tag = 'internal scratch']
  %s0 = inlined_call_operand.vmem [shape: bf16[288,64], index: 0, kind: input, shape index: {}]
  %s1 = inlined_call_operand.vmem [shape: bf16[64,128], index: 1, kind: input, shape index: {}]
  %s2 = inlined_call_operand.vmem [shape: f32[1,128], index: 2, kind: input, shape index: {}]
  %s3 = inlined_call_operand.vmem [shape: bf16[288,128], index: 3, kind: output, shape index: {0}]
  %s4 = inlined_call_operand.vmem [shape: f32[2,2,128], index: 4, kind: output, shape index: {1}]
  %5 = xla_tuple %s3, %s4
  %s6 = sld [smem:[#allocation0]]
  $region53: #{net_forward.5} parent=0
    _
  %s8 = ssub.s32 1, %s6
  %s9 = scalar_select 0, %s8, %s6
  loop: start=0, step=1, limit=4
  $region2: #{net_forward.5} parent=0 // loop_pre_header
    _
  $region3: #{net_forward.5} parent=0 // loop_header
    %s11 = sphi 0, %s15
    %p12 = scmp.ge.s32.totalorder %s11, 4
    %s21 = sphi 0, %s23
    %s24 = sphi 0, %s21
    %s25 = sphi 0, %s24
    %s41 = sphi 0, %s25
    %s45 = sphi 0, %s45
    %s47 = sphi 0, %s45
    %s48 = sphi 0, %s47
    %s62 = sphi 0, %s48
    %s66 = sphi 0, %s66
    %s68 = sphi 0, %s66
    %s69 = sphi 0, %s68
    %s83 = sphi 0, %s69
    %s89 = sphi 0, %s91
    %s92 = sphi 0, %s89
    %s93 = sphi 0, %s92
    %s109 = sphi 0, %s93
    %s115 = sphi 0, %s117
    %s118 = sphi 0, %s115
    %s119 = sphi 0, %s118
    %s135 = sphi 0, %s119
  $region4: #{net_forward.5} parent=0 // loop_header_branch
    %14 = sbr.rel (%p12) target = $region8
  $region5: #{net_forward.5} parent=0 // loop_body
    %s16 = ssub.s32 %s11, 1
    %s17 = ssub.s32 %s11, 2
    %s18 = sadd.s32 %s11, 1
    %s19 = ssub.s32 %s11, %s18
    %p20 = scmp.eq.s32.totalorder %s19, 0
    %s22 = sadd.s32 %s21, 1
    %s23 = scalar_select %p20, %s21, %s22
    %p26 = pneg %p20
    %p27 = scmp.eq.s32.totalorder %s11, 1
    %p28 = por %p26, %p27
    %p29 = scmp.ne.s32.totalorder %s21, %s24
    %p30 = scmp.eq.s32.totalorder %s11, 0
    %p31 = por %p29, %p30
    %p32 = scmp.ne.s32.totalorder %s21, %s24
    %p33 = scmp.eq.s32.totalorder %s16, 1
    %p34 = por %p32, %p33
    %p35 = scmp.ne.s32.totalorder %s24, %s25
    %p36 = scmp.eq.s32.totalorder %s16, 0
    %p37 = por %p35, %p36
    %p38 = scmp.ne.s32.totalorder %s24, %s25
    %p39 = scmp.eq.s32.totalorder %s17, 1
    %p40 = por %p38, %p39
    %p42 = scmp.ne.s32.totalorder %s25, %s41
    %p43 = scmp.eq.s32.totalorder %s17, 0
    %p44 = por %p42, %p43
    %s46 = sadd.s32 %s45, 1
    %p49 = scmp.eq.s32.totalorder %s11, 1
    %p50 = scmp.ne.s32.totalorder %s45, %s47
    %p51 = scmp.eq.s32.totalorder %s11, 0
    %p52 = por %p50, %p51
    %p53 = scmp.ne.s32.totalorder %s45, %s47
    %p54 = scmp.eq.s32.totalorder %s16, 1
    %p55 = por %p53, %p54
    %p56 = scmp.ne.s32.totalorder %s47, %s48
    %p57 = scmp.eq.s32.totalorder %s16, 0
    %p58 = por %p56, %p57
    %p59 = scmp.ne.s32.totalorder %s47, %s48
    %p60 = scmp.eq.s32.totalorder %s17, 1
    %p61 = por %p59, %p60
    %p63 = scmp.ne.s32.totalorder %s48, %s62
    %p64 = scmp.eq.s32.totalorder %s17, 0
    %p65 = por %p63, %p64
    %s67 = sadd.s32 %s66, 1
    %p70 = scmp.eq.s32.totalorder %s11, 1
    %p71 = scmp.ne.s32.totalorder %s66, %s68
    %p72 = scmp.eq.s32.totalorder %s11, 0
    %p73 = por %p71, %p72
    %p74 = scmp.ne.s32.totalorder %s66, %s68
    %p75 = scmp.eq.s32.totalorder %s16, 1
    %p76 = por %p74, %p75
    %p77 = scmp.ne.s32.totalorder %s68, %s69
    %p78 = scmp.eq.s32.totalorder %s16, 0
    %p79 = por %p77, %p78
    %p80 = scmp.ne.s32.totalorder %s68, %s69
    %p81 = scmp.eq.s32.totalorder %s17, 1
    %p82 = por %p80, %p81
    %p84 = scmp.ne.s32.totalorder %s69, %s83
    %p85 = scmp.eq.s32.totalorder %s17, 0
    %p86 = por %p84, %p85
    %s87 = ssub.s32 %s11, %s18
    %p88 = scmp.eq.s32.totalorder %s87, 0
    %s90 = sadd.s32 %s89, 1
    %s91 = scalar_select %p88, %s89, %s90
    %p94 = pneg %p88
    %p95 = scmp.eq.s32.totalorder %s11, 1
    %p96 = por %p94, %p95
    %p97 = scmp.ne.s32.totalorder %s89, %s92
    %p98 = scmp.eq.s32.totalorder %s11, 0
    %p99 = por %p97, %p98
    %p100 = scmp.ne.s32.totalorder %s89, %s92
    %p101 = scmp.eq.s32.totalorder %s16, 1
    %p102 = por %p100, %p101
    %p103 = scmp.ne.s32.totalorder %s92, %s93
    %p104 = scmp.eq.s32.totalorder %s16, 0
    %p105 = por %p103, %p104
    %p106 = scmp.ne.s32.totalorder %s92, %s93
    %p107 = scmp.eq.s32.totalorder %s17, 1
    %p108 = por %p106, %p107
    %p110 = scmp.ne.s32.totalorder %s93, %s109
    %p111 = scmp.eq.s32.totalorder %s17, 0
    %p112 = por %p110, %p111
    %s113 = ssub.s32 %s11, %s18
    %p114 = scmp.eq.s32.totalorder %s113, 0
    %s116 = sadd.s32 %s115, 1
    %s117 = scalar_select %p114, %s115, %s116
    %p120 = pneg %p114
    %p121 = scmp.eq.s32.totalorder %s11, 1
    %p122 = por %p120, %p121
    %p123 = scmp.ne.s32.totalorder %s115, %s118
    %p124 = scmp.eq.s32.totalorder %s11, 0
    %p125 = por %p123, %p124
    %p126 = scmp.ne.s32.totalorder %s115, %s118
    %p127 = scmp.eq.s32.totalorder %s16, 1
    %p128 = por %p126, %p127
    %p129 = scmp.ne.s32.totalorder %s118, %s119
    %p130 = scmp.eq.s32.totalorder %s16, 0
    %p131 = por %p129, %p130
    %p132 = scmp.ne.s32.totalorder %s118, %s119
    %p133 = scmp.eq.s32.totalorder %s17, 1
    %p134 = por %p132, %p133
    %p136 = scmp.ne.s32.totalorder %s119, %s135
    %p137 = scmp.eq.s32.totalorder %s17, 0
    %p138 = por %p136, %p137
    %p139 = scmp.le.s32.totalorder 1, %s11
    %p140 = scmp.lt.s32.totalorder %s11, 3
    %p141 = pnand %p139, %p140
    %p142 = pneg %p141
    // Predicated region
    $region9: #{net_forward.5} parent=5 // pred_check
      _
    $region10: #{net_forward.5} parent=5 // pred_check_branch
      %144 = sbr.rel (%p141) target = $region12
    $region11: #{net_forward.5} parent=5 // pred_region
      %s145 = ssub.s32 %s11, 1
      // Predicated region
      $region13: #{net_forward.5} parent=11 // pred_check
        %p146 = pneg %p58
      $region14: #{net_forward.5} parent=11 // pred_check_branch
        %148 = sbr.rel (%p146) target = $region16
      $region15: #{net_forward.5} parent=11 // pred_region
        _
      $region16: #{net_forward.5} parent=11 // pred_fallthru
        _
      // Predicated region
      $region17: #{net_forward.5} parent=11 // pred_check
        %p149 = pneg %p79
      $region18: #{net_forward.5} parent=11 // pred_check_branch
        %151 = sbr.rel (%p149) target = $region20
      $region19: #{net_forward.5} parent=11 // pred_region
        _
      $region20: #{net_forward.5} parent=11 // pred_fallthru
        _
    $region12: #{net_forward.5} parent=5 // pred_fallthru
      _
    %p152 = scmp.lt.s32.totalorder %s11, 2
    // Predicated region
    $region21: #{net_forward.5} parent=5 // pred_check
      %p153 = pneg %p152
    $region22: #{net_forward.5} parent=5 // pred_check_branch
      %155 = sbr.rel (%p153) target = $region24
    $region23: #{net_forward.5} parent=5 // pred_region
      // Predicated region
      $region25: #{net_forward.5} parent=23 // pred_check
        %p156 = pneg %p31
      $region26: #{net_forward.5} parent=23 // pred_check_branch
        %158 = sbr.rel (%p156) target = $region28
      $region27: #{net_forward.5} parent=23 // pred_region
        %s159 = smul.u32 18, %s11
        %p160 = scmp.lt.s32.totalorder %s159, 35
        %s161 = scalar_select %p160, %s159, 35
        %s162 = smul.addr %s161, 4
        %s163 = scalar_lea.vmem %s0, %s162
        %s164 = smul.u32 18, %s11
      $region28: #{net_forward.5} parent=23 // pred_fallthru
        _
    $region24: #{net_forward.5} parent=5 // pred_fallthru
      _
    %p165 = scmp.le.s32.totalorder 1, %s11
    %p166 = scmp.lt.s32.totalorder %s11, 3
    %p167 = pnand %p165, %p166
    %p168 = pneg %p167
    // Predicated region
    $region29: #{net_forward.5} parent=5 // pred_check
      _
    $region30: #{net_forward.5} parent=5 // pred_check_branch
      %170 = sbr.rel (%p167) target = $region32
    $region31: #{net_forward.5} parent=5 // pred_region
      %s171 = ssub.s32 %s11, 1
      %s172 = smul.u32 18, %s16
      %p173 = scmp.lt.s32.totalorder %s172, 35
      %s174 = scalar_select %p173, %s172, 35
      %s175 = smul.addr %s174, 4
      %s176 = scalar_lea.vmem %s0, %s175
      %p177 = pneg %p37
      %p178 = pneg %p34
      %p179 = pneg %p58
      %p180 = pneg %p55
      %p181 = pneg %p79
      %p182 = pneg %p76
      %p183 = pneg %p105
      %p184 = pneg %p102
      %s185 = smul.u32 18, %s16
      %p186 = scmp.lt.s32.totalorder %s185, 35
      %s187 = scalar_select %p186, %s185, 35
      %s188 = smul.addr %s187, 4
      %s189 = scalar_lea.vmem %s3, %s188
      %p190 = pneg %p131
      %p191 = pneg %p128
      %p192 = scmp.lt.s32.totalorder %s16, 1
      %s193 = scalar_select %p192, %s16, 1
      %s194 = smul.addr %s193, 2
      %s195 = scalar_lea.vmem %s4, %s194
      %s196 = smul.u32 18, %s16
      %p197 = scmp.lt.s32.totalorder %s196, 35
      %s198 = scalar_select %p197, %s196, 35
      %s199 = smul.addr %s198, 4
      %s200 = scalar_lea.vmem %s0, %s199
      %s201 = smul.u32 18, %s16
      %s202 = smul.u32 18, %s16
      %p203 = scmp.lt.s32.totalorder %s202, 35
      %s204 = scalar_select %p203, %s202, 35
      %s205 = smul.addr %s204, 4
      %s206 = scalar_lea.vmem %s3, %s205
      %s207 = smul.u32 18, %s16
      %p208 = scmp.lt.s32.totalorder %s16, 1
      %s209 = scalar_select %p208, %s16, 1
      %s210 = smul.addr %s209, 2
      %s211 = scalar_lea.vmem %s4, %s210
      %v213 = vld [vmem:[%s200] sm:$0xf]
      %v214 = vld [vmem:[%s200 + $0x4] sm:$0xf]
      %v215 = vld [vmem:[%s200 + $0x8] sm:$0xf]
      %v216 = vld [vmem:[%s200 + $0xc] sm:$0xf]
      %v217 = vld [vmem:[%s200 + $0x10] sm:$0xf]
      %v218 = vld [vmem:[%s200 + $0x14] sm:$0xf]
      %v219 = vld [vmem:[%s200 + $0x18] sm:$0xf]
      %v220 = vld [vmem:[%s200 + $0x1c] sm:$0xf]
      %v221 = vld [vmem:[%s200 + $0x20] sm:$0xf]
      %v222 = vld [vmem:[%s200 + $0x24] sm:$0xf]
      %v223 = vld [vmem:[%s200 + $0x28] sm:$0xf]
      %v224 = vld [vmem:[%s200 + $0x2c] sm:$0xf]
      %v225 = vld [vmem:[%s200 + $0x30] sm:$0xf]
      %v226 = vld [vmem:[%s200 + $0x34] sm:$0xf]
      %v227 = vld [vmem:[%s200 + $0x38] sm:$0xf]
      %v228 = vld [vmem:[%s200 + $0x3c] sm:$0xf]
      %v229 = vld [vmem:[%s200 + $0x40] sm:$0xf]
      %v230 = vld [vmem:[%s200 + $0x44] sm:$0xf]
      %v231 = vld [vmem:[%s1] sm:$0xf]
      %v232 = vld [vmem:[%s1 + $0x4] sm:$0xf]
      %v233 = vld [vmem:[%s1 + $0x8] sm:$0xf]
      %v234 = vld [vmem:[%s1 + $0xc] sm:$0xf]
      %v235 = vld [vmem:[%s1 + $0x10] sm:$0xf]
      %v236 = vld [vmem:[%s1 + $0x14] sm:$0xf]
      %v237 = vld [vmem:[%s1 + $0x18] sm:$0xf]
      %v238 = vld [vmem:[%s1 + $0x1c] sm:$0xf]
      %v239 = vld [vmem:[%s2] sm:$0x1]
      %v241 = vlaneseq
      %v242 = vshrl.u32 %v241, 7
      %v243 = vsub.s32 0, %v242
      %v244 = vrot.slane %v239, %v243
      %v264 = vunpack.c.l.b16 %v213
      %v265 = vunpack.c.l.b16 %v214
      %v266 = vunpack.c.l.b16 %v215
      %v267 = vunpack.c.l.b16 %v216
      %v268 = vunpack.c.l.b16 %v217
      %v269 = vunpack.c.l.b16 %v218
      %v270 = vunpack.c.l.b16 %v219
      %v271 = vunpack.c.l.b16 %v220
      %v272 = vunpack.c.l.b16 %v221
      %v273 = vunpack.c.l.b16 %v222
      %v274 = vunpack.c.l.b16 %v223
      %v275 = vunpack.c.l.b16 %v224
      %v276 = vunpack.c.l.b16 %v225
      %v277 = vunpack.c.l.b16 %v226
      %v278 = vunpack.c.l.b16 %v227
      %v279 = vunpack.c.l.b16 %v228
      %v280 = vunpack.c.l.b16 %v229
      %v281 = vunpack.c.l.b16 %v230
      %v282 = vpack.c.b16 %v265, %v264
      %v283 = vpack.c.b16 %v267, %v266
      %v284 = vpack.c.b16 %v269, %v268
      %v285 = vpack.c.b16 %v271, %v270
      %v286 = vpack.c.b16 %v273, %v272
      %v287 = vpack.c.b16 %v275, %v274
      %v288 = vpack.c.b16 %v277, %v276
      %v289 = vpack.c.b16 %v279, %v278
      %v290 = vpack.c.b16 %v281, %v280
      %v299 = vunpack.c.l.b16 %v231
      %v300 = vunpack.c.l.b16 %v232
      %v301 = vunpack.c.l.b16 %v233
      %v302 = vunpack.c.l.b16 %v234
      %v303 = vunpack.c.l.b16 %v235
      %v304 = vunpack.c.l.b16 %v236
      %v305 = vunpack.c.l.b16 %v237
      %v306 = vunpack.c.l.b16 %v238
      %v307 = vpack.c.b16 %v300, %v299
      %v308 = vpack.c.b16 %v302, %v301
      %v309 = vpack.c.b16 %v304, %v303
      %v310 = vpack.c.b16 %v306, %v305
      %vm315 = vcmask 523264
      %v317 = vsel %vm315, %v282, 0
      %v320 = vsel %vm315, %v283, 0
      %v323 = vsel %vm315, %v284, 0
      %v326 = vsel %vm315, %v285, 0
      %v329 = vsel %vm315, %v286, 0
      %v332 = vsel %vm315, %v287, 0
      %v335 = vsel %vm315, %v288, 0
      %v338 = vsel %vm315, %v289, 0
      %v341 = vsel %vm315, %v290, 0
      %343 = vmatprep.subr.bf16.mxu0 0
      %344 = vmatpush1.bf16.msra.mxu0 %v307
      %345 = vmatprep.subr.bf16.mxu0 0
      %346 = vmatpush1.bf16.msra.mxu0 %v308
      %347 = vmatprep.subr.bf16.mxu0 0
      %348 = vmatpush1.bf16.msra.mxu0 %v309
      %349 = vmatprep.subr.bf16.mxu0 0
      %350 = vmatpush1.bf16.msra.mxu0 %v310
      %351 = vmatprep.subr.bf16.mxu0 0
      %352 = vmatpush1.bf16.msra.mxu0 0
      %353 = vmatprep.subr.bf16.mxu0 0
      %354 = vmatpush1.bf16.msra.mxu0 0
      %355 = vmatprep.subr.bf16.mxu0 0
      %356 = vmatpush1.bf16.msra.mxu0 0
      %357 = vmatprep.subr.bf16.mxu0 0
      %358 = vmatpush1.bf16.msra.mxu0 0
      %359 = vmatprep.subr.bf16.mxu0 0
      %360 = vmatpush1.bf16.msra.mxu0 0
      %361 = vmatprep.subr.bf16.mxu0 0
      %362 = vmatpush1.bf16.msra.mxu0 0
      %363 = vmatprep.subr.bf16.mxu0 0
      %364 = vmatpush1.bf16.msra.mxu0 0
      %365 = vmatprep.subr.bf16.mxu0 0
      %366 = vmatpush1.bf16.msra.mxu0 0
      %367 = vmatprep.subr.bf16.mxu0 0
      %368 = vmatpush1.bf16.msra.mxu0 0
      %369 = vmatprep.subr.bf16.mxu0 0
      %370 = vmatpush1.bf16.msra.mxu0 0
      %371 = vmatprep.subr.bf16.mxu0 0
      %372 = vmatpush1.bf16.msra.mxu0 0
      %373 = vmatprep.subr.bf16.mxu0 0
      %374 = vmatpush1.bf16.msra.mxu0 0
      %375 = vmatprep.mubr.bf16.mxu0 0
      %376 = vmatmul.mubr.bf16.gmra.mrb[0].mxu0 %v317
      %v377 = vpop.f32.mrb[0].mxu0
      %v378 = vadd.f32 %v244, %v377
      %v379 = vpop.f32.mrb[0].mxu0
      %v380 = vpop.f32.mrb[0].mxu0
      %v381 = vadd.f32 %v244, %v380
      %v382 = vpop.f32.mrb[0].mxu0
      %383 = vmatprep.mubr.bf16.mxu0 0
      %384 = vmatmul.mubr.bf16.gmra.mrb[0].mxu0 %v320
      %v385 = vpop.f32.mrb[0].mxu0
      %v386 = vadd.f32 %v244, %v385
      %v387 = vpop.f32.mrb[0].mxu0
      %v388 = vpop.f32.mrb[0].mxu0
      %v389 = vadd.f32 %v244, %v388
      %v390 = vpop.f32.mrb[0].mxu0
      %391 = vmatprep.mubr.bf16.mxu0 0
      %392 = vmatmul.mubr.bf16.gmra.mrb[0].mxu0 %v323
      %v393 = vpop.f32.mrb[0].mxu0
      %v394 = vadd.f32 %v244, %v393
      %v395 = vpop.f32.mrb[0].mxu0
      %v396 = vpop.f32.mrb[0].mxu0
      %v397 = vadd.f32 %v244, %v396
      %v398 = vpop.f32.mrb[0].mxu0
      %399 = vmatprep.mubr.bf16.mxu0 0
      %400 = vmatmul.mubr.bf16.gmra.mrb[0].mxu0 %v326
      %v401 = vpop.f32.mrb[0].mxu0
      %v402 = vadd.f32 %v244, %v401
      %v403 = vpop.f32.mrb[0].mxu0
      %v404 = vpop.f32.mrb[0].mxu0
      %v405 = vadd.f32 %v244, %v404
      %v406 = vpop.f32.mrb[0].mxu0
      %407 = vmatprep.mubr.bf16.mxu0 0
      %408 = vmatmul.mubr.bf16.gmra.mrb[0].mxu0 %v329
      %v409 = vpop.f32.mrb[0].mxu0
      %v410 = vadd.f32 %v244, %v409
      %v411 = vpop.f32.mrb[0].mxu0
      %v412 = vpop.f32.mrb[0].mxu0
      %v413 = vadd.f32 %v244, %v412
      %v414 = vpop.f32.mrb[0].mxu0
      %415 = vmatprep.mubr.bf16.mxu0 0
      %416 = vmatmul.mubr.bf16.gmra.mrb[0].mxu0 %v332
      %v417 = vpop.f32.mrb[0].mxu0
      %v418 = vadd.f32 %v244, %v417
      %v419 = vpop.f32.mrb[0].mxu0
      %v420 = vpop.f32.mrb[0].mxu0
      %v421 = vadd.f32 %v244, %v420
      %v422 = vpop.f32.mrb[0].mxu0
      %423 = vmatprep.mubr.bf16.mxu0 0
      %424 = vmatmul.mubr.bf16.gmra.mrb[0].mxu0 %v335
      %v425 = vpop.f32.mrb[0].mxu0
      %v426 = vadd.f32 %v244, %v425
      %v427 = vpop.f32.mrb[0].mxu0
      %v428 = vpop.f32.mrb[0].mxu0
      %v429 = vadd.f32 %v244, %v428
      %v430 = vpop.f32.mrb[0].mxu0
      %431 = vmatprep.mubr.bf16.mxu0 0
      %432 = vmatmul.mubr.bf16.gmra.mrb[0].mxu0 %v338
      %v433 = vpop.f32.mrb[0].mxu0
      %v434 = vadd.f32 %v244, %v433
      %v435 = vpop.f32.mrb[0].mxu0
      %v436 = vpop.f32.mrb[0].mxu0
      %v437 = vadd.f32 %v244, %v436
      %v438 = vpop.f32.mrb[0].mxu0
      %439 = vmatprep.mubr.bf16.mxu0 0
      %440 = vmatmul.mubr.bf16.gmra.mrb[0].mxu0 %v341
      %v441 = vpop.f32.mrb[0].mxu0
      %v442 = vadd.f32 %v244, %v441
      %v443 = vpop.f32.mrb[0].mxu0
      %v444 = vpop.f32.mrb[0].mxu0
      %v445 = vadd.f32 %v244, %v444
      %v446 = vpop.f32.mrb[0].mxu0
      %447 = vdwg.mxu0
      %v448 = vmax.f32 %v378, 0.0
      %v449 = vmax.f32 %v381, 0.0
      %v450 = vmax.f32 %v386, 0.0
      %v451 = vmax.f32 %v389, 0.0
      %v452 = vmax.f32 %v394, 0.0
      %v453 = vmax.f32 %v397, 0.0
      %v454 = vmax.f32 %v402, 0.0
      %v455 = vmax.f32 %v405, 0.0
      %v456 = vmax.f32 %v410, 0.0
      %v457 = vmax.f32 %v413, 0.0
      %v458 = vmax.f32 %v418, 0.0
      %v459 = vmax.f32 %v421, 0.0
      %v460 = vmax.f32 %v426, 0.0
      %v461 = vmax.f32 %v429, 0.0
      %v462 = vmax.f32 %v434, 0.0
      %v463 = vmax.f32 %v437, 0.0
      %v464 = vmax.f32 %v442, 0.0
      %v465 = vmax.f32 %v445, 0.0
      %v466 = vpack.c.bf16 %v449, %v448
      %v467 = vpack.c.bf16 %v451, %v450
      %v468 = vpack.c.bf16 %v453, %v452
      %v469 = vpack.c.bf16 %v455, %v454
      %v470 = vpack.c.bf16 %v457, %v456
      %v471 = vpack.c.bf16 %v459, %v458
      %v472 = vpack.c.bf16 %v461, %v460
      %v473 = vpack.c.bf16 %v463, %v462
      %v474 = vpack.c.bf16 %v465, %v464
      %v484 = vunpack.c.l.b16 %v466
      %v485 = vunpack.c.h.b16 %v466
      %v486 = vunpack.c.l.b16 %v467
      %v487 = vunpack.c.h.b16 %v467
      %v488 = vunpack.c.l.b16 %v468
      %v489 = vunpack.c.h.b16 %v468
      %v490 = vunpack.c.l.b16 %v469
      %v491 = vunpack.c.h.b16 %v469
      %v492 = vunpack.c.l.b16 %v470
      %v493 = vunpack.c.h.b16 %v470
      %v494 = vunpack.c.l.b16 %v471
      %v495 = vunpack.c.h.b16 %v471
      %v496 = vunpack.c.l.b16 %v472
      %v497 = vunpack.c.h.b16 %v472
      %v498 = vunpack.c.l.b16 %v473
      %v499 = vunpack.c.h.b16 %v473
      %v500 = vunpack.c.l.b16 %v474
      %v501 = vunpack.c.h.b16 %v474
      %v502 = vpack.c.b16 %v484, %v484
      %v503 = vpack.c.b16 %v485, %v485
      %v504 = vpack.c.b16 %v486, %v486
      %v505 = vpack.c.b16 %v487, %v487
      %v506 = vpack.c.b16 %v488, %v488
      %v507 = vpack.c.b16 %v489, %v489
      %v508 = vpack.c.b16 %v490, %v490
      %v509 = vpack.c.b16 %v491, %v491
      %v510 = vpack.c.b16 %v492, %v492
      %v511 = vpack.c.b16 %v493, %v493
      %v512 = vpack.c.b16 %v494, %v494
      %v513 = vpack.c.b16 %v495, %v495
      %v514 = vpack.c.b16 %v496, %v496
      %v515 = vpack.c.b16 %v497, %v497
      %v516 = vpack.c.b16 %v498, %v498
      %v517 = vpack.c.b16 %v499, %v499
      %v518 = vpack.c.b16 %v500, %v500
      %v519 = vpack.c.b16 %v501, %v501
      %538 = vst [vmem:[%s206] sm:$0xf] %v502
      %539 = vst [vmem:[%s206 + $0x4] sm:$0xf] %v503
      %540 = vst [vmem:[%s206 + $0x8] sm:$0xf] %v504
      %541 = vst [vmem:[%s206 + $0xc] sm:$0xf] %v505
      %542 = vst [vmem:[%s206 + $0x10] sm:$0xf] %v506
      %543 = vst [vmem:[%s206 + $0x14] sm:$0xf] %v507
      %544 = vst [vmem:[%s206 + $0x18] sm:$0xf] %v508
      %545 = vst [vmem:[%s206 + $0x1c] sm:$0xf] %v509
      %546 = vst [vmem:[%s206 + $0x20] sm:$0xf] %v510
      %547 = vst [vmem:[%s206 + $0x24] sm:$0xf] %v511
      %548 = vst [vmem:[%s206 + $0x28] sm:$0xf] %v512
      %549 = vst [vmem:[%s206 + $0x2c] sm:$0xf] %v513
      %550 = vst [vmem:[%s206 + $0x30] sm:$0xf] %v514
      %551 = vst [vmem:[%s206 + $0x34] sm:$0xf] %v515
      %552 = vst [vmem:[%s206 + $0x38] sm:$0xf] %v516
      %553 = vst [vmem:[%s206 + $0x3c] sm:$0xf] %v517
      %554 = vst [vmem:[%s206 + $0x40] sm:$0xf] %v518
      %555 = vst [vmem:[%s206 + $0x44] sm:$0xf] %v519
      %v556 = vlaneseq
      %v557 = vshrl.u32 %v556, 7
      %v558 = vadd.s32 %v557, 8
      %v559 = vadd.s32 %v557, 16
      %v560 = vadd.s32 %v557, 24
      %v561 = vadd.s32 %v557, 32
      %v562 = vadd.s32 %v557, 40
      %v563 = vadd.s32 %v557, 48
      %v564 = vadd.s32 %v557, 56
      %v565 = vadd.s32 %v557, 64
      %v566 = vadd.s32 %v557, 72
      %v567 = vadd.s32 %v557, 80
      %v568 = vadd.s32 %v557, 88
      %v569 = vadd.s32 %v557, 96
      %v570 = vadd.s32 %v557, 104
      %v571 = vadd.s32 %v557, 112
      %v572 = vadd.s32 %v557, 120
      %v573 = vadd.s32 %v557, 128
      %v574 = vadd.s32 %v557, 136
      %s575 = smul.u32 %s16, 144
      %v576 = vstv %s575
      %v577 = vadd.s32 %v557, %v576
      %v578 = vadd.s32 %v558, %v576
      %v579 = vadd.s32 %v559, %v576
      %v580 = vadd.s32 %v560, %v576
      %v581 = vadd.s32 %v561, %v576
      %v582 = vadd.s32 %v562, %v576
      %v583 = vadd.s32 %v563, %v576
      %v584 = vadd.s32 %v564, %v576
      %v585 = vadd.s32 %v565, %v576
      %v586 = vadd.s32 %v566, %v576
      %v587 = vadd.s32 %v567, %v576
      %v588 = vadd.s32 %v568, %v576
      %v589 = vadd.s32 %v569, %v576
      %v590 = vadd.s32 %v570, %v576
      %v591 = vadd.s32 %v571, %v576
      %v592 = vadd.s32 %v572, %v576
      %v593 = vadd.s32 %v573, %v576
      %v594 = vadd.s32 %v574, %v576
      %vm595 = vcmp.lt.s32.totalorder %v577, 288
      %vm596 = vcmp.lt.s32.totalorder %v578, 288
      %vm597 = vcmp.lt.s32.totalorder %v579, 288
      %vm598 = vcmp.lt.s32.totalorder %v580, 288
      %vm599 = vcmp.lt.s32.totalorder %v581, 288
      %vm600 = vcmp.lt.s32.totalorder %v582, 288
      %vm601 = vcmp.lt.s32.totalorder %v583, 288
      %vm602 = vcmp.lt.s32.totalorder %v584, 288
      %vm603 = vcmp.lt.s32.totalorder %v585, 288
      %vm604 = vcmp.lt.s32.totalorder %v586, 288
      %vm605 = vcmp.lt.s32.totalorder %v587, 288
      %vm606 = vcmp.lt.s32.totalorder %v588, 288
      %vm607 = vcmp.lt.s32.totalorder %v589, 288
      %vm608 = vcmp.lt.s32.totalorder %v590, 288
      %vm609 = vcmp.lt.s32.totalorder %v591, 288
      %vm610 = vcmp.lt.s32.totalorder %v592, 288
      %vm611 = vcmp.lt.s32.totalorder %v593, 288
      %vm612 = vcmp.lt.s32.totalorder %v594, 288
      %v613 = vsel %vm595, 1, 0
      %v614 = vsel %vm596, 1, 0
      %v615 = vsel %vm597, 1, 0
      %v616 = vsel %vm598, 1, 0
      %v617 = vsel %vm599, 1, 0
      %v618 = vsel %vm600, 1, 0
      %v619 = vsel %vm601, 1, 0
      %v620 = vsel %vm602, 1, 0
      %v621 = vsel %vm603, 1, 0
      %v622 = vsel %vm604, 1, 0
      %v623 = vsel %vm605, 1, 0
      %v624 = vsel %vm606, 1, 0
      %v625 = vsel %vm607, 1, 0
      %v626 = vsel %vm608, 1, 0
      %v627 = vsel %vm609, 1, 0
      %v628 = vsel %vm610, 1, 0
      %v629 = vsel %vm611, 1, 0
      %v630 = vsel %vm612, 1, 0
      %v631 = vcvt.s32.f32 %v613
      %v632 = vcvt.s32.f32 %v614
      %v633 = vcvt.s32.f32 %v615
      %v634 = vcvt.s32.f32 %v616
      %v635 = vcvt.s32.f32 %v617
      %v636 = vcvt.s32.f32 %v618
      %v637 = vcvt.s32.f32 %v619
      %v638 = vcvt.s32.f32 %v620
      %v639 = vcvt.s32.f32 %v621
      %v640 = vcvt.s32.f32 %v622
      %v641 = vcvt.s32.f32 %v623
      %v642 = vcvt.s32.f32 %v624
      %v643 = vcvt.s32.f32 %v625
      %v644 = vcvt.s32.f32 %v626
      %v645 = vcvt.s32.f32 %v627
      %v646 = vcvt.s32.f32 %v628
      %v647 = vcvt.s32.f32 %v629
      %v648 = vcvt.s32.f32 %v630
      %v649 = vmul.f32 %v448, %v631
      %v650 = vmul.f32 %v449, %v632
      %v651 = vmul.f32 %v450, %v633
      %v652 = vmul.f32 %v451, %v634
      %v653 = vmul.f32 %v452, %v635
      %v654 = vmul.f32 %v453, %v636
      %v655 = vmul.f32 %v454, %v637
      %v656 = vmul.f32 %v455, %v638
      %v657 = vmul.f32 %v456, %v639
      %v658 = vmul.f32 %v457, %v640
      %v659 = vmul.f32 %v458, %v641
      %v660 = vmul.f32 %v459, %v642
      %v661 = vmul.f32 %v460, %v643
      %v662 = vmul.f32 %v461, %v644
      %v663 = vmul.f32 %v462, %v645
      %v664 = vmul.f32 %v463, %v646
      %v665 = vmul.f32 %v464, %v647
      %v666 = vmul.f32 %v465, %v648
      %v667 = vadd.f32 %v649, %v650
      %v668 = vadd.f32 %v667, %v651
      %v669 = vadd.f32 %v668, %v652
      %v670 = vadd.f32 %v669, %v653
      %v671 = vadd.f32 %v670, %v654
      %v672 = vadd.f32 %v671, %v655
      %v673 = vadd.f32 %v672, %v656
      %v674 = vadd.f32 %v673, %v657
      %v675 = vadd.f32 %v674, %v658
      %v676 = vadd.f32 %v675, %v659
      %v677 = vadd.f32 %v676, %v660
      %v678 = vadd.f32 %v677, %v661
      %v679 = vadd.f32 %v678, %v662
      %v680 = vadd.f32 %v679, %v663
      %v681 = vadd.f32 %v680, %v664
      %v682 = vadd.f32 %v681, %v665
      %v683 = vadd.f32 %v682, %v666
      %v684 = vrot.slane %v683, 4
      %v685 = vadd.f32 %v683, %v684
      %v686 = vrot.slane %v685, 2
      %v687 = vadd.f32 %v685, %v686
      %v688 = vrot.slane %v687, 1
      %v689 = vadd.f32 %v687, %v688
      %690 = vst [vmem:[%s211] sm:$0x1] %v689
      %v691 = vmul.f32 %v649, %v448
      %v692 = vmul.f32 %v650, %v449
      %v693 = vmul.f32 %v651, %v450
      %v694 = vmul.f32 %v652, %v451
      %v695 = vmul.f32 %v653, %v452
      %v696 = vmul.f32 %v654, %v453
      %v697 = vmul.f32 %v655, %v454
      %v698 = vmul.f32 %v656, %v455
      %v699 = vmul.f32 %v657, %v456
      %v700 = vmul.f32 %v658, %v457
      %v701 = vmul.f32 %v659, %v458
      %v702 = vmul.f32 %v660, %v459
      %v703 = vmul.f32 %v661, %v460
      %v704 = vmul.f32 %v662, %v461
      %v705 = vmul.f32 %v663, %v462
      %v706 = vmul.f32 %v664, %v463
      %v707 = vmul.f32 %v665, %v464
      %v708 = vmul.f32 %v666, %v465
      %v709 = vadd.f32 %v691, %v692
      %v710 = vadd.f32 %v709, %v693
      %v711 = vadd.f32 %v710, %v694
      %v712 = vadd.f32 %v711, %v695
      %v713 = vadd.f32 %v712, %v696
      %v714 = vadd.f32 %v713, %v697
      %v715 = vadd.f32 %v714, %v698
      %v716 = vadd.f32 %v715, %v699
      %v717 = vadd.f32 %v716, %v700
      %v718 = vadd.f32 %v717, %v701
      %v719 = vadd.f32 %v718, %v702
      %v720 = vadd.f32 %v719, %v703
      %v721 = vadd.f32 %v720, %v704
      %v722 = vadd.f32 %v721, %v705
      %v723 = vadd.f32 %v722, %v706
      %v724 = vadd.f32 %v723, %v707
      %v725 = vadd.f32 %v724, %v708
      %v726 = vrot.slane %v725, 4
      %v727 = vadd.f32 %v725, %v726
      %v728 = vrot.slane %v727, 2
      %v729 = vadd.f32 %v727, %v728
      %v730 = vrot.slane %v729, 1
      %v731 = vadd.f32 %v729, %v730
      %732 = vst [vmem:[%s211 + $0x1] sm:$0x1] %v731
      %s733 = smul.u32 18, %s16
      %p734 = scmp.lt.s32.totalorder %s733, 35
      %s735 = scalar_select %p734, %s733, 35
      %s736 = smul.addr %s735, 4
      %s737 = scalar_lea.vmem %s3, %s736
      %p738 = scmp.lt.s32.totalorder %s16, 1
      %s739 = scalar_select %p738, %s16, 1
      %s740 = smul.addr %s739, 2
      %s741 = scalar_lea.vmem %s4, %s740
      // Predicated region
      $region33: #{net_forward.5} parent=31 // pred_check
        %p742 = pneg %p102
      $region34: #{net_forward.5} parent=31 // pred_check_branch
        %744 = sbr.rel (%p742) target = $region36
      $region35: #{net_forward.5} parent=31 // pred_region
        %s745 = smul.u32 18, %s16
      $region36: #{net_forward.5} parent=31 // pred_fallthru
        _
      // Predicated region
      $region37: #{net_forward.5} parent=31 // pred_check
        %p746 = pneg %p128
      $region38: #{net_forward.5} parent=31 // pred_check_branch
        %748 = sbr.rel (%p746) target = $region40
      $region39: #{net_forward.5} parent=31 // pred_region
        _
      $region40: #{net_forward.5} parent=31 // pred_fallthru
        _
    $region32: #{net_forward.5} parent=5 // pred_fallthru
      _
    %p749 = scmp.le.s32.totalorder 2, %s11
    // Predicated region
    $region41: #{net_forward.5} parent=5 // pred_check
      %p750 = pneg %p749
    $region42: #{net_forward.5} parent=5 // pred_check_branch
      %752 = sbr.rel (%p750) target = $region44
    $region43: #{net_forward.5} parent=5 // pred_region
      %s753 = ssub.s32 %s11, 2
      // Predicated region
      $region45: #{net_forward.5} parent=43 // pred_check
        %p754 = pneg %p108
      $region46: #{net_forward.5} parent=43 // pred_check_branch
        %756 = sbr.rel (%p754) target = $region48
      $region47: #{net_forward.5} parent=43 // pred_region
        %s757 = smul.u32 18, %s17
        %p758 = scmp.lt.s32.totalorder %s757, 35
        %s759 = scalar_select %p758, %s757, 35
        %s760 = smul.addr %s759, 4
        %s761 = scalar_lea.vmem %s3, %s760
      $region48: #{net_forward.5} parent=43 // pred_fallthru
        _
      // Predicated region
      $region49: #{net_forward.5} parent=43 // pred_check
        %p762 = pneg %p134
      $region50: #{net_forward.5} parent=43 // pred_check_branch
        %764 = sbr.rel (%p762) target = $region52
      $region51: #{net_forward.5} parent=43 // pred_region
        %p765 = scmp.lt.s32.totalorder %s17, 1
        %s766 = scalar_select %p765, %s17, 1
        %s767 = smul.addr %s766, 2
        %s768 = scalar_lea.vmem %s4, %s767
      $region52: #{net_forward.5} parent=43 // pred_fallthru
        _
    $region44: #{net_forward.5} parent=5 // pred_fallthru
      _
  $region6: #{net_forward.5} parent=0 // loop_footer
    %s15 = sadd.s32 1, %s11
  $region7: #{net_forward.5} parent=0 // loop_footer_branch
    %10 = sbr.rel target = $region3
  $region8: #{net_forward.5} parent=0 // loop_exit
    _

// kernel: tile.37
$region0: #{tile.37}
  #allocation0 [shape = 's32[1]{0}', space=sflag, size = 0x4, scoped, tag = 'scoped memory for tile.37']
  %s0 = inlined_call_operand.vmem [shape: f32[8], index: 0, kind: input, shape index: {}]
  %s1 = inlined_call_operand.vmem [shape: f32[4,8], index: 1, kind: output, shape index: {}]
  // Predicated region
  $region2: #{tile.37} parent=0 // pred_check
    _
  $region3: #{tile.37} parent=0 // pred_check_branch
    %3 = sbr.rel (0) target = $region5
  $region4: #{tile.37} parent=0 // pred_region
    _
  $region5: #{tile.37} parent=0 // pred_fallthru
    _
  %v4 = vld [vmem:[%s0] ss:$0 sm:$0xff]
  %5 = vst [vmem:[%s1] sm:$0xf] %v4

// kernel: tile.38
$region0: #{tile.38}
  %s0 = inlined_call_operand.vmem [shape: f32[4,8], index: 0, kind: input, shape index: {}]
  %s1 = inlined_call_operand.vmem [shape: f32[32], index: 1, kind: output, shape index: {}]
  $region1: #{tile.38} parent=0
    #allocation0 [shape = 'u8[4096]{0}', space=vmem, size = 0x1000, scoped, tag = 'scoped mem for output reshape']
    #allocation1 [shape = 'u8[4096]{0}', space=vmem, size = 0x1000, scoped, tag = 'scoped mem for input reshape']
    %s3 = sshllo.u32 0, 4
    %v4 = vld [vmem:[%s0] sm:%s3]
    %5 = vst [vmem:[#allocation1] sm:%s3] %v4
    %v6 = vld [vmem:[#allocation1] sm:$0x1]
    %vm7 = vcmask 64512
    %8 = vst.msk [vmem:[#allocation0] sm:$0x1] %vm7, %v6
    %s9 = scalar_lea.vmem [#allocation1], 3
    %v10 = vld [vmem:[%s9] sm:$0x1]
    %11 = vrot.lane.b32.xlu0 %v10, 24
    %v12 = vpop.permute.xlu0 %11
    %vm13 = vcmask 261312
    %14 = vst.msk [vmem:[#allocation0] sm:$0x1] %vm13, %v12
    %s15 = scalar_lea.vmem [#allocation1], 2
    %v16 = vld [vmem:[%s15] sm:$0x1]
    %17 = vrot.lane.b32.xlu0 %v16, 16
    %v18 = vpop.permute.xlu0 %17
    %vm19 = vcmask 195712
    %20 = vst.msk [vmem:[#allocation0] sm:$0x1] %vm19, %v18
    %s21 = scalar_lea.vmem [#allocation1], 1
    %v22 = vld [vmem:[%s21] sm:$0x1]
    %23 = vrot.lane.b32.xlu0 %v22, 8
    %v24 = vpop.permute.xlu0 %23
    %vm25 = vcmask 130112
    %26 = vst.msk [vmem:[#allocation0] sm:$0x1] %vm25, %v24
    %s28 = sshllo.u32 0, 1
    %v30 = vld [vmem:[#allocation0] sm:%s28]
    %s31 = sshllo.u32 0, 1
    %32 = vst [vmem:[%s1] sm:%s31] %v30

// kernel: net_forward.6
$region0: #{net_forward.6}
  #allocation0 [shape = 'u32[]', space=smem, size = 0x4, offset = 0x4, fixed_abs, tag = 'smem constant byte address 0x4 - core index']
  #allocation1 [shape = 'u32[144,128]{1,0:T(1,128)}', space=vmem, size = 0x12000, scoped, tag = 'internal scratch']
  %s0 = inlined_call_operand.vmem [shape: bf16[64,32], index: 0, kind: input, shape index: {}]
  %s1 = inlined_call_operand.vmem [shape: bf16[32,128], index: 1, kind: input, shape index: {}]
  %s2 = inlined_call_operand.vmem [shape: f32[1,128], index: 2, kind: input, shape index: {}]
  %s3 = inlined_call_operand.vmem [shape: bf16[64,128], index: 3, kind: output, shape index: {0}]
  %s4 = inlined_call_operand.vmem [shape: f32[2,2,128], index: 4, kind: output, shape index: {1}]
  %5 = xla_tuple %s3, %s4
  %s6 = sld [smem:[#allocation0]]
  $region53: #{net_forward.6} parent=0
    _
  %s8 = ssub.s32 1, %s6
  %s9 = scalar_select 0, %s8, %s6
  loop: start=0, step=1, limit=4
  $region2: #{net_forward.6} parent=0 // loop_pre_header
    _
  $region3: #{net_forward.6} parent=0 // loop_header
    %s11 = sphi 0, %s15
    %p12 = scmp.ge.s32.totalorder %s11, 4
    %s21 = sphi 0, %s23
    %s24 = sphi 0, %s21
    %s25 = sphi 0, %s24
    %s41 = sphi 0, %s25
    %s45 = sphi 0, %s45
    %s47 = sphi 0, %s45
    %s48 = sphi 0, %s47
    %s62 = sphi 0, %s48
    %s66 = sphi 0, %s66
    %s68 = sphi 0, %s66
    %s69 = sphi 0, %s68
    %s83 = sphi 0, %s69
    %s89 = sphi 0, %s91
    %s92 = sphi 0, %s89
    %s93 = sphi 0, %s92
    %s109 = sphi 0, %s93
    %s115 = sphi 0, %s117
    %s118 = sphi 0, %s115
    %s119 = sphi 0, %s118
    %s135 = sphi 0, %s119
  $region4: #{net_forward.6} parent=0 // loop_header_branch
    %14 = sbr.rel (%p12) target = $region8
  $region5: #{net_forward.6} parent=0 // loop_body
    %s16 = ssub.s32 %s11, 1
    %s17 = ssub.s32 %s11, 2
    %s18 = sadd.s32 %s11, 1
    %s19 = ssub.s32 %s11, %s18
    %p20 = scmp.eq.s32.totalorder %s19, 0
    %s22 = sadd.s32 %s21, 1
    %s23 = scalar_select %p20, %s21, %s22
    %p26 = pneg %p20
    %p27 = scmp.eq.s32.totalorder %s11, 1
    %p28 = por %p26, %p27
    %p29 = scmp.ne.s32.totalorder %s21, %s24
    %p30 = scmp.eq.s32.totalorder %s11, 0
    %p31 = por %p29, %p30
    %p32 = scmp.ne.s32.totalorder %s21, %s24
    %p33 = scmp.eq.s32.totalorder %s16, 1
    %p34 = por %p32, %p33
    %p35 = scmp.ne.s32.totalorder %s24, %s25
    %p36 = scmp.eq.s32.totalorder %s16, 0
    %p37 = por %p35, %p36
    %p38 = scmp.ne.s32.totalorder %s24, %s25
    %p39 = scmp.eq.s32.totalorder %s17, 1
    %p40 = por %p38, %p39
    %p42 = scmp.ne.s32.totalorder %s25, %s41
    %p43 = scmp.eq.s32.totalorder %s17, 0
    %p44 = por %p42, %p43
    %s46 = sadd.s32 %s45, 1
    %p49 = scmp.eq.s32.totalorder %s11, 1
    %p50 = scmp.ne.s32.totalorder %s45, %s47
    %p51 = scmp.eq.s32.totalorder %s11, 0
    %p52 = por %p50, %p51
    %p53 = scmp.ne.s32.totalorder %s45, %s47
    %p54 = scmp.eq.s32.totalorder %s16, 1
    %p55 = por %p53, %p54
    %p56 = scmp.ne.s32.totalorder %s47, %s48
    %p57 = scmp.eq.s32.totalorder %s16, 0
    %p58 = por %p56, %p57
    %p59 = scmp.ne.s32.totalorder %s47, %s48
    %p60 = scmp.eq.s32.totalorder %s17, 1
    %p61 = por %p59, %p60
    %p63 = scmp.ne.s32.totalorder %s48, %s62
    %p64 = scmp.eq.s32.totalorder %s17, 0
    %p65 = por %p63, %p64
    %s67 = sadd.s32 %s66, 1
    %p70 = scmp.eq.s32.totalorder %s11, 1
    %p71 = scmp.ne.s32.totalorder %s66, %s68
    %p72 = scmp.eq.s32.totalorder %s11, 0
    %p73 = por %p71, %p72
    %p74 = scmp.ne.s32.totalorder %s66, %s68
    %p75 = scmp.eq.s32.totalorder %s16, 1
    %p76 = por %p74, %p75
    %p77 = scmp.ne.s32.totalorder %s68, %s69
    %p78 = scmp.eq.s32.totalorder %s16, 0
    %p79 = por %p77, %p78
    %p80 = scmp.ne.s32.totalorder %s68, %s69
    %p81 = scmp.eq.s32.totalorder %s17, 1
    %p82 = por %p80, %p81
    %p84 = scmp.ne.s32.totalorder %s69, %s83
    %p85 = scmp.eq.s32.totalorder %s17, 0
    %p86 = por %p84, %p85
    %s87 = ssub.s32 %s11, %s18
    %p88 = scmp.eq.s32.totalorder %s87, 0
    %s90 = sadd.s32 %s89, 1
    %s91 = scalar_select %p88, %s89, %s90
    %p94 = pneg %p88
    %p95 = scmp.eq.s32.totalorder %s11, 1
    %p96 = por %p94, %p95
    %p97 = scmp.ne.s32.totalorder %s89, %s92
    %p98 = scmp.eq.s32.totalorder %s11, 0
    %p99 = por %p97, %p98
    %p100 = scmp.ne.s32.totalorder %s89, %s92
    %p101 = scmp.eq.s32.totalorder %s16, 1
    %p102 = por %p100, %p101
    %p103 = scmp.ne.s32.totalorder %s92, %s93
    %p104 = scmp.eq.s32.totalorder %s16, 0
    %p105 = por %p103, %p104
    %p106 = scmp.ne.s32.totalorder %s92, %s93
    %p107 = scmp.eq.s32.totalorder %s17, 1
    %p108 = por %p106, %p107
    %p110 = scmp.ne.s32.totalorder %s93, %s109
    %p111 = scmp.eq.s32.totalorder %s17, 0
    %p112 = por %p110, %p111
    %s113 = ssub.s32 %s11, %s18
    %p114 = scmp.eq.s32.totalorder %s113, 0
    %s116 = sadd.s32 %s115, 1
    %s117 = scalar_select %p114, %s115, %s116
    %p120 = pneg %p114
    %p121 = scmp.eq.s32.totalorder %s11, 1
    %p122 = por %p120, %p121
    %p123 = scmp.ne.s32.totalorder %s115, %s118
    %p124 = scmp.eq.s32.totalorder %s11, 0
    %p125 = por %p123, %p124
    %p126 = scmp.ne.s32.totalorder %s115, %s118
    %p127 = scmp.eq.s32.totalorder %s16, 1
    %p128 = por %p126, %p127
    %p129 = scmp.ne.s32.totalorder %s118, %s119
    %p130 = scmp.eq.s32.totalorder %s16, 0
    %p131 = por %p129, %p130
    %p132 = scmp.ne.s32.totalorder %s118, %s119
    %p133 = scmp.eq.s32.totalorder %s17, 1
    %p134 = por %p132, %p133
    %p136 = scmp.ne.s32.totalorder %s119, %s135
    %p137 = scmp.eq.s32.totalorder %s17, 0
    %p138 = por %p136, %p137
    %p139 = scmp.le.s32.totalorder 1, %s11
    %p140 = scmp.lt.s32.totalorder %s11, 3
    %p141 = pnand %p139, %p140
    %p142 = pneg %p141
    // Predicated region
    $region9: #{net_forward.6} parent=5 // pred_check
      _
    $region10: #{net_forward.6} parent=5 // pred_check_branch
      %144 = sbr.rel (%p141) target = $region12
    $region11: #{net_forward.6} parent=5 // pred_region
      %s145 = ssub.s32 %s11, 1
      // Predicated region
      $region13: #{net_forward.6} parent=11 // pred_check
        %p146 = pneg %p58
      $region14: #{net_forward.6} parent=11 // pred_check_branch
        %148 = sbr.rel (%p146) target = $region16
      $region15: #{net_forward.6} parent=11 // pred_region
        _
      $region16: #{net_forward.6} parent=11 // pred_fallthru
        _
      // Predicated region
      $region17: #{net_forward.6} parent=11 // pred_check
        %p149 = pneg %p79
      $region18: #{net_forward.6} parent=11 // pred_check_branch
        %151 = sbr.rel (%p149) target = $region20
      $region19: #{net_forward.6} parent=11 // pred_region
        _
      $region20: #{net_forward.6} parent=11 // pred_fallthru
        _
    $region12: #{net_forward.6} parent=5 // pred_fallthru
      _
    %p152 = scmp.lt.s32.totalorder %s11, 2
    // Predicated region
    $region21: #{net_forward.6} parent=5 // pred_check
      %p153 = pneg %p152
    $region22: #{net_forward.6} parent=5 // pred_check_branch
      %155 = sbr.rel (%p153) target = $region24
    $region23: #{net_forward.6} parent=5 // pred_region
      // Predicated region
      $region25: #{net_forward.6} parent=23 // pred_check
        %p156 = pneg %p31
      $region26: #{net_forward.6} parent=23 // pred_check_branch
        %158 = sbr.rel (%p156) target = $region28
      $region27: #{net_forward.6} parent=23 // pred_region
        %s159 = smul.u32 4, %s11
        %p160 = scmp.lt.s32.totalorder %s159, 7
        %s161 = scalar_select %p160, %s159, 7
        %s162 = smul.addr %s161, 4
        %s163 = scalar_lea.vmem %s0, %s162
        %s164 = smul.u32 4, %s11
      $region28: #{net_forward.6} parent=23 // pred_fallthru
        _
    $region24: #{net_forward.6} parent=5 // pred_fallthru
      _
    %p165 = scmp.le.s32.totalorder 1, %s11
    %p166 = scmp.lt.s32.totalorder %s11, 3
    %p167 = pnand %p165, %p166
    %p168 = pneg %p167
    // Predicated region
    $region29: #{net_forward.6} parent=5 // pred_check
      _
    $region30: #{net_forward.6} parent=5 // pred_check_branch
      %170 = sbr.rel (%p167) target = $region32
    $region31: #{net_forward.6} parent=5 // pred_region
      %s171 = ssub.s32 %s11, 1
      %s172 = smul.u32 4, %s16
      %p173 = scmp.lt.s32.totalorder %s172, 7
      %s174 = scalar_select %p173, %s172, 7
      %s175 = smul.addr %s174, 4
      %s176 = scalar_lea.vmem %s0, %s175
      %p177 = pneg %p37
      %p178 = pneg %p34
      %p179 = pneg %p58
      %p180 = pneg %p55
      %p181 = pneg %p79
      %p182 = pneg %p76
      %p183 = pneg %p105
      %p184 = pneg %p102
      %s185 = smul.u32 4, %s16
      %p186 = scmp.lt.s32.totalorder %s185, 7
      %s187 = scalar_select %p186, %s185, 7
      %s188 = smul.addr %s187, 4
      %s189 = scalar_lea.vmem %s3, %s188
      %p190 = pneg %p131
      %p191 = pneg %p128
      %p192 = scmp.lt.s32.totalorder %s16, 1
      %s193 = scalar_select %p192, %s16, 1
      %s194 = smul.addr %s193, 2
      %s195 = scalar_lea.vmem %s4, %s194
      %s196 = smul.u32 4, %s16
      %p197 = scmp.lt.s32.totalorder %s196, 7
      %s198 = scalar_select %p197, %s196, 7
      %s199 = smul.addr %s198, 4
      %s200 = scalar_lea.vmem %s0, %s199
      %s201 = smul.u32 4, %s16
      %s202 = smul.u32 4, %s16
      %p203 = scmp.lt.s32.totalorder %s202, 7
      %s204 = scalar_select %p203, %s202, 7
      %s205 = smul.addr %s204, 4
      %s206 = scalar_lea.vmem %s3, %s205
      %s207 = smul.u32 4, %s16
      %p208 = scmp.lt.s32.totalorder %s16, 1
      %s209 = scalar_select %p208, %s16, 1
      %s210 = smul.addr %s209, 2
      %s211 = scalar_lea.vmem %s4, %s210
      %v213 = vld [vmem:[%s200] sm:$0xf]
      %v214 = vld [vmem:[%s200 + $0x4] sm:$0xf]
      %v215 = vld [vmem:[%s200 + $0x8] sm:$0xf]
      %v216 = vld [vmem:[%s200 + $0xc] sm:$0xf]
      %v217 = vld [vmem:[%s1] sm:$0xf]
      %v218 = vld [vmem:[%s1 + $0x4] sm:$0xf]
      %v219 = vld [vmem:[%s1 + $0x8] sm:$0xf]
      %v220 = vld [vmem:[%s1 + $0xc] sm:$0xf]
      %v221 = vld [vmem:[%s2] sm:$0x1]
      %v223 = vlaneseq
      %v224 = vshrl.u32 %v223, 7
      %v225 = vsub.s32 0, %v224
      %v226 = vrot.slane %v221, %v225
      %v232 = vunpack.c.l.b16 %v213
      %v233 = vunpack.c.l.b16 %v214
      %v234 = vunpack.c.l.b16 %v215
      %v235 = vunpack.c.l.b16 %v216
      %v236 = vpack.c.b16 %v233, %v232
      %v237 = vpack.c.b16 %v235, %v234
      %v242 = vunpack.c.l.b16 %v217
      %v243 = vunpack.c.l.b16 %v218
      %v244 = vunpack.c.l.b16 %v219
      %v245 = vunpack.c.l.b16 %v220
      %v246 = vpack.c.b16 %v243, %v242
      %v247 = vpack.c.b16 %v245, %v244
      %vm250 = vcmask 261120
      %v252 = vsel %vm250, %v236, 0
      %v255 = vsel %vm250, %v237, 0
      %257 = vmatprep.subr.bf16.mxu0 0
      %258 = vmatpush1.bf16.msra.mxu0 %v246
      %259 = vmatprep.subr.bf16.mxu0 0
      %260 = vmatpush1.bf16.msra.mxu0 %v247
      %261 = vmatprep.subr.bf16.mxu0 0
      %262 = vmatpush1.bf16.msra.mxu0 0
      %263 = vmatprep.subr.bf16.mxu0 0
      %264 = vmatpush1.bf16.msra.mxu0 0
      %265 = vmatprep.subr.bf16.mxu0 0
      %266 = vmatpush1.bf16.msra.mxu0 0
      %267 = vmatprep.subr.bf16.mxu0 0
      %268 = vmatpush1.bf16.msra.mxu0 0
      %269 = vmatprep.subr.bf16.mxu0 0
      %270 = vmatpush1.bf16.msra.mxu0 0
      %271 = vmatprep.subr.bf16.mxu0 0
      %272 = vmatpush1.bf16.msra.mxu0 0
      %273 = vmatprep.subr.bf16.mxu0 0
      %274 = vmatpush1.bf16.msra.mxu0 0
      %275 = vmatprep.subr.bf16.mxu0 0
      %276 = vmatpush1.bf16.msra.mxu0 0
      %277 = vmatprep.subr.bf16.mxu0 0
      %278 = vmatpush1.bf16.msra.mxu0 0
      %279 = vmatprep.subr.bf16.mxu0 0
      %280 = vmatpush1.bf16.msra.mxu0 0
      %281 = vmatprep.subr.bf16.mxu0 0
      %282 = vmatpush1.bf16.msra.mxu0 0
      %283 = vmatprep.subr.bf16.mxu0 0
      %284 = vmatpush1.bf16.msra.mxu0 0
      %285 = vmatprep.subr.bf16.mxu0 0
      %286 = vmatpush1.bf16.msra.mxu0 0
      %287 = vmatprep.subr.bf16.mxu0 0
      %288 = vmatpush1.bf16.msra.mxu0 0
      %289 = vmatprep.mubr.bf16.mxu0 0
      %290 = vmatmul.mubr.bf16.gmra.mrb[0].mxu0 %v252
      %v291 = vpop.f32.mrb[0].mxu0
      %v292 = vadd.f32 %v226, %v291
      %v293 = vpop.f32.mrb[0].mxu0
      %v294 = vpop.f32.mrb[0].mxu0
      %v295 = vadd.f32 %v226, %v294
      %v296 = vpop.f32.mrb[0].mxu0
      %297 = vmatprep.mubr.bf16.mxu0 0
      %298 = vmatmul.mubr.bf16.gmra.mrb[0].mxu0 %v255
      %v299 = vpop.f32.mrb[0].mxu0
      %v300 = vadd.f32 %v226, %v299
      %v301 = vpop.f32.mrb[0].mxu0
      %v302 = vpop.f32.mrb[0].mxu0
      %v303 = vadd.f32 %v226, %v302
      %v304 = vpop.f32.mrb[0].mxu0
      %305 = vdwg.mxu0
      %v306 = vmax.f32 %v292, 0.0
      %v307 = vmax.f32 %v295, 0.0
      %v308 = vmax.f32 %v300, 0.0
      %v309 = vmax.f32 %v303, 0.0
      %v310 = vpack.c.bf16 %v307, %v306
      %v311 = vpack.c.bf16 %v309, %v308
      %v314 = vunpack.c.l.b16 %v310
      %v315 = vunpack.c.h.b16 %v310
      %v316 = vunpack.c.l.b16 %v311
      %v317 = vunpack.c.h.b16 %v311
      %v318 = vpack.c.b16 %v314, %v314
      %v319 = vpack.c.b16 %v315, %v315
      %v320 = vpack.c.b16 %v316, %v316
      %v321 = vpack.c.b16 %v317, %v317
      %326 = vst [vmem:[%s206] sm:$0xf] %v318
      %327 = vst [vmem:[%s206 + $0x4] sm:$0xf] %v319
      %328 = vst [vmem:[%s206 + $0x8] sm:$0xf] %v320
      %329 = vst [vmem:[%s206 + $0xc] sm:$0xf] %v321
      %v330 = vlaneseq
      %v331 = vshrl.u32 %v330, 7
      %v332 = vadd.s32 %v331, 8
      %v333 = vadd.s32 %v331, 16
      %v334 = vadd.s32 %v331, 24
      %s335 = smul.u32 %s16, 32
      %v336 = vstv %s335
      %v337 = vadd.s32 %v331, %v336
      %v338 = vadd.s32 %v332, %v336
      %v339 = vadd.s32 %v333, %v336
      %v340 = vadd.s32 %v334, %v336
      %vm341 = vcmp.lt.s32.totalorder %v337, 50
      %vm342 = vcmp.lt.s32.totalorder %v338, 50
      %vm343 = vcmp.lt.s32.totalorder %v339, 50
      %vm344 = vcmp.lt.s32.totalorder %v340, 50
      %v345 = vsel %vm341, 1, 0
      %v346 = vsel %vm342, 1, 0
      %v347 = vsel %vm343, 1, 0
      %v348 = vsel %vm344, 1, 0
      %v349 = vcvt.s32.f32 %v345
      %v350 = vcvt.s32.f32 %v346
      %v351 = vcvt.s32.f32 %v347
      %v352 = vcvt.s32.f32 %v348
      %v353 = vmul.f32 %v306, %v349
      %v354 = vmul.f32 %v307, %v350
      %v355 = vmul.f32 %v308, %v351
      %v356 = vmul.f32 %v309, %v352
      %v357 = vadd.f32 %v353, %v354
      %v358 = vadd.f32 %v357, %v355
      %v359 = vadd.f32 %v358, %v356
      %v360 = vrot.slane %v359, 4
      %v361 = vadd.f32 %v359, %v360
      %v362 = vrot.slane %v361, 2
      %v363 = vadd.f32 %v361, %v362
      %v364 = vrot.slane %v363, 1
      %v365 = vadd.f32 %v363, %v364
      %366 = vst [vmem:[%s211] sm:$0x1] %v365
      %v367 = vmul.f32 %v353, %v306
      %v368 = vmul.f32 %v354, %v307
      %v369 = vmul.f32 %v355, %v308
      %v370 = vmul.f32 %v356, %v309
      %v371 = vadd.f32 %v367, %v368
      %v372 = vadd.f32 %v371, %v369
      %v373 = vadd.f32 %v372, %v370
      %v374 = vrot.slane %v373, 4
      %v375 = vadd.f32 %v373, %v374
      %v376 = vrot.slane %v375, 2
      %v377 = vadd.f32 %v375, %v376
      %v378 = vrot.slane %v377, 1
      %v379 = vadd.f32 %v377, %v378
      %380 = vst [vmem:[%s211 + $0x1] sm:$0x1] %v379
      %s381 = smul.u32 4, %s16
      %p382 = scmp.lt.s32.totalorder %s381, 7
      %s383 = scalar_select %p382, %s381, 7
      %s384 = smul.addr %s383, 4
      %s385 = scalar_lea.vmem %s3, %s384
      %p386 = scmp.lt.s32.totalorder %s16, 1
      %s387 = scalar_select %p386, %s16, 1
      %s388 = smul.addr %s387, 2
      %s389 = scalar_lea.vmem %s4, %s388
      // Predicated region
      $region33: #{net_forward.6} parent=31 // pred_check
        %p390 = pneg %p102
      $region34: #{net_forward.6} parent=31 // pred_check_branch
        %392 = sbr.rel (%p390) target = $region36
      $region35: #{net_forward.6} parent=31 // pred_region
        %s393 = smul.u32 4, %s16
      $region36: #{net_forward.6} parent=31 // pred_fallthru
        _
      // Predicated region
      $region37: #{net_forward.6} parent=31 // pred_check
        %p394 = pneg %p128
      $region38: #{net_forward.6} parent=31 // pred_check_branch
        %396 = sbr.rel (%p394) target = $region40
      $region39: #{net_forward.6} parent=31 // pred_region
        _
      $region40: #{net_forward.6} parent=31 // pred_fallthru
        _
    $region32: #{net_forward.6} parent=5 // pred_fallthru
      _
    %p397 = scmp.le.s32.totalorder 2, %s11
    // Predicated region
    $region41: #{net_forward.6} parent=5 // pred_check
      %p398 = pneg %p397
    $region42: #{net_forward.6} parent=5 // pred_check_branch
      %400 = sbr.rel (%p398) target = $region44
    $region43: #{net_forward.6} parent=5 // pred_region
      %s401 = ssub.s32 %s11, 2
      // Predicated region
      $region45: #{net_forward.6} parent=43 // pred_check
        %p402 = pneg %p108
      $region46: #{net_forward.6} parent=43 // pred_check_branch
        %404 = sbr.rel (%p402) target = $region48
      $region47: #{net_forward.6} parent=43 // pred_region
        %s405 = smul.u32 4, %s17
        %p406 = scmp.lt.s32.totalorder %s405, 7
        %s407 = scalar_select %p406, %s405, 7
        %s408 = smul.addr %s407, 4
        %s409 = scalar_lea.vmem %s3, %s408
      $region48: #{net_forward.6} parent=43 // pred_fallthru
        _
      // Predicated region
      $region49: #{net_forward.6} parent=43 // pred_check
        %p410 = pneg %p134
      $region50: #{net_forward.6} parent=43 // pred_check_branch
        %412 = sbr.rel (%p410) target = $region52
      $region51: #{net_forward.6} parent=43 // pred_region
        %p413 = scmp.lt.s32.totalorder %s17, 1
        %s414 = scalar_select %p413, %s17, 1
        %s415 = smul.addr %s414, 2
        %s416 = scalar_lea.vmem %s4, %s415
      $region52: #{net_forward.6} parent=43 // pred_fallthru
        _
    $region44: #{net_forward.6} parent=5 // pred_fallthru
      _
  $region6: #{net_forward.6} parent=0 // loop_footer
    %s15 = sadd.s32 1, %s11
  $region7: #{net_forward.6} parent=0 // loop_footer_branch
    %10 = sbr.rel target = $region3
  $region8: #{net_forward.6} parent=0 // loop_exit
    _

// kernel: sub.11
$region0: #{sub.11}
  #allocation0 [shape = 's32[1]{0}', space=sflag, size = 0x4, scoped, tag = 'scoped memory for sub.11']
  %s0 = inlined_call_operand.vmem [shape: f32[500], index: 0, kind: input, shape index: {}]
  %s1 = inlined_call_operand.vmem [shape: f32[500], index: 1, kind: input, shape index: {}]
  %s2 = inlined_call_operand.vmem [shape: f32[500], index: 2, kind: output, shape index: {}]
  %v3 = vld [vmem:[%s0] sm:$0xf]
  %v4 = vld [vmem:[%s1] sm:$0xf]
  %5 = xla_tuple %v3, %v4
  %6 = xla_tuple %5
  %v7 = vsub.f32 %v3, %v4
  %8 = xla_tuple %v7
  %9 = vst [vmem:[%s2] sm:$0xf] %v7

// kernel: net_forward.7
$region0: #{net_forward.7}
  #allocation0 [shape = 'u32[]', space=smem, size = 0x4, offset = 0x4, fixed_abs, tag = 'smem constant byte address 0x4 - core index']
  #allocation1 [shape = 'u32[144,128]{1,0:T(1,128)}', space=vmem, size = 0x12000, scoped, tag = 'internal scratch']
  %s0 = inlined_call_operand.vmem [shape: bf16[8,400], index: 0, kind: input, shape index: {}]
  %s1 = inlined_call_operand.vmem [shape: bf16[400,500], index: 1, kind: input, shape index: {}]
  %s2 = inlined_call_operand.vmem [shape: f32[1,500], index: 2, kind: input, shape index: {}]
  %s3 = inlined_call_operand.vmem [shape: bf16[500,300], index: 3, kind: input, shape index: {}]
  %s4 = inlined_call_operand.vmem [shape: f32[1,300], index: 4, kind: input, shape index: {}]
  %s5 = inlined_call_operand.vmem [shape: bf16[300,100], index: 5, kind: input, shape index: {}]
  %s6 = inlined_call_operand.vmem [shape: f32[1,100], index: 6, kind: input, shape index: {}]
  %s7 = inlined_call_operand.vmem [shape: bf16[100,128], index: 7, kind: input, shape index: {}]
  %s8 = inlined_call_operand.vmem [shape: f32[1,128], index: 8, kind: input, shape index: {}]
  %s9 = inlined_call_operand.vmem [shape: f32[8,128], index: 9, kind: output, shape index: {}]
  %s10 = sld [smem:[#allocation0]]
  $region46: #{net_forward.7} parent=0
    _
  %s12 = ssub.s32 1, %s10
  %s13 = scalar_select 0, %s12, %s10
  // Predicated region
  $region2: #{net_forward.7} parent=0 // pred_check
    _
  $region3: #{net_forward.7} parent=0 // pred_check_branch
    %15 = sbr.rel (0) target = $region5
  $region4: #{net_forward.7} parent=0 // pred_region
    _
  $region5: #{net_forward.7} parent=0 // pred_fallthru
    _
  // Predicated region
  $region6: #{net_forward.7} parent=0 // pred_check
    _
  $region7: #{net_forward.7} parent=0 // pred_check_branch
    %17 = sbr.rel (0) target = $region9
  $region8: #{net_forward.7} parent=0 // pred_region
    _
  $region9: #{net_forward.7} parent=0 // pred_fallthru
    _
  // Predicated region
  $region10: #{net_forward.7} parent=0 // pred_check
    _
  $region11: #{net_forward.7} parent=0 // pred_check_branch
    %19 = sbr.rel (0) target = $region13
  $region12: #{net_forward.7} parent=0 // pred_region
    _
  $region13: #{net_forward.7} parent=0 // pred_fallthru
    _
  // Predicated region
  $region14: #{net_forward.7} parent=0 // pred_check
    _
  $region15: #{net_forward.7} parent=0 // pred_check_branch
    %21 = sbr.rel (0) target = $region17
  $region16: #{net_forward.7} parent=0 // pred_region
    _
  $region17: #{net_forward.7} parent=0 // pred_fallthru
    _
  // Predicated region
  $region18: #{net_forward.7} parent=0 // pred_check
    _
  $region19: #{net_forward.7} parent=0 // pred_check_branch
    %23 = sbr.rel (0) target = $region21
  $region20: #{net_forward.7} parent=0 // pred_region
    _
  $region21: #{net_forward.7} parent=0 // pred_fallthru
    _
  // Predicated region
  $region22: #{net_forward.7} parent=0 // pred_check
    _
  $region23: #{net_forward.7} parent=0 // pred_check_branch
    %25 = sbr.rel (0) target = $region25
  $region24: #{net_forward.7} parent=0 // pred_region
    _
  $region25: #{net_forward.7} parent=0 // pred_fallthru
    _
  // Predicated region
  $region26: #{net_forward.7} parent=0 // pred_check
    _
  $region27: #{net_forward.7} parent=0 // pred_check_branch
    %27 = sbr.rel (0) target = $region29
  $region28: #{net_forward.7} parent=0 // pred_region
    _
  $region29: #{net_forward.7} parent=0 // pred_fallthru
    _
  // Predicated region
  $region30: #{net_forward.7} parent=0 // pred_check
    _
  $region31: #{net_forward.7} parent=0 // pred_check_branch
    %29 = sbr.rel (0) target = $region33
  $region32: #{net_forward.7} parent=0 // pred_region
    _
  $region33: #{net_forward.7} parent=0 // pred_fallthru
    _
  // Predicated region
  $region34: #{net_forward.7} parent=0 // pred_check
    _
  $region35: #{net_forward.7} parent=0 // pred_check_branch
    %31 = sbr.rel (0) target = $region37
  $region36: #{net_forward.7} parent=0 // pred_region
    _
  $region37: #{net_forward.7} parent=0 // pred_fallthru
    _
  %v33 = vld [vmem:[%s0] sm:$0xff]
  %v34 = vld [vmem:[%s0 + $0x8] sm:$0xff]
  %v35 = vld [vmem:[%s1] sm:$0xff]
  %v36 = vld [vmem:[%s1 + $0x8] sm:$0xff]
  %v37 = vld [vmem:[%s1 + $0x10] sm:$0xff]
  %v38 = vld [vmem:[%s1 + $0x18] sm:$0xff]
  %v39 = vld [vmem:[%s1 + $0x20] sm:$0xff]
  %v40 = vld [vmem:[%s1 + $0x28] sm:$0xff]
  %v41 = vld [vmem:[%s1 + $0x30] sm:$0xff]
  %v42 = vld [vmem:[%s1 + $0x38] sm:$0xff]
  %v43 = vld [vmem:[%s1 + $0x40] sm:$0xff]
  %v44 = vld [vmem:[%s1 + $0x48] sm:$0xff]
  %v45 = vld [vmem:[%s1 + $0x50] sm:$0xff]
  %v46 = vld [vmem:[%s1 + $0x58] sm:$0xff]
  %v47 = vld [vmem:[%s1 + $0x60] sm:$0xff]
  %v48 = vld [vmem:[%s1 + $0x68] sm:$0xff]
  %v49 = vld [vmem:[%s1 + $0x70] sm:$0xff]
  %v50 = vld [vmem:[%s1 + $0x78] sm:$0xff]
  %v51 = vld [vmem:[%s1 + $0x80] sm:$0xff]
  %v52 = vld [vmem:[%s1 + $0x88] sm:$0xff]
  %v53 = vld [vmem:[%s1 + $0x90] sm:$0xff]
  %v54 = vld [vmem:[%s1 + $0x98] sm:$0xff]
  %v55 = vld [vmem:[%s1 + $0xa0] sm:$0xff]
  %v56 = vld [vmem:[%s1 + $0xa8] sm:$0xff]
  %v57 = vld [vmem:[%s1 + $0xb0] sm:$0xff]
  %v58 = vld [vmem:[%s1 + $0xb8] sm:$0xff]
  %v59 = vld [vmem:[%s1 + $0xc0] sm:$0xff]
  %v60 = vld [vmem:[%s1 + $0xc8] sm:$0xff]
  %v61 = vld [vmem:[%s1 + $0xd0] sm:$0xff]
  %v62 = vld [vmem:[%s1 + $0xd8] sm:$0xff]
  %v63 = vld [vmem:[%s1 + $0xe0] sm:$0xff]
  %v64 = vld [vmem:[%s1 + $0xe8] sm:$0xff]
  %v65 = vld [vmem:[%s1 + $0xf0] sm:$0xff]
  %v66 = vld [vmem:[%s1 + $0xf8] sm:$0xff]
  %v67 = vld [vmem:[%s1 + $0x100] sm:$0xff]
  %v68 = vld [vmem:[%s1 + $0x108] sm:$0xff]
  %v69 = vld [vmem:[%s1 + $0x110] sm:$0xff]
  %v70 = vld [vmem:[%s1 + $0x118] sm:$0xff]
  %v71 = vld [vmem:[%s1 + $0x120] sm:$0xff]
  %v72 = vld [vmem:[%s1 + $0x128] sm:$0xff]
  %v73 = vld [vmem:[%s1 + $0x130] sm:$0xff]
  %v74 = vld [vmem:[%s1 + $0x138] sm:$0xff]
  %v75 = vld [vmem:[%s1 + $0x140] sm:$0xff]
  %v76 = vld [vmem:[%s1 + $0x148] sm:$0xff]
  %v77 = vld [vmem:[%s1 + $0x150] sm:$0xff]
  %v78 = vld [vmem:[%s1 + $0x158] sm:$0xff]
  %v79 = vld [vmem:[%s1 + $0x160] sm:$0xff]
  %v80 = vld [vmem:[%s1 + $0x168] sm:$0xff]
  %v81 = vld [vmem:[%s1 + $0x170] sm:$0xff]
  %v82 = vld [vmem:[%s1 + $0x178] sm:$0xff]
  %v83 = vld [vmem:[%s1 + $0x180] sm:$0xff]
  %v84 = vld [vmem:[%s1 + $0x188] sm:$0xff]
  %v85 = vld [vmem:[%s1 + $0x190] sm:$0xff]
  %v86 = vld [vmem:[%s1 + $0x198] sm:$0xff]
  %v87 = vld [vmem:[%s1 + $0x1a0] sm:$0xff]
  %v88 = vld [vmem:[%s1 + $0x1a8] sm:$0xff]
  %v89 = vld [vmem:[%s1 + $0x1b0] sm:$0xff]
  %v90 = vld [vmem:[%s1 + $0x1b8] sm:$0xff]
  %v91 = vld [vmem:[%s1 + $0x1c0] sm:$0xff]
  %v92 = vld [vmem:[%s1 + $0x1c8] sm:$0xff]
  %v93 = vld [vmem:[%s1 + $0x1d0] sm:$0xff]
  %v94 = vld [vmem:[%s1 + $0x1d8] sm:$0xff]
  %v95 = vld [vmem:[%s1 + $0x1e0] sm:$0xff]
  %v96 = vld [vmem:[%s1 + $0x1e8] sm:$0xff]
  %v97 = vld [vmem:[%s1 + $0x1f0] sm:$0xff]
  %v98 = vld [vmem:[%s1 + $0x1f8] sm:$0xff]
  %v99 = vld [vmem:[%s1 + $0x200] sm:$0xff]
  %v100 = vld [vmem:[%s1 + $0x208] sm:$0xff]
  %v101 = vld [vmem:[%s1 + $0x210] sm:$0xff]
  %v102 = vld [vmem:[%s1 + $0x218] sm:$0xff]
  %v103 = vld [vmem:[%s1 + $0x220] sm:$0xff]
  %v104 = vld [vmem:[%s1 + $0x228] sm:$0xff]
  %v105 = vld [vmem:[%s1 + $0x230] sm:$0xff]
  %v106 = vld [vmem:[%s1 + $0x238] sm:$0xff]
  %v107 = vld [vmem:[%s1 + $0x240] sm:$0xff]
  %v108 = vld [vmem:[%s1 + $0x248] sm:$0xff]
  %v109 = vld [vmem:[%s1 + $0x250] sm:$0xff]
  %v110 = vld [vmem:[%s1 + $0x258] sm:$0xff]
  %v111 = vld [vmem:[%s1 + $0x260] sm:$0xff]
  %v112 = vld [vmem:[%s1 + $0x268] sm:$0xff]
  %v113 = vld [vmem:[%s1 + $0x270] sm:$0xff]
  %v114 = vld [vmem:[%s1 + $0x278] sm:$0xff]
  %v115 = vld [vmem:[%s1 + $0x280] sm:$0xff]
  %v116 = vld [vmem:[%s1 + $0x288] sm:$0xff]
  %v117 = vld [vmem:[%s1 + $0x290] sm:$0xff]
  %v118 = vld [vmem:[%s1 + $0x298] sm:$0xff]
  %v119 = vld [vmem:[%s1 + $0x2a0] sm:$0xff]
  %v120 = vld [vmem:[%s1 + $0x2a8] sm:$0xff]
  %v121 = vld [vmem:[%s1 + $0x2b0] sm:$0xff]
  %v122 = vld [vmem:[%s1 + $0x2b8] sm:$0xff]
  %v123 = vld [vmem:[%s1 + $0x2c0] sm:$0xff]
  %v124 = vld [vmem:[%s1 + $0x2c8] sm:$0xff]
  %v125 = vld [vmem:[%s1 + $0x2d0] sm:$0xff]
  %v126 = vld [vmem:[%s1 + $0x2d8] sm:$0xff]
  %v127 = vld [vmem:[%s1 + $0x2e0] sm:$0xff]
  %v128 = vld [vmem:[%s1 + $0x2e8] sm:$0xff]
  %v129 = vld [vmem:[%s1 + $0x2f0] sm:$0xff]
  %v130 = vld [vmem:[%s1 + $0x2f8] sm:$0xff]
  %v131 = vld [vmem:[%s1 + $0x300] sm:$0xff]
  %v132 = vld [vmem:[%s1 + $0x308] sm:$0xff]
  %v133 = vld [vmem:[%s1 + $0x310] sm:$0xff]
  %v134 = vld [vmem:[%s1 + $0x318] sm:$0xff]
  %v135 = vld [vmem:[%s2] sm:$0xf]
  %v137 = vlaneseq
  %v138 = vshrl.u32 %v137, 7
  %v139 = vsub.s32 0, %v138
  %v140 = vrot.slane %v135, %v139
  %v141 = vlaneseq
  %v142 = vshrl.u32 %v141, 7
  %v143 = vsub.s32 1, %v142
  %v144 = vrot.slane %v135, %v143
  %v145 = vlaneseq
  %v146 = vshrl.u32 %v145, 7
  %v147 = vsub.s32 2, %v146
  %v148 = vrot.slane %v135, %v147
  %v149 = vlaneseq
  %v150 = vshrl.u32 %v149, 7
  %v151 = vsub.s32 3, %v150
  %v152 = vrot.slane %v135, %v151
  %v159 = vunpack.c.l.b16 %v33
  %v160 = vunpack.c.h.b16 %v33
  %v161 = vunpack.c.l.b16 %v34
  %v162 = vunpack.c.h.b16 %v34
  %v163 = vpack.c.b16 %v159, %v159
  %v164 = vpack.c.b16 %v160, %v160
  %v165 = vpack.c.b16 %v161, %v161
  %v166 = vpack.c.b16 %v162, %v162
  %v270 = vunpack.c.l.b16 %v35
  %v271 = vunpack.c.h.b16 %v35
  %v272 = vunpack.c.l.b16 %v36
  %v273 = vunpack.c.h.b16 %v36
  %v274 = vunpack.c.l.b16 %v37
  %v275 = vunpack.c.h.b16 %v37
  %v276 = vunpack.c.l.b16 %v38
  %v277 = vunpack.c.h.b16 %v38
  %v278 = vunpack.c.l.b16 %v39
  %v279 = vunpack.c.h.b16 %v39
  %v280 = vunpack.c.l.b16 %v40
  %v281 = vunpack.c.h.b16 %v40
  %v282 = vunpack.c.l.b16 %v41
  %v283 = vunpack.c.h.b16 %v41
  %v284 = vunpack.c.l.b16 %v42
  %v285 = vunpack.c.h.b16 %v42
  %v286 = vunpack.c.l.b16 %v43
  %v287 = vunpack.c.h.b16 %v43
  %v288 = vunpack.c.l.b16 %v44
  %v289 = vunpack.c.h.b16 %v44
  %v290 = vunpack.c.l.b16 %v45
  %v291 = vunpack.c.h.b16 %v45
  %v292 = vunpack.c.l.b16 %v46
  %v293 = vunpack.c.h.b16 %v46
  %v294 = vunpack.c.l.b16 %v47
  %v295 = vunpack.c.h.b16 %v47
  %v296 = vunpack.c.l.b16 %v48
  %v297 = vunpack.c.h.b16 %v48
  %v298 = vunpack.c.l.b16 %v49
  %v299 = vunpack.c.h.b16 %v49
  %v300 = vunpack.c.l.b16 %v50
  %v301 = vunpack.c.h.b16 %v50
  %v302 = vunpack.c.l.b16 %v51
  %v303 = vunpack.c.h.b16 %v51
  %v304 = vunpack.c.l.b16 %v52
  %v305 = vunpack.c.h.b16 %v52
  %v306 = vunpack.c.l.b16 %v53
  %v307 = vunpack.c.h.b16 %v53
  %v308 = vunpack.c.l.b16 %v54
  %v309 = vunpack.c.h.b16 %v54
  %v310 = vunpack.c.l.b16 %v55
  %v311 = vunpack.c.h.b16 %v55
  %v312 = vunpack.c.l.b16 %v56
  %v313 = vunpack.c.h.b16 %v56
  %v314 = vunpack.c.l.b16 %v57
  %v315 = vunpack.c.h.b16 %v57
  %v316 = vunpack.c.l.b16 %v58
  %v317 = vunpack.c.h.b16 %v58
  %v318 = vunpack.c.l.b16 %v59
  %v319 = vunpack.c.h.b16 %v59
  %v320 = vunpack.c.l.b16 %v60
  %v321 = vunpack.c.h.b16 %v60
  %v322 = vunpack.c.l.b16 %v61
  %v323 = vunpack.c.h.b16 %v61
  %v324 = vunpack.c.l.b16 %v62
  %v325 = vunpack.c.h.b16 %v62
  %v326 = vunpack.c.l.b16 %v63
  %v327 = vunpack.c.h.b16 %v63
  %v328 = vunpack.c.l.b16 %v64
  %v329 = vunpack.c.h.b16 %v64
  %v330 = vunpack.c.l.b16 %v65
  %v331 = vunpack.c.h.b16 %v65
  %v332 = vunpack.c.l.b16 %v66
  %v333 = vunpack.c.h.b16 %v66
  %v334 = vunpack.c.l.b16 %v67
  %v335 = vunpack.c.h.b16 %v67
  %v336 = vunpack.c.l.b16 %v68
  %v337 = vunpack.c.h.b16 %v68
  %v338 = vunpack.c.l.b16 %v69
  %v339 = vunpack.c.h.b16 %v69
  %v340 = vunpack.c.l.b16 %v70
  %v341 = vunpack.c.h.b16 %v70
  %v342 = vunpack.c.l.b16 %v71
  %v343 = vunpack.c.h.b16 %v71
  %v344 = vunpack.c.l.b16 %v72
  %v345 = vunpack.c.h.b16 %v72
  %v346 = vunpack.c.l.b16 %v73
  %v347 = vunpack.c.h.b16 %v73
  %v348 = vunpack.c.l.b16 %v74
  %v349 = vunpack.c.h.b16 %v74
  %v350 = vunpack.c.l.b16 %v75
  %v351 = vunpack.c.h.b16 %v75
  %v352 = vunpack.c.l.b16 %v76
  %v353 = vunpack.c.h.b16 %v76
  %v354 = vunpack.c.l.b16 %v77
  %v355 = vunpack.c.h.b16 %v77
  %v356 = vunpack.c.l.b16 %v78
  %v357 = vunpack.c.h.b16 %v78
  %v358 = vunpack.c.l.b16 %v79
  %v359 = vunpack.c.h.b16 %v79
  %v360 = vunpack.c.l.b16 %v80
  %v361 = vunpack.c.h.b16 %v80
  %v362 = vunpack.c.l.b16 %v81
  %v363 = vunpack.c.h.b16 %v81
  %v364 = vunpack.c.l.b16 %v82
  %v365 = vunpack.c.h.b16 %v82
  %v366 = vunpack.c.l.b16 %v83
  %v367 = vunpack.c.h.b16 %v83
  %v368 = vunpack.c.l.b16 %v84
  %v369 = vunpack.c.h.b16 %v84
  %v370 = vunpack.c.l.b16 %v85
  %v371 = vunpack.c.h.b16 %v85
  %v372 = vunpack.c.l.b16 %v86
  %v373 = vunpack.c.h.b16 %v86
  %v374 = vunpack.c.l.b16 %v87
  %v375 = vunpack.c.h.b16 %v87
  %v376 = vunpack.c.l.b16 %v88
  %v377 = vunpack.c.h.b16 %v88
  %v378 = vunpack.c.l.b16 %v89
  %v379 = vunpack.c.h.b16 %v89
  %v380 = vunpack.c.l.b16 %v90
  %v381 = vunpack.c.h.b16 %v90
  %v382 = vunpack.c.l.b16 %v91
  %v383 = vunpack.c.h.b16 %v91
  %v384 = vunpack.c.l.b16 %v92
  %v385 = vunpack.c.h.b16 %v92
  %v386 = vunpack.c.l.b16 %v93
  %v387 = vunpack.c.h.b16 %v93
  %v388 = vunpack.c.l.b16 %v94
  %v389 = vunpack.c.h.b16 %v94
  %v390 = vunpack.c.l.b16 %v95
  %v391 = vunpack.c.h.b16 %v95
  %v392 = vunpack.c.l.b16 %v96
  %v393 = vunpack.c.h.b16 %v96
  %v394 = vunpack.c.l.b16 %v97
  %v395 = vunpack.c.h.b16 %v97
  %v396 = vunpack.c.l.b16 %v98
  %v397 = vunpack.c.h.b16 %v98
  %v398 = vunpack.c.l.b16 %v99
  %v399 = vunpack.c.h.b16 %v99
  %v400 = vunpack.c.l.b16 %v100
  %v401 = vunpack.c.h.b16 %v100
  %v402 = vunpack.c.l.b16 %v101
  %v403 = vunpack.c.h.b16 %v101
  %v404 = vunpack.c.l.b16 %v102
  %v405 = vunpack.c.h.b16 %v102
  %v406 = vunpack.c.l.b16 %v103
  %v407 = vunpack.c.h.b16 %v103
  %v408 = vunpack.c.l.b16 %v104
  %v409 = vunpack.c.h.b16 %v104
  %v410 = vunpack.c.l.b16 %v105
  %v411 = vunpack.c.h.b16 %v105
  %v412 = vunpack.c.l.b16 %v106
  %v413 = vunpack.c.h.b16 %v106
  %v414 = vunpack.c.l.b16 %v107
  %v415 = vunpack.c.h.b16 %v107
  %v416 = vunpack.c.l.b16 %v108
  %v417 = vunpack.c.h.b16 %v108
  %v418 = vunpack.c.l.b16 %v109
  %v419 = vunpack.c.h.b16 %v109
  %v420 = vunpack.c.l.b16 %v110
  %v421 = vunpack.c.h.b16 %v110
  %v422 = vunpack.c.l.b16 %v111
  %v423 = vunpack.c.h.b16 %v111
  %v424 = vunpack.c.l.b16 %v112
  %v425 = vunpack.c.h.b16 %v112
  %v426 = vunpack.c.l.b16 %v113
  %v427 = vunpack.c.h.b16 %v113
  %v428 = vunpack.c.l.b16 %v114
  %v429 = vunpack.c.h.b16 %v114
  %v430 = vunpack.c.l.b16 %v115
  %v431 = vunpack.c.h.b16 %v115
  %v432 = vunpack.c.l.b16 %v116
  %v433 = vunpack.c.h.b16 %v116
  %v434 = vunpack.c.l.b16 %v117
  %v435 = vunpack.c.h.b16 %v117
  %v436 = vunpack.c.l.b16 %v118
  %v437 = vunpack.c.h.b16 %v118
  %v438 = vunpack.c.l.b16 %v119
  %v439 = vunpack.c.h.b16 %v119
  %v440 = vunpack.c.l.b16 %v120
  %v441 = vunpack.c.h.b16 %v120
  %v442 = vunpack.c.l.b16 %v121
  %v443 = vunpack.c.h.b16 %v121
  %v444 = vunpack.c.l.b16 %v122
  %v445 = vunpack.c.h.b16 %v122
  %v446 = vunpack.c.l.b16 %v123
  %v447 = vunpack.c.h.b16 %v123
  %v448 = vunpack.c.l.b16 %v124
  %v449 = vunpack.c.h.b16 %v124
  %v450 = vunpack.c.l.b16 %v125
  %v451 = vunpack.c.h.b16 %v125
  %v452 = vunpack.c.l.b16 %v126
  %v453 = vunpack.c.h.b16 %v126
  %v454 = vunpack.c.l.b16 %v127
  %v455 = vunpack.c.h.b16 %v127
  %v456 = vunpack.c.l.b16 %v128
  %v457 = vunpack.c.h.b16 %v128
  %v458 = vunpack.c.l.b16 %v129
  %v459 = vunpack.c.h.b16 %v129
  %v460 = vunpack.c.l.b16 %v130
  %v461 = vunpack.c.h.b16 %v130
  %v462 = vunpack.c.l.b16 %v131
  %v463 = vunpack.c.h.b16 %v131
  %v464 = vunpack.c.l.b16 %v132
  %v465 = vunpack.c.h.b16 %v132
  %v466 = vunpack.c.l.b16 %v133
  %v467 = vunpack.c.h.b16 %v133
  %v468 = vunpack.c.l.b16 %v134
  %v469 = vunpack.c.h.b16 %v134
  %v470 = vpack.c.b16 %v274, %v270
  %v471 = vpack.c.b16 %v275, %v271
  %v472 = vpack.c.b16 %v276, %v272
  %v473 = vpack.c.b16 %v277, %v273
  %v474 = vpack.c.b16 %v282, %v278
  %v475 = vpack.c.b16 %v283, %v279
  %v476 = vpack.c.b16 %v284, %v280
  %v477 = vpack.c.b16 %v285, %v281
  %v478 = vpack.c.b16 %v290, %v286
  %v479 = vpack.c.b16 %v291, %v287
  %v480 = vpack.c.b16 %v292, %v288
  %v481 = vpack.c.b16 %v293, %v289
  %v482 = vpack.c.b16 %v298, %v294
  %v483 = vpack.c.b16 %v299, %v295
  %v484 = vpack.c.b16 %v300, %v296
  %v485 = vpack.c.b16 %v301, %v297
  %v486 = vpack.c.b16 %v306, %v302
  %v487 = vpack.c.b16 %v307, %v303
  %v488 = vpack.c.b16 %v308, %v304
  %v489 = vpack.c.b16 %v309, %v305
  %v490 = vpack.c.b16 %v314, %v310
  %v491 = vpack.c.b16 %v315, %v311
  %v492 = vpack.c.b16 %v316, %v312
  %v493 = vpack.c.b16 %v317, %v313
  %v494 = vpack.c.b16 %v322, %v318
  %v495 = vpack.c.b16 %v323, %v319
  %v496 = vpack.c.b16 %v324, %v320
  %v497 = vpack.c.b16 %v325, %v321
  %v498 = vpack.c.b16 %v330, %v326
  %v499 = vpack.c.b16 %v331, %v327
  %v500 = vpack.c.b16 %v332, %v328
  %v501 = vpack.c.b16 %v333, %v329
  %v502 = vpack.c.b16 %v338, %v334
  %v503 = vpack.c.b16 %v339, %v335
  %v504 = vpack.c.b16 %v340, %v336
  %v505 = vpack.c.b16 %v341, %v337
  %v506 = vpack.c.b16 %v346, %v342
  %v507 = vpack.c.b16 %v347, %v343
  %v508 = vpack.c.b16 %v348, %v344
  %v509 = vpack.c.b16 %v349, %v345
  %v510 = vpack.c.b16 %v354, %v350
  %v511 = vpack.c.b16 %v355, %v351
  %v512 = vpack.c.b16 %v356, %v352
  %v513 = vpack.c.b16 %v357, %v353
  %v514 = vpack.c.b16 %v362, %v358
  %v515 = vpack.c.b16 %v363, %v359
  %v516 = vpack.c.b16 %v364, %v360
  %v517 = vpack.c.b16 %v365, %v361
  %v518 = vpack.c.b16 %v370, %v366
  %v519 = vpack.c.b16 %v371, %v367
  %v520 = vpack.c.b16 %v372, %v368
  %v521 = vpack.c.b16 %v373, %v369
  %v522 = vpack.c.b16 %v378, %v374
  %v523 = vpack.c.b16 %v379, %v375
  %v524 = vpack.c.b16 %v380, %v376
  %v525 = vpack.c.b16 %v381, %v377
  %v526 = vpack.c.b16 %v386, %v382
  %v527 = vpack.c.b16 %v387, %v383
  %v528 = vpack.c.b16 %v388, %v384
  %v529 = vpack.c.b16 %v389, %v385
  %v530 = vpack.c.b16 %v394, %v390
  %v531 = vpack.c.b16 %v395, %v391
  %v532 = vpack.c.b16 %v396, %v392
  %v533 = vpack.c.b16 %v397, %v393
  %v534 = vpack.c.b16 %v402, %v398
  %v535 = vpack.c.b16 %v403, %v399
  %v536 = vpack.c.b16 %v404, %v400
  %v537 = vpack.c.b16 %v405, %v401
  %v538 = vpack.c.b16 %v410, %v406
  %v539 = vpack.c.b16 %v411, %v407
  %v540 = vpack.c.b16 %v412, %v408
  %v541 = vpack.c.b16 %v413, %v409
  %v542 = vpack.c.b16 %v418, %v414
  %v543 = vpack.c.b16 %v419, %v415
  %v544 = vpack.c.b16 %v420, %v416
  %v545 = vpack.c.b16 %v421, %v417
  %v546 = vpack.c.b16 %v426, %v422
  %v547 = vpack.c.b16 %v427, %v423
  %v548 = vpack.c.b16 %v428, %v424
  %v549 = vpack.c.b16 %v429, %v425
  %v550 = vpack.c.b16 %v434, %v430
  %v551 = vpack.c.b16 %v435, %v431
  %v552 = vpack.c.b16 %v436, %v432
  %v553 = vpack.c.b16 %v437, %v433
  %v554 = vpack.c.b16 %v442, %v438
  %v555 = vpack.c.b16 %v443, %v439
  %v556 = vpack.c.b16 %v444, %v440
  %v557 = vpack.c.b16 %v445, %v441
  %v558 = vpack.c.b16 %v450, %v446
  %v559 = vpack.c.b16 %v451, %v447
  %v560 = vpack.c.b16 %v452, %v448
  %v561 = vpack.c.b16 %v453, %v449
  %v562 = vpack.c.b16 %v458, %v454
  %v563 = vpack.c.b16 %v459, %v455
  %v564 = vpack.c.b16 %v460, %v456
  %v565 = vpack.c.b16 %v461, %v457
  %v566 = vpack.c.b16 %v466, %v462
  %v567 = vpack.c.b16 %v467, %v463
  %v568 = vpack.c.b16 %v468, %v464
  %v569 = vpack.c.b16 %v469, %v465
  %vm670 = vcmask 130048
  %v672 = vsel %vm670, %v166, 0
  %674 = vmatprep.subr.bf16.mxu0 %v471
  %675 = vmatpush1.bf16.msra.mxu0 %v470
  %676 = vmatprep.subr.bf16.mxu0 %v475
  %677 = vmatpush1.bf16.msra.mxu0 %v474
  %678 = vmatprep.subr.bf16.mxu0 %v479
  %679 = vmatpush1.bf16.msra.mxu0 %v478
  %680 = vmatprep.subr.bf16.mxu0 %v483
  %681 = vmatpush1.bf16.msra.mxu0 %v482
  %682 = vmatprep.subr.bf16.mxu0 %v487
  %683 = vmatpush1.bf16.msra.mxu0 %v486
  %684 = vmatprep.subr.bf16.mxu0 %v491
  %685 = vmatpush1.bf16.msra.mxu0 %v490
  %686 = vmatprep.subr.bf16.mxu0 %v495
  %687 = vmatpush1.bf16.msra.mxu0 %v494
  %688 = vmatprep.subr.bf16.mxu0 %v499
  %689 = vmatpush1.bf16.msra.mxu0 %v498
  %690 = vmatprep.subr.bf16.mxu0 %v503
  %691 = vmatpush1.bf16.msra.mxu0 %v502
  %692 = vmatprep.subr.bf16.mxu0 %v507
  %693 = vmatpush1.bf16.msra.mxu0 %v506
  %694 = vmatprep.subr.bf16.mxu0 %v511
  %695 = vmatpush1.bf16.msra.mxu0 %v510
  %696 = vmatprep.subr.bf16.mxu0 %v515
  %697 = vmatpush1.bf16.msra.mxu0 %v514
  %698 = vmatprep.subr.bf16.mxu0 %v519
  %699 = vmatpush1.bf16.msra.mxu0 %v518
  %700 = vmatprep.subr.bf16.mxu0 %v523
  %701 = vmatpush1.bf16.msra.mxu0 %v522
  %702 = vmatprep.subr.bf16.mxu0 %v527
  %703 = vmatpush1.bf16.msra.mxu0 %v526
  %704 = vmatprep.subr.bf16.mxu0 %v531
  %705 = vmatpush1.bf16.msra.mxu0 %v530
  %706 = vmatprep.mubr.bf16.mxu0 %v164
  %707 = vmatmul.mubr.bf16.gmra.mrb[0].mxu0 %v163
  %v708 = vpop.f32.mrb[0].mxu0
  %v709 = vadd.f32 %v140, %v708
  %v710 = vpop.f32.mrb[0].mxu0
  %v711 = vadd.f32 %v144, %v710
  %v712 = vpop.f32.mrb[0].mxu0
  %v713 = vpop.f32.mrb[0].mxu0
  %714 = vdwg.mxu0
  %715 = vmatprep.subr.bf16.mxu0 %v535
  %716 = vmatpush1.bf16.msra.mxu0 %v534
  %717 = vmatprep.subr.bf16.mxu0 %v539
  %718 = vmatpush1.bf16.msra.mxu0 %v538
  %719 = vmatprep.subr.bf16.mxu0 %v543
  %720 = vmatpush1.bf16.msra.mxu0 %v542
  %721 = vmatprep.subr.bf16.mxu0 %v547
  %722 = vmatpush1.bf16.msra.mxu0 %v546
  %723 = vmatprep.subr.bf16.mxu0 %v551
  %724 = vmatpush1.bf16.msra.mxu0 %v550
  %725 = vmatprep.subr.bf16.mxu0 %v555
  %726 = vmatpush1.bf16.msra.mxu0 %v554
  %727 = vmatprep.subr.bf16.mxu0 %v559
  %728 = vmatpush1.bf16.msra.mxu0 %v558
  %729 = vmatprep.subr.bf16.mxu0 %v563
  %730 = vmatpush1.bf16.msra.mxu0 %v562
  %731 = vmatprep.subr.bf16.mxu0 %v567
  %732 = vmatpush1.bf16.msra.mxu0 %v566
  %733 = vmatprep.subr.bf16.mxu0 0
  %734 = vmatpush1.bf16.msra.mxu0 0
  %735 = vmatprep.subr.bf16.mxu0 0
  %736 = vmatpush1.bf16.msra.mxu0 0
  %737 = vmatprep.subr.bf16.mxu0 0
  %738 = vmatpush1.bf16.msra.mxu0 0
  %739 = vmatprep.subr.bf16.mxu0 0
  %740 = vmatpush1.bf16.msra.mxu0 0
  %741 = vmatprep.subr.bf16.mxu0 0
  %742 = vmatpush1.bf16.msra.mxu0 0
  %743 = vmatprep.subr.bf16.mxu0 0
  %744 = vmatpush1.bf16.msra.mxu0 0
  %745 = vmatprep.subr.bf16.mxu0 0
  %746 = vmatpush1.bf16.msra.mxu0 0
  %747 = vmatprep.mubr.bf16.mxu0 %v672
  %748 = vmatmul.mubr.bf16.gmra.mrb[0].mxu0 %v165
  %v749 = vpop.f32.mrb[0].mxu0
  %v750 = vadd.f32 %v709, %v749
  %v751 = vpop.f32.mrb[0].mxu0
  %v752 = vadd.f32 %v711, %v751
  %v753 = vpop.f32.mrb[0].mxu0
  %v754 = vpop.f32.mrb[0].mxu0
  %755 = vdwg.mxu0
  %756 = vmatprep.subr.bf16.mxu0 %v473
  %757 = vmatpush1.bf16.msra.mxu0 %v472
  %758 = vmatprep.subr.bf16.mxu0 %v477
  %759 = vmatpush1.bf16.msra.mxu0 %v476
  %760 = vmatprep.subr.bf16.mxu0 %v481
  %761 = vmatpush1.bf16.msra.mxu0 %v480
  %762 = vmatprep.subr.bf16.mxu0 %v485
  %763 = vmatpush1.bf16.msra.mxu0 %v484
  %764 = vmatprep.subr.bf16.mxu0 %v489
  %765 = vmatpush1.bf16.msra.mxu0 %v488
  %766 = vmatprep.subr.bf16.mxu0 %v493
  %767 = vmatpush1.bf16.msra.mxu0 %v492
  %768 = vmatprep.subr.bf16.mxu0 %v497
  %769 = vmatpush1.bf16.msra.mxu0 %v496
  %770 = vmatprep.subr.bf16.mxu0 %v501
  %771 = vmatpush1.bf16.msra.mxu0 %v500
  %772 = vmatprep.subr.bf16.mxu0 %v505
  %773 = vmatpush1.bf16.msra.mxu0 %v504
  %774 = vmatprep.subr.bf16.mxu0 %v509
  %775 = vmatpush1.bf16.msra.mxu0 %v508
  %776 = vmatprep.subr.bf16.mxu0 %v513
  %777 = vmatpush1.bf16.msra.mxu0 %v512
  %778 = vmatprep.subr.bf16.mxu0 %v517
  %779 = vmatpush1.bf16.msra.mxu0 %v516
  %780 = vmatprep.subr.bf16.mxu0 %v521
  %781 = vmatpush1.bf16.msra.mxu0 %v520
  %782 = vmatprep.subr.bf16.mxu0 %v525
  %783 = vmatpush1.bf16.msra.mxu0 %v524
  %784 = vmatprep.subr.bf16.mxu0 %v529
  %785 = vmatpush1.bf16.msra.mxu0 %v528
  %786 = vmatprep.subr.bf16.mxu0 %v533
  %787 = vmatpush1.bf16.msra.mxu0 %v532
  %788 = vmatprep.mubr.bf16.mxu0 %v164
  %789 = vmatmul.mubr.bf16.gmra.mrb[0].mxu0 %v163
  %v790 = vpop.f32.mrb[0].mxu0
  %v791 = vadd.f32 %v148, %v790
  %v792 = vpop.f32.mrb[0].mxu0
  %v793 = vadd.f32 %v152, %v792
  %v794 = vpop.f32.mrb[0].mxu0
  %v795 = vpop.f32.mrb[0].mxu0
  %796 = vdwg.mxu0
  %797 = vmatprep.subr.bf16.mxu0 %v537
  %798 = vmatpush1.bf16.msra.mxu0 %v536
  %799 = vmatprep.subr.bf16.mxu0 %v541
  %800 = vmatpush1.bf16.msra.mxu0 %v540
  %801 = vmatprep.subr.bf16.mxu0 %v545
  %802 = vmatpush1.bf16.msra.mxu0 %v544
  %803 = vmatprep.subr.bf16.mxu0 %v549
  %804 = vmatpush1.bf16.msra.mxu0 %v548
  %805 = vmatprep.subr.bf16.mxu0 %v553
  %806 = vmatpush1.bf16.msra.mxu0 %v552
  %807 = vmatprep.subr.bf16.mxu0 %v557
  %808 = vmatpush1.bf16.msra.mxu0 %v556
  %809 = vmatprep.subr.bf16.mxu0 %v561
  %810 = vmatpush1.bf16.msra.mxu0 %v560
  %811 = vmatprep.subr.bf16.mxu0 %v565
  %812 = vmatpush1.bf16.msra.mxu0 %v564
  %813 = vmatprep.subr.bf16.mxu0 %v569
  %814 = vmatpush1.bf16.msra.mxu0 %v568
  %815 = vmatprep.subr.bf16.mxu0 0
  %816 = vmatpush1.bf16.msra.mxu0 0
  %817 = vmatprep.subr.bf16.mxu0 0
  %818 = vmatpush1.bf16.msra.mxu0 0
  %819 = vmatprep.subr.bf16.mxu0 0
  %820 = vmatpush1.bf16.msra.mxu0 0
  %821 = vmatprep.subr.bf16.mxu0 0
  %822 = vmatpush1.bf16.msra.mxu0 0
  %823 = vmatprep.subr.bf16.mxu0 0
  %824 = vmatpush1.bf16.msra.mxu0 0
  %825 = vmatprep.subr.bf16.mxu0 0
  %826 = vmatpush1.bf16.msra.mxu0 0
  %827 = vmatprep.subr.bf16.mxu0 0
  %828 = vmatpush1.bf16.msra.mxu0 0
  %829 = vmatprep.mubr.bf16.mxu0 %v672
  %830 = vmatmul.mubr.bf16.gmra.mrb[0].mxu0 %v165
  %v831 = vpop.f32.mrb[0].mxu0
  %v832 = vadd.f32 %v791, %v831
  %v833 = vpop.f32.mrb[0].mxu0
  %v834 = vadd.f32 %v793, %v833
  %v835 = vpop.f32.mrb[0].mxu0
  %v836 = vpop.f32.mrb[0].mxu0
  %837 = vdwg.mxu0
  %v838 = vmax.f32 %v750, 0.0
  %v839 = vmax.f32 %v752, 0.0
  %v840 = vmax.f32 %v832, 0.0
  %v841 = vmax.f32 %v834, 0.0
  %v842 = vpack.c.bf16 %v838, %v838
  %v843 = vpack.c.bf16 %v839, %v839
  %v844 = vpack.c.bf16 %v840, %v840
  %v845 = vpack.c.bf16 %v841, %v841
  %v846 = vld [vmem:[%s3] sm:$0xff]
  %v847 = vld [vmem:[%s3 + $0x8] sm:$0xf]
  %v848 = vld [vmem:[%s3 + $0xc] sm:$0xff]
  %v849 = vld [vmem:[%s3 + $0x14] sm:$0xf]
  %v850 = vld [vmem:[%s3 + $0x18] sm:$0xff]
  %v851 = vld [vmem:[%s3 + $0x20] sm:$0xf]
  %v852 = vld [vmem:[%s3 + $0x24] sm:$0xff]
  %v853 = vld [vmem:[%s3 + $0x2c] sm:$0xf]
  %v854 = vld [vmem:[%s3 + $0x30] sm:$0xff]
  %v855 = vld [vmem:[%s3 + $0x38] sm:$0xf]
  %v856 = vld [vmem:[%s3 + $0x3c] sm:$0xff]
  %v857 = vld [vmem:[%s3 + $0x44] sm:$0xf]
  %v858 = vld [vmem:[%s3 + $0x48] sm:$0xff]
  %v859 = vld [vmem:[%s3 + $0x50] sm:$0xf]
  %v860 = vld [vmem:[%s3 + $0x54] sm:$0xff]
  %v861 = vld [vmem:[%s3 + $0x5c] sm:$0xf]
  %v862 = vld [vmem:[%s3 + $0x60] sm:$0xff]
  %v863 = vld [vmem:[%s3 + $0x68] sm:$0xf]
  %v864 = vld [vmem:[%s3 + $0x6c] sm:$0xff]
  %v865 = vld [vmem:[%s3 + $0x74] sm:$0xf]
  %v866 = vld [vmem:[%s3 + $0x78] sm:$0xff]
  %v867 = vld [vmem:[%s3 + $0x80] sm:$0xf]
  %v868 = vld [vmem:[%s3 + $0x84] sm:$0xff]
  %v869 = vld [vmem:[%s3 + $0x8c] sm:$0xf]
  %v870 = vld [vmem:[%s3 + $0x90] sm:$0xff]
  %v871 = vld [vmem:[%s3 + $0x98] sm:$0xf]
  %v872 = vld [vmem:[%s3 + $0x9c] sm:$0xff]
  %v873 = vld [vmem:[%s3 + $0xa4] sm:$0xf]
  %v874 = vld [vmem:[%s3 + $0xa8] sm:$0xff]
  %v875 = vld [vmem:[%s3 + $0xb0] sm:$0xf]
  %v876 = vld [vmem:[%s3 + $0xb4] sm:$0xff]
  %v877 = vld [vmem:[%s3 + $0xbc] sm:$0xf]
  %v878 = vld [vmem:[%s3 + $0xc0] sm:$0xff]
  %v879 = vld [vmem:[%s3 + $0xc8] sm:$0xf]
  %v880 = vld [vmem:[%s3 + $0xcc] sm:$0xff]
  %v881 = vld [vmem:[%s3 + $0xd4] sm:$0xf]
  %v882 = vld [vmem:[%s3 + $0xd8] sm:$0xff]
  %v883 = vld [vmem:[%s3 + $0xe0] sm:$0xf]
  %v884 = vld [vmem:[%s3 + $0xe4] sm:$0xff]
  %v885 = vld [vmem:[%s3 + $0xec] sm:$0xf]
  %v886 = vld [vmem:[%s3 + $0xf0] sm:$0xff]
  %v887 = vld [vmem:[%s3 + $0xf8] sm:$0xf]
  %v888 = vld [vmem:[%s3 + $0xfc] sm:$0xff]
  %v889 = vld [vmem:[%s3 + $0x104] sm:$0xf]
  %v890 = vld [vmem:[%s3 + $0x108] sm:$0xff]
  %v891 = vld [vmem:[%s3 + $0x110] sm:$0xf]
  %v892 = vld [vmem:[%s3 + $0x114] sm:$0xff]
  %v893 = vld [vmem:[%s3 + $0x11c] sm:$0xf]
  %v894 = vld [vmem:[%s3 + $0x120] sm:$0xff]
  %v895 = vld [vmem:[%s3 + $0x128] sm:$0xf]
  %v896 = vld [vmem:[%s3 + $0x12c] sm:$0xff]
  %v897 = vld [vmem:[%s3 + $0x134] sm:$0xf]
  %v898 = vld [vmem:[%s3 + $0x138] sm:$0xff]
  %v899 = vld [vmem:[%s3 + $0x140] sm:$0xf]
  %v900 = vld [vmem:[%s3 + $0x144] sm:$0xff]
  %v901 = vld [vmem:[%s3 + $0x14c] sm:$0xf]
  %v902 = vld [vmem:[%s3 + $0x150] sm:$0xff]
  %v903 = vld [vmem:[%s3 + $0x158] sm:$0xf]
  %v904 = vld [vmem:[%s3 + $0x15c] sm:$0xff]
  %v905 = vld [vmem:[%s3 + $0x164] sm:$0xf]
  %v906 = vld [vmem:[%s3 + $0x168] sm:$0xff]
  %v907 = vld [vmem:[%s3 + $0x170] sm:$0xf]
  %v908 = vld [vmem:[%s3 + $0x174] sm:$0xff]
  %v909 = vld [vmem:[%s3 + $0x17c] sm:$0xf]
  %v910 = vld [vmem:[%s3 + $0x180] sm:$0xff]
  %v911 = vld [vmem:[%s3 + $0x188] sm:$0xf]
  %v912 = vld [vmem:[%s3 + $0x18c] sm:$0xff]
  %v913 = vld [vmem:[%s3 + $0x194] sm:$0xf]
  %v914 = vld [vmem:[%s3 + $0x198] sm:$0xff]
  %v915 = vld [vmem:[%s3 + $0x1a0] sm:$0xf]
  %v916 = vld [vmem:[%s3 + $0x1a4] sm:$0xff]
  %v917 = vld [vmem:[%s3 + $0x1ac] sm:$0xf]
  %v918 = vld [vmem:[%s3 + $0x1b0] sm:$0xff]
  %v919 = vld [vmem:[%s3 + $0x1b8] sm:$0xf]
  %v920 = vld [vmem:[%s3 + $0x1bc] sm:$0xff]
  %v921 = vld [vmem:[%s3 + $0x1c4] sm:$0xf]
  %v922 = vld [vmem:[%s3 + $0x1c8] sm:$0xff]
  %v923 = vld [vmem:[%s3 + $0x1d0] sm:$0xf]
  %v924 = vld [vmem:[%s3 + $0x1d4] sm:$0xff]
  %v925 = vld [vmem:[%s3 + $0x1dc] sm:$0xf]
  %v926 = vld [vmem:[%s3 + $0x1e0] sm:$0xff]
  %v927 = vld [vmem:[%s3 + $0x1e8] sm:$0xf]
  %v928 = vld [vmem:[%s3 + $0x1ec] sm:$0xff]
  %v929 = vld [vmem:[%s3 + $0x1f4] sm:$0xf]
  %v930 = vld [vmem:[%s3 + $0x1f8] sm:$0xff]
  %v931 = vld [vmem:[%s3 + $0x200] sm:$0xf]
  %v932 = vld [vmem:[%s3 + $0x204] sm:$0xff]
  %v933 = vld [vmem:[%s3 + $0x20c] sm:$0xf]
  %v934 = vld [vmem:[%s3 + $0x210] sm:$0xff]
  %v935 = vld [vmem:[%s3 + $0x218] sm:$0xf]
  %v936 = vld [vmem:[%s3 + $0x21c] sm:$0xff]
  %v937 = vld [vmem:[%s3 + $0x224] sm:$0xf]
  %v938 = vld [vmem:[%s3 + $0x228] sm:$0xff]
  %v939 = vld [vmem:[%s3 + $0x230] sm:$0xf]
  %v940 = vld [vmem:[%s3 + $0x234] sm:$0xff]
  %v941 = vld [vmem:[%s3 + $0x23c] sm:$0xf]
  %v942 = vld [vmem:[%s3 + $0x240] sm:$0xff]
  %v943 = vld [vmem:[%s3 + $0x248] sm:$0xf]
  %v944 = vld [vmem:[%s3 + $0x24c] sm:$0xff]
  %v945 = vld [vmem:[%s3 + $0x254] sm:$0xf]
  %v946 = vld [vmem:[%s3 + $0x258] sm:$0xff]
  %v947 = vld [vmem:[%s3 + $0x260] sm:$0xf]
  %v948 = vld [vmem:[%s3 + $0x264] sm:$0xff]
  %v949 = vld [vmem:[%s3 + $0x26c] sm:$0xf]
  %v950 = vld [vmem:[%s3 + $0x270] sm:$0xff]
  %v951 = vld [vmem:[%s3 + $0x278] sm:$0xf]
  %v952 = vld [vmem:[%s3 + $0x27c] sm:$0xff]
  %v953 = vld [vmem:[%s3 + $0x284] sm:$0xf]
  %v954 = vld [vmem:[%s3 + $0x288] sm:$0xff]
  %v955 = vld [vmem:[%s3 + $0x290] sm:$0xf]
  %v956 = vld [vmem:[%s3 + $0x294] sm:$0xff]
  %v957 = vld [vmem:[%s3 + $0x29c] sm:$0xf]
  %v958 = vld [vmem:[%s3 + $0x2a0] sm:$0xff]
  %v959 = vld [vmem:[%s3 + $0x2a8] sm:$0xf]
  %v960 = vld [vmem:[%s3 + $0x2ac] sm:$0xff]
  %v961 = vld [vmem:[%s3 + $0x2b4] sm:$0xf]
  %v962 = vld [vmem:[%s3 + $0x2b8] sm:$0xff]
  %v963 = vld [vmem:[%s3 + $0x2c0] sm:$0xf]
  %v964 = vld [vmem:[%s3 + $0x2c4] sm:$0xff]
  %v965 = vld [vmem:[%s3 + $0x2cc] sm:$0xf]
  %v966 = vld [vmem:[%s3 + $0x2d0] sm:$0xff]
  %v967 = vld [vmem:[%s3 + $0x2d8] sm:$0xf]
  %v968 = vld [vmem:[%s3 + $0x2dc] sm:$0xff]
  %v969 = vld [vmem:[%s3 + $0x2e4] sm:$0xf]
  %v970 = vld [vmem:[%s3 + $0x2e8] sm:$0x33]
  %v971 = vld [vmem:[%s3 + $0x2f0] sm:$0x3]
  %v972 = vld [vmem:[%s4] sm:$0x7]
  %v974 = vlaneseq
  %v975 = vshrl.u32 %v974, 7
  %v976 = vsub.s32 0, %v975
  %v977 = vrot.slane %v972, %v976
  %v978 = vlaneseq
  %v979 = vshrl.u32 %v978, 7
  %v980 = vsub.s32 1, %v979
  %v981 = vrot.slane %v972, %v980
  %v982 = vlaneseq
  %v983 = vshrl.u32 %v982, 7
  %v984 = vsub.s32 2, %v983
  %v985 = vrot.slane %v972, %v984
  %v1115 = vunpack.c.l.b16 %v846
  %v1116 = vunpack.c.h.b16 %v846
  %v1117 = vunpack.c.l.b16 %v847
  %v1118 = vunpack.c.l.b16 %v848
  %v1119 = vunpack.c.h.b16 %v848
  %v1120 = vunpack.c.l.b16 %v849
  %v1121 = vunpack.c.l.b16 %v850
  %v1122 = vunpack.c.h.b16 %v850
  %v1123 = vunpack.c.l.b16 %v851
  %v1124 = vunpack.c.l.b16 %v852
  %v1125 = vunpack.c.h.b16 %v852
  %v1126 = vunpack.c.l.b16 %v853
  %v1127 = vunpack.c.l.b16 %v854
  %v1128 = vunpack.c.h.b16 %v854
  %v1129 = vunpack.c.l.b16 %v855
  %v1130 = vunpack.c.l.b16 %v856
  %v1131 = vunpack.c.h.b16 %v856
  %v1132 = vunpack.c.l.b16 %v857
  %v1133 = vunpack.c.l.b16 %v858
  %v1134 = vunpack.c.h.b16 %v858
  %v1135 = vunpack.c.l.b16 %v859
  %v1136 = vunpack.c.l.b16 %v860
  %v1137 = vunpack.c.h.b16 %v860
  %v1138 = vunpack.c.l.b16 %v861
  %v1139 = vunpack.c.l.b16 %v862
  %v1140 = vunpack.c.h.b16 %v862
  %v1141 = vunpack.c.l.b16 %v863
  %v1142 = vunpack.c.l.b16 %v864
  %v1143 = vunpack.c.h.b16 %v864
  %v1144 = vunpack.c.l.b16 %v865
  %v1145 = vunpack.c.l.b16 %v866
  %v1146 = vunpack.c.h.b16 %v866
  %v1147 = vunpack.c.l.b16 %v867
  %v1148 = vunpack.c.l.b16 %v868
  %v1149 = vunpack.c.h.b16 %v868
  %v1150 = vunpack.c.l.b16 %v869
  %v1151 = vunpack.c.l.b16 %v870
  %v1152 = vunpack.c.h.b16 %v870
  %v1153 = vunpack.c.l.b16 %v871
  %v1154 = vunpack.c.l.b16 %v872
  %v1155 = vunpack.c.h.b16 %v872
  %v1156 = vunpack.c.l.b16 %v873
  %v1157 = vunpack.c.l.b16 %v874
  %v1158 = vunpack.c.h.b16 %v874
  %v1159 = vunpack.c.l.b16 %v875
  %v1160 = vunpack.c.l.b16 %v876
  %v1161 = vunpack.c.h.b16 %v876
  %v1162 = vunpack.c.l.b16 %v877
  %v1163 = vunpack.c.l.b16 %v878
  %v1164 = vunpack.c.h.b16 %v878
  %v1165 = vunpack.c.l.b16 %v879
  %v1166 = vunpack.c.l.b16 %v880
  %v1167 = vunpack.c.h.b16 %v880
  %v1168 = vunpack.c.l.b16 %v881
  %v1169 = vunpack.c.l.b16 %v882
  %v1170 = vunpack.c.h.b16 %v882
  %v1171 = vunpack.c.l.b16 %v883
  %v1172 = vunpack.c.l.b16 %v884
  %v1173 = vunpack.c.h.b16 %v884
  %v1174 = vunpack.c.l.b16 %v885
  %v1175 = vunpack.c.l.b16 %v886
  %v1176 = vunpack.c.h.b16 %v886
  %v1177 = vunpack.c.l.b16 %v887
  %v1178 = vunpack.c.l.b16 %v888
  %v1179 = vunpack.c.h.b16 %v888
  %v1180 = vunpack.c.l.b16 %v889
  %v1181 = vunpack.c.l.b16 %v890
  %v1182 = vunpack.c.h.b16 %v890
  %v1183 = vunpack.c.l.b16 %v891
  %v1184 = vunpack.c.l.b16 %v892
  %v1185 = vunpack.c.h.b16 %v892
  %v1186 = vunpack.c.l.b16 %v893
  %v1187 = vunpack.c.l.b16 %v894
  %v1188 = vunpack.c.h.b16 %v894
  %v1189 = vunpack.c.l.b16 %v895
  %v1190 = vunpack.c.l.b16 %v896
  %v1191 = vunpack.c.h.b16 %v896
  %v1192 = vunpack.c.l.b16 %v897
  %v1193 = vunpack.c.l.b16 %v898
  %v1194 = vunpack.c.h.b16 %v898
  %v1195 = vunpack.c.l.b16 %v899
  %v1196 = vunpack.c.l.b16 %v900
  %v1197 = vunpack.c.h.b16 %v900
  %v1198 = vunpack.c.l.b16 %v901
  %v1199 = vunpack.c.l.b16 %v902
  %v1200 = vunpack.c.h.b16 %v902
  %v1201 = vunpack.c.l.b16 %v903
  %v1202 = vunpack.c.l.b16 %v904
  %v1203 = vunpack.c.h.b16 %v904
  %v1204 = vunpack.c.l.b16 %v905
  %v1205 = vunpack.c.l.b16 %v906
  %v1206 = vunpack.c.h.b16 %v906
  %v1207 = vunpack.c.l.b16 %v907
  %v1208 = vunpack.c.l.b16 %v908
  %v1209 = vunpack.c.h.b16 %v908
  %v1210 = vunpack.c.l.b16 %v909
  %v1211 = vunpack.c.l.b16 %v910
  %v1212 = vunpack.c.h.b16 %v910
  %v1213 = vunpack.c.l.b16 %v911
  %v1214 = vunpack.c.l.b16 %v912
  %v1215 = vunpack.c.h.b16 %v912
  %v1216 = vunpack.c.l.b16 %v913
  %v1217 = vunpack.c.l.b16 %v914
  %v1218 = vunpack.c.h.b16 %v914
  %v1219 = vunpack.c.l.b16 %v915
  %v1220 = vunpack.c.l.b16 %v916
  %v1221 = vunpack.c.h.b16 %v916
  %v1222 = vunpack.c.l.b16 %v917
  %v1223 = vunpack.c.l.b16 %v918
  %v1224 = vunpack.c.h.b16 %v918
  %v1225 = vunpack.c.l.b16 %v919
  %v1226 = vunpack.c.l.b16 %v920
  %v1227 = vunpack.c.h.b16 %v920
  %v1228 = vunpack.c.l.b16 %v921
  %v1229 = vunpack.c.l.b16 %v922
  %v1230 = vunpack.c.h.b16 %v922
  %v1231 = vunpack.c.l.b16 %v923
  %v1232 = vunpack.c.l.b16 %v924
  %v1233 = vunpack.c.h.b16 %v924
  %v1234 = vunpack.c.l.b16 %v925
  %v1235 = vunpack.c.l.b16 %v926
  %v1236 = vunpack.c.h.b16 %v926
  %v1237 = vunpack.c.l.b16 %v927
  %v1238 = vunpack.c.l.b16 %v928
  %v1239 = vunpack.c.h.b16 %v928
  %v1240 = vunpack.c.l.b16 %v929
  %v1241 = vunpack.c.l.b16 %v930
  %v1242 = vunpack.c.h.b16 %v930
  %v1243 = vunpack.c.l.b16 %v931
  %v1244 = vunpack.c.l.b16 %v932
  %v1245 = vunpack.c.h.b16 %v932
  %v1246 = vunpack.c.l.b16 %v933
  %v1247 = vunpack.c.l.b16 %v934
  %v1248 = vunpack.c.h.b16 %v934
  %v1249 = vunpack.c.l.b16 %v935
  %v1250 = vunpack.c.l.b16 %v936
  %v1251 = vunpack.c.h.b16 %v936
  %v1252 = vunpack.c.l.b16 %v937
  %v1253 = vunpack.c.l.b16 %v938
  %v1254 = vunpack.c.h.b16 %v938
  %v1255 = vunpack.c.l.b16 %v939
  %v1256 = vunpack.c.l.b16 %v940
  %v1257 = vunpack.c.h.b16 %v940
  %v1258 = vunpack.c.l.b16 %v941
  %v1259 = vunpack.c.l.b16 %v942
  %v1260 = vunpack.c.h.b16 %v942
  %v1261 = vunpack.c.l.b16 %v943
  %v1262 = vunpack.c.l.b16 %v944
  %v1263 = vunpack.c.h.b16 %v944
  %v1264 = vunpack.c.l.b16 %v945
  %v1265 = vunpack.c.l.b16 %v946
  %v1266 = vunpack.c.h.b16 %v946
  %v1267 = vunpack.c.l.b16 %v947
  %v1268 = vunpack.c.l.b16 %v948
  %v1269 = vunpack.c.h.b16 %v948
  %v1270 = vunpack.c.l.b16 %v949
  %v1271 = vunpack.c.l.b16 %v950
  %v1272 = vunpack.c.h.b16 %v950
  %v1273 = vunpack.c.l.b16 %v951
  %v1274 = vunpack.c.l.b16 %v952
  %v1275 = vunpack.c.h.b16 %v952
  %v1276 = vunpack.c.l.b16 %v953
  %v1277 = vunpack.c.l.b16 %v954
  %v1278 = vunpack.c.h.b16 %v954
  %v1279 = vunpack.c.l.b16 %v955
  %v1280 = vunpack.c.l.b16 %v956
  %v1281 = vunpack.c.h.b16 %v956
  %v1282 = vunpack.c.l.b16 %v957
  %v1283 = vunpack.c.l.b16 %v958
  %v1284 = vunpack.c.h.b16 %v958
  %v1285 = vunpack.c.l.b16 %v959
  %v1286 = vunpack.c.l.b16 %v960
  %v1287 = vunpack.c.h.b16 %v960
  %v1288 = vunpack.c.l.b16 %v961
  %v1289 = vunpack.c.l.b16 %v962
  %v1290 = vunpack.c.h.b16 %v962
  %v1291 = vunpack.c.l.b16 %v963
  %v1292 = vunpack.c.l.b16 %v964
  %v1293 = vunpack.c.h.b16 %v964
  %v1294 = vunpack.c.l.b16 %v965
  %v1295 = vunpack.c.l.b16 %v966
  %v1296 = vunpack.c.h.b16 %v966
  %v1297 = vunpack.c.l.b16 %v967
  %v1298 = vunpack.c.l.b16 %v968
  %v1299 = vunpack.c.h.b16 %v968
  %v1300 = vunpack.c.l.b16 %v969
  %v1301 = vunpack.c.l.b16 %v970
  %v1302 = vunpack.c.h.b16 %v970
  %v1303 = vunpack.c.l.b16 %v971
  %v1304 = vpack.c.b16 %v1118, %v1115
  %v1305 = vpack.c.b16 %v1119, %v1116
  %v1306 = vpack.c.b16 %v1120, %v1117
  %v1307 = vpack.c.b16 %v1124, %v1121
  %v1308 = vpack.c.b16 %v1125, %v1122
  %v1309 = vpack.c.b16 %v1126, %v1123
  %v1310 = vpack.c.b16 %v1130, %v1127
  %v1311 = vpack.c.b16 %v1131, %v1128
  %v1312 = vpack.c.b16 %v1132, %v1129
  %v1313 = vpack.c.b16 %v1136, %v1133
  %v1314 = vpack.c.b16 %v1137, %v1134
  %v1315 = vpack.c.b16 %v1138, %v1135
  %v1316 = vpack.c.b16 %v1142, %v1139
  %v1317 = vpack.c.b16 %v1143, %v1140
  %v1318 = vpack.c.b16 %v1144, %v1141
  %v1319 = vpack.c.b16 %v1148, %v1145
  %v1320 = vpack.c.b16 %v1149, %v1146
  %v1321 = vpack.c.b16 %v1150, %v1147
  %v1322 = vpack.c.b16 %v1154, %v1151
  %v1323 = vpack.c.b16 %v1155, %v1152
  %v1324 = vpack.c.b16 %v1156, %v1153
  %v1325 = vpack.c.b16 %v1160, %v1157
  %v1326 = vpack.c.b16 %v1161, %v1158
  %v1327 = vpack.c.b16 %v1162, %v1159
  %v1328 = vpack.c.b16 %v1166, %v1163
  %v1329 = vpack.c.b16 %v1167, %v1164
  %v1330 = vpack.c.b16 %v1168, %v1165
  %v1331 = vpack.c.b16 %v1172, %v1169
  %v1332 = vpack.c.b16 %v1173, %v1170
  %v1333 = vpack.c.b16 %v1174, %v1171
  %v1334 = vpack.c.b16 %v1178, %v1175
  %v1335 = vpack.c.b16 %v1179, %v1176
  %v1336 = vpack.c.b16 %v1180, %v1177
  %v1337 = vpack.c.b16 %v1184, %v1181
  %v1338 = vpack.c.b16 %v1185, %v1182
  %v1339 = vpack.c.b16 %v1186, %v1183
  %v1340 = vpack.c.b16 %v1190, %v1187
  %v1341 = vpack.c.b16 %v1191, %v1188
  %v1342 = vpack.c.b16 %v1192, %v1189
  %v1343 = vpack.c.b16 %v1196, %v1193
  %v1344 = vpack.c.b16 %v1197, %v1194
  %v1345 = vpack.c.b16 %v1198, %v1195
  %v1346 = vpack.c.b16 %v1202, %v1199
  %v1347 = vpack.c.b16 %v1203, %v1200
  %v1348 = vpack.c.b16 %v1204, %v1201
  %v1349 = vpack.c.b16 %v1208, %v1205
  %v1350 = vpack.c.b16 %v1209, %v1206
  %v1351 = vpack.c.b16 %v1210, %v1207
  %v1352 = vpack.c.b16 %v1214, %v1211
  %v1353 = vpack.c.b16 %v1215, %v1212
  %v1354 = vpack.c.b16 %v1216, %v1213
  %v1355 = vpack.c.b16 %v1220, %v1217
  %v1356 = vpack.c.b16 %v1221, %v1218
  %v1357 = vpack.c.b16 %v1222, %v1219
  %v1358 = vpack.c.b16 %v1226, %v1223
  %v1359 = vpack.c.b16 %v1227, %v1224
  %v1360 = vpack.c.b16 %v1228, %v1225
  %v1361 = vpack.c.b16 %v1232, %v1229
  %v1362 = vpack.c.b16 %v1233, %v1230
  %v1363 = vpack.c.b16 %v1234, %v1231
  %v1364 = vpack.c.b16 %v1238, %v1235
  %v1365 = vpack.c.b16 %v1239, %v1236
  %v1366 = vpack.c.b16 %v1240, %v1237
  %v1367 = vpack.c.b16 %v1244, %v1241
  %v1368 = vpack.c.b16 %v1245, %v1242
  %v1369 = vpack.c.b16 %v1246, %v1243
  %v1370 = vpack.c.b16 %v1250, %v1247
  %v1371 = vpack.c.b16 %v1251, %v1248
  %v1372 = vpack.c.b16 %v1252, %v1249
  %v1373 = vpack.c.b16 %v1256, %v1253
  %v1374 = vpack.c.b16 %v1257, %v1254
  %v1375 = vpack.c.b16 %v1258, %v1255
  %v1376 = vpack.c.b16 %v1262, %v1259
  %v1377 = vpack.c.b16 %v1263, %v1260
  %v1378 = vpack.c.b16 %v1264, %v1261
  %v1379 = vpack.c.b16 %v1268, %v1265
  %v1380 = vpack.c.b16 %v1269, %v1266
  %v1381 = vpack.c.b16 %v1270, %v1267
  %v1382 = vpack.c.b16 %v1274, %v1271
  %v1383 = vpack.c.b16 %v1275, %v1272
  %v1384 = vpack.c.b16 %v1276, %v1273
  %v1385 = vpack.c.b16 %v1280, %v1277
  %v1386 = vpack.c.b16 %v1281, %v1278
  %v1387 = vpack.c.b16 %v1282, %v1279
  %v1388 = vpack.c.b16 %v1286, %v1283
  %v1389 = vpack.c.b16 %v1287, %v1284
  %v1390 = vpack.c.b16 %v1288, %v1285
  %v1391 = vpack.c.b16 %v1292, %v1289
  %v1392 = vpack.c.b16 %v1293, %v1290
  %v1393 = vpack.c.b16 %v1294, %v1291
  %v1394 = vpack.c.b16 %v1298, %v1295
  %v1395 = vpack.c.b16 %v1299, %v1296
  %v1396 = vpack.c.b16 %v1300, %v1297
  %v1397 = vpack.c.b16 %v1301, %v1301
  %v1398 = vpack.c.b16 %v1302, %v1302
  %v1399 = vpack.c.b16 %v1303, %v1303
  %vm1493 = vcmask 949248
  %v1495 = vsel %vm1493, %v845, 0
  %vm1497 = vcmask 1041408
  %v1499 = vsel %vm1497, %v1397, 0
  %v1502 = vsel %vm1497, %v1398, 0
  %v1505 = vsel %vm1497, %v1399, 0
  %1507 = vmatprep.subr.bf16.mxu0 %v1305
  %1508 = vmatpush1.bf16.msra.mxu0 %v1304
  %1509 = vmatprep.subr.bf16.mxu0 %v1308
  %1510 = vmatpush1.bf16.msra.mxu0 %v1307
  %1511 = vmatprep.subr.bf16.mxu0 %v1311
  %1512 = vmatpush1.bf16.msra.mxu0 %v1310
  %1513 = vmatprep.subr.bf16.mxu0 %v1314
  %1514 = vmatpush1.bf16.msra.mxu0 %v1313
  %1515 = vmatprep.subr.bf16.mxu0 %v1317
  %1516 = vmatpush1.bf16.msra.mxu0 %v1316
  %1517 = vmatprep.subr.bf16.mxu0 %v1320
  %1518 = vmatpush1.bf16.msra.mxu0 %v1319
  %1519 = vmatprep.subr.bf16.mxu0 %v1323
  %1520 = vmatpush1.bf16.msra.mxu0 %v1322
  %1521 = vmatprep.subr.bf16.mxu0 %v1326
  %1522 = vmatpush1.bf16.msra.mxu0 %v1325
  %1523 = vmatprep.subr.bf16.mxu0 %v1329
  %1524 = vmatpush1.bf16.msra.mxu0 %v1328
  %1525 = vmatprep.subr.bf16.mxu0 %v1332
  %1526 = vmatpush1.bf16.msra.mxu0 %v1331
  %1527 = vmatprep.subr.bf16.mxu0 %v1335
  %1528 = vmatpush1.bf16.msra.mxu0 %v1334
  %1529 = vmatprep.subr.bf16.mxu0 %v1338
  %1530 = vmatpush1.bf16.msra.mxu0 %v1337
  %1531 = vmatprep.subr.bf16.mxu0 %v1341
  %1532 = vmatpush1.bf16.msra.mxu0 %v1340
  %1533 = vmatprep.subr.bf16.mxu0 %v1344
  %1534 = vmatpush1.bf16.msra.mxu0 %v1343
  %1535 = vmatprep.subr.bf16.mxu0 %v1347
  %1536 = vmatpush1.bf16.msra.mxu0 %v1346
  %1537 = vmatprep.subr.bf16.mxu0 %v1350
  %1538 = vmatpush1.bf16.msra.mxu0 %v1349
  %1539 = vmatprep.mubr.bf16.mxu0 %v843
  %1540 = vmatmul.mubr.bf16.gmra.mrb[0].mxu0 %v842
  %v1541 = vpop.f32.mrb[0].mxu0
  %v1542 = vadd.f32 %v977, %v1541
  %v1543 = vpop.f32.mrb[0].mxu0
  %v1544 = vadd.f32 %v981, %v1543
  %v1545 = vpop.f32.mrb[0].mxu0
  %v1546 = vpop.f32.mrb[0].mxu0
  %1547 = vdwg.mxu0
  %1548 = vmatprep.subr.bf16.mxu0 %v1353
  %1549 = vmatpush1.bf16.msra.mxu0 %v1352
  %1550 = vmatprep.subr.bf16.mxu0 %v1356
  %1551 = vmatpush1.bf16.msra.mxu0 %v1355
  %1552 = vmatprep.subr.bf16.mxu0 %v1359
  %1553 = vmatpush1.bf16.msra.mxu0 %v1358
  %1554 = vmatprep.subr.bf16.mxu0 %v1362
  %1555 = vmatpush1.bf16.msra.mxu0 %v1361
  %1556 = vmatprep.subr.bf16.mxu0 %v1365
  %1557 = vmatpush1.bf16.msra.mxu0 %v1364
  %1558 = vmatprep.subr.bf16.mxu0 %v1368
  %1559 = vmatpush1.bf16.msra.mxu0 %v1367
  %1560 = vmatprep.subr.bf16.mxu0 %v1371
  %1561 = vmatpush1.bf16.msra.mxu0 %v1370
  %1562 = vmatprep.subr.bf16.mxu0 %v1374
  %1563 = vmatpush1.bf16.msra.mxu0 %v1373
  %1564 = vmatprep.subr.bf16.mxu0 %v1377
  %1565 = vmatpush1.bf16.msra.mxu0 %v1376
  %1566 = vmatprep.subr.bf16.mxu0 %v1380
  %1567 = vmatpush1.bf16.msra.mxu0 %v1379
  %1568 = vmatprep.subr.bf16.mxu0 %v1383
  %1569 = vmatpush1.bf16.msra.mxu0 %v1382
  %1570 = vmatprep.subr.bf16.mxu0 %v1386
  %1571 = vmatpush1.bf16.msra.mxu0 %v1385
  %1572 = vmatprep.subr.bf16.mxu0 %v1389
  %1573 = vmatpush1.bf16.msra.mxu0 %v1388
  %1574 = vmatprep.subr.bf16.mxu0 %v1392
  %1575 = vmatpush1.bf16.msra.mxu0 %v1391
  %1576 = vmatprep.subr.bf16.mxu0 %v1395
  %1577 = vmatpush1.bf16.msra.mxu0 %v1394
  %1578 = vmatprep.subr.bf16.mxu0 %v1502
  %1579 = vmatpush1.bf16.msra.mxu0 %v1499
  %1580 = vmatprep.mubr.bf16.mxu0 %v1495
  %1581 = vmatmul.mubr.bf16.gmra.mrb[0].mxu0 %v844
  %v1582 = vpop.f32.mrb[0].mxu0
  %v1583 = vadd.f32 %v1542, %v1582
  %v1584 = vpop.f32.mrb[0].mxu0
  %v1585 = vadd.f32 %v1544, %v1584
  %v1586 = vpop.f32.mrb[0].mxu0
  %v1587 = vpop.f32.mrb[0].mxu0
  %1588 = vdwg.mxu0
  %1589 = vmatprep.subr.bf16.mxu0 0
  %1590 = vmatpush1.bf16.msra.mxu0 %v1306
  %1591 = vmatprep.subr.bf16.mxu0 0
  %1592 = vmatpush1.bf16.msra.mxu0 %v1309
  %1593 = vmatprep.subr.bf16.mxu0 0
  %1594 = vmatpush1.bf16.msra.mxu0 %v1312
  %1595 = vmatprep.subr.bf16.mxu0 0
  %1596 = vmatpush1.bf16.msra.mxu0 %v1315
  %1597 = vmatprep.subr.bf16.mxu0 0
  %1598 = vmatpush1.bf16.msra.mxu0 %v1318
  %1599 = vmatprep.subr.bf16.mxu0 0
  %1600 = vmatpush1.bf16.msra.mxu0 %v1321
  %1601 = vmatprep.subr.bf16.mxu0 0
  %1602 = vmatpush1.bf16.msra.mxu0 %v1324
  %1603 = vmatprep.subr.bf16.mxu0 0
  %1604 = vmatpush1.bf16.msra.mxu0 %v1327
  %1605 = vmatprep.subr.bf16.mxu0 0
  %1606 = vmatpush1.bf16.msra.mxu0 %v1330
  %1607 = vmatprep.subr.bf16.mxu0 0
  %1608 = vmatpush1.bf16.msra.mxu0 %v1333
  %1609 = vmatprep.subr.bf16.mxu0 0
  %1610 = vmatpush1.bf16.msra.mxu0 %v1336
  %1611 = vmatprep.subr.bf16.mxu0 0
  %1612 = vmatpush1.bf16.msra.mxu0 %v1339
  %1613 = vmatprep.subr.bf16.mxu0 0
  %1614 = vmatpush1.bf16.msra.mxu0 %v1342
  %1615 = vmatprep.subr.bf16.mxu0 0
  %1616 = vmatpush1.bf16.msra.mxu0 %v1345
  %1617 = vmatprep.subr.bf16.mxu0 0
  %1618 = vmatpush1.bf16.msra.mxu0 %v1348
  %1619 = vmatprep.subr.bf16.mxu0 0
  %1620 = vmatpush1.bf16.msra.mxu0 %v1351
  %1621 = vmatprep.mubr.bf16.mxu0 %v843
  %1622 = vmatmul.mubr.bf16.gmra.mrb[0].mxu0 %v842
  %v1623 = vpop.f32.mrb[0].mxu0
  %v1624 = vadd.f32 %v985, %v1623
  %v1625 = vpop.f32.mrb[0].mxu0
  %v1626 = vpop.f32.mrb[0].mxu0
  %v1627 = vpop.f32.mrb[0].mxu0
  %1628 = vdwg.mxu0
  %1629 = vmatprep.subr.bf16.mxu0 0
  %1630 = vmatpush1.bf16.msra.mxu0 %v1354
  %1631 = vmatprep.subr.bf16.mxu0 0
  %1632 = vmatpush1.bf16.msra.mxu0 %v1357
  %1633 = vmatprep.subr.bf16.mxu0 0
  %1634 = vmatpush1.bf16.msra.mxu0 %v1360
  %1635 = vmatprep.subr.bf16.mxu0 0
  %1636 = vmatpush1.bf16.msra.mxu0 %v1363
  %1637 = vmatprep.subr.bf16.mxu0 0
  %1638 = vmatpush1.bf16.msra.mxu0 %v1366
  %1639 = vmatprep.subr.bf16.mxu0 0
  %1640 = vmatpush1.bf16.msra.mxu0 %v1369
  %1641 = vmatprep.subr.bf16.mxu0 0
  %1642 = vmatpush1.bf16.msra.mxu0 %v1372
  %1643 = vmatprep.subr.bf16.mxu0 0
  %1644 = vmatpush1.bf16.msra.mxu0 %v1375
  %1645 = vmatprep.subr.bf16.mxu0 0
  %1646 = vmatpush1.bf16.msra.mxu0 %v1378
  %1647 = vmatprep.subr.bf16.mxu0 0
  %1648 = vmatpush1.bf16.msra.mxu0 %v1381
  %1649 = vmatprep.subr.bf16.mxu0 0
  %1650 = vmatpush1.bf16.msra.mxu0 %v1384
  %1651 = vmatprep.subr.bf16.mxu0 0
  %1652 = vmatpush1.bf16.msra.mxu0 %v1387
  %1653 = vmatprep.subr.bf16.mxu0 0
  %1654 = vmatpush1.bf16.msra.mxu0 %v1390
  %1655 = vmatprep.subr.bf16.mxu0 0
  %1656 = vmatpush1.bf16.msra.mxu0 %v1393
  %1657 = vmatprep.subr.bf16.mxu0 0
  %1658 = vmatpush1.bf16.msra.mxu0 %v1396
  %1659 = vmatprep.subr.bf16.mxu0 0
  %1660 = vmatpush1.bf16.msra.mxu0 %v1505
  %1661 = vmatprep.mubr.bf16.mxu0 %v1495
  %1662 = vmatmul.mubr.bf16.gmra.mrb[0].mxu0 %v844
  %v1663 = vpop.f32.mrb[0].mxu0
  %v1664 = vadd.f32 %v1624, %v1663
  %v1665 = vpop.f32.mrb[0].mxu0
  %v1666 = vpop.f32.mrb[0].mxu0
  %v1667 = vpop.f32.mrb[0].mxu0
  %1668 = vdwg.mxu0
  %v1669 = vmax.f32 %v1583, 0.0
  %v1670 = vmax.f32 %v1585, 0.0
  %v1671 = vmax.f32 %v1664, 0.0
  %v1672 = vpack.c.bf16 %v1669, %v1669
  %v1673 = vpack.c.bf16 %v1670, %v1670
  %v1674 = vpack.c.bf16 %v1671, %v1671
  %v1675 = vld [vmem:[%s5] sm:$0xf]
  %v1676 = vld [vmem:[%s5 + $0x4] sm:$0xf]
  %v1677 = vld [vmem:[%s5 + $0x8] sm:$0xf]
  %v1678 = vld [vmem:[%s5 + $0xc] sm:$0xf]
  %v1679 = vld [vmem:[%s5 + $0x10] sm:$0xf]
  %v1680 = vld [vmem:[%s5 + $0x14] sm:$0xf]
  %v1681 = vld [vmem:[%s5 + $0x18] sm:$0xf]
  %v1682 = vld [vmem:[%s5 + $0x1c] sm:$0xf]
  %v1683 = vld [vmem:[%s5 + $0x20] sm:$0xf]
  %v1684 = vld [vmem:[%s5 + $0x24] sm:$0xf]
  %v1685 = vld [vmem:[%s5 + $0x28] sm:$0xf]
  %v1686 = vld [vmem:[%s5 + $0x2c] sm:$0xf]
  %v1687 = vld [vmem:[%s5 + $0x30] sm:$0xf]
  %v1688 = vld [vmem:[%s5 + $0x34] sm:$0xf]
  %v1689 = vld [vmem:[%s5 + $0x38] sm:$0xf]
  %v1690 = vld [vmem:[%s5 + $0x3c] sm:$0xf]
  %v1691 = vld [vmem:[%s5 + $0x40] sm:$0xf]
  %v1692 = vld [vmem:[%s5 + $0x44] sm:$0xf]
  %v1693 = vld [vmem:[%s5 + $0x48] sm:$0xf]
  %v1694 = vld [vmem:[%s5 + $0x4c] sm:$0xf]
  %v1695 = vld [vmem:[%s5 + $0x50] sm:$0xf]
  %v1696 = vld [vmem:[%s5 + $0x54] sm:$0xf]
  %v1697 = vld [vmem:[%s5 + $0x58] sm:$0xf]
  %v1698 = vld [vmem:[%s5 + $0x5c] sm:$0xf]
  %v1699 = vld [vmem:[%s5 + $0x60] sm:$0xf]
  %v1700 = vld [vmem:[%s5 + $0x64] sm:$0xf]
  %v1701 = vld [vmem:[%s5 + $0x68] sm:$0xf]
  %v1702 = vld [vmem:[%s5 + $0x6c] sm:$0xf]
  %v1703 = vld [vmem:[%s5 + $0x70] sm:$0xf]
  %v1704 = vld [vmem:[%s5 + $0x74] sm:$0xf]
  %v1705 = vld [vmem:[%s5 + $0x78] sm:$0xf]
  %v1706 = vld [vmem:[%s5 + $0x7c] sm:$0xf]
  %v1707 = vld [vmem:[%s5 + $0x80] sm:$0xf]
  %v1708 = vld [vmem:[%s5 + $0x84] sm:$0xf]
  %v1709 = vld [vmem:[%s5 + $0x88] sm:$0xf]
  %v1710 = vld [vmem:[%s5 + $0x8c] sm:$0xf]
  %v1711 = vld [vmem:[%s5 + $0x90] sm:$0xf]
  %v1712 = vld [vmem:[%s5 + $0x94] sm:$0x3]
  %v1713 = vld [vmem:[%s6] sm:$0x1]
  %v1715 = vlaneseq
  %v1716 = vshrl.u32 %v1715, 7
  %v1717 = vsub.s32 0, %v1716
  %v1718 = vrot.slane %v1713, %v1717
  %v1758 = vunpack.c.l.b16 %v1675
  %v1759 = vunpack.c.l.b16 %v1676
  %v1760 = vunpack.c.l.b16 %v1677
  %v1761 = vunpack.c.l.b16 %v1678
  %v1762 = vunpack.c.l.b16 %v1679
  %v1763 = vunpack.c.l.b16 %v1680
  %v1764 = vunpack.c.l.b16 %v1681
  %v1765 = vunpack.c.l.b16 %v1682
  %v1766 = vunpack.c.l.b16 %v1683
  %v1767 = vunpack.c.l.b16 %v1684
  %v1768 = vunpack.c.l.b16 %v1685
  %v1769 = vunpack.c.l.b16 %v1686
  %v1770 = vunpack.c.l.b16 %v1687
  %v1771 = vunpack.c.l.b16 %v1688
  %v1772 = vunpack.c.l.b16 %v1689
  %v1773 = vunpack.c.l.b16 %v1690
  %v1774 = vunpack.c.l.b16 %v1691
  %v1775 = vunpack.c.l.b16 %v1692
  %v1776 = vunpack.c.l.b16 %v1693
  %v1777 = vunpack.c.l.b16 %v1694
  %v1778 = vunpack.c.l.b16 %v1695
  %v1779 = vunpack.c.l.b16 %v1696
  %v1780 = vunpack.c.l.b16 %v1697
  %v1781 = vunpack.c.l.b16 %v1698
  %v1782 = vunpack.c.l.b16 %v1699
  %v1783 = vunpack.c.l.b16 %v1700
  %v1784 = vunpack.c.l.b16 %v1701
  %v1785 = vunpack.c.l.b16 %v1702
  %v1786 = vunpack.c.l.b16 %v1703
  %v1787 = vunpack.c.l.b16 %v1704
  %v1788 = vunpack.c.l.b16 %v1705
  %v1789 = vunpack.c.l.b16 %v1706
  %v1790 = vunpack.c.l.b16 %v1707
  %v1791 = vunpack.c.l.b16 %v1708
  %v1792 = vunpack.c.l.b16 %v1709
  %v1793 = vunpack.c.l.b16 %v1710
  %v1794 = vunpack.c.l.b16 %v1711
  %v1795 = vunpack.c.l.b16 %v1712
  %v1796 = vpack.c.b16 %v1759, %v1758
  %v1797 = vpack.c.b16 %v1761, %v1760
  %v1798 = vpack.c.b16 %v1763, %v1762
  %v1799 = vpack.c.b16 %v1765, %v1764
  %v1800 = vpack.c.b16 %v1767, %v1766
  %v1801 = vpack.c.b16 %v1769, %v1768
  %v1802 = vpack.c.b16 %v1771, %v1770
  %v1803 = vpack.c.b16 %v1773, %v1772
  %v1804 = vpack.c.b16 %v1775, %v1774
  %v1805 = vpack.c.b16 %v1777, %v1776
  %v1806 = vpack.c.b16 %v1779, %v1778
  %v1807 = vpack.c.b16 %v1781, %v1780
  %v1808 = vpack.c.b16 %v1783, %v1782
  %v1809 = vpack.c.b16 %v1785, %v1784
  %v1810 = vpack.c.b16 %v1787, %v1786
  %v1811 = vpack.c.b16 %v1789, %v1788
  %v1812 = vpack.c.b16 %v1791, %v1790
  %v1813 = vpack.c.b16 %v1793, %v1792
  %v1814 = vpack.c.b16 %v1795, %v1794
  %vm1833 = vcmask 359424
  %v1835 = vsel %vm1833, %v1674, 0
  %vm1837 = vcmask 1045504
  %v1839 = vsel %vm1837, %v1814, 0
  %1841 = vmatprep.subr.bf16.mxu0 0
  %1842 = vmatpush1.bf16.msra.mxu0 %v1796
  %1843 = vmatprep.subr.bf16.mxu0 0
  %1844 = vmatpush1.bf16.msra.mxu0 %v1797
  %1845 = vmatprep.subr.bf16.mxu0 0
  %1846 = vmatpush1.bf16.msra.mxu0 %v1798
  %1847 = vmatprep.subr.bf16.mxu0 0
  %1848 = vmatpush1.bf16.msra.mxu0 %v1799
  %1849 = vmatprep.subr.bf16.mxu0 0
  %1850 = vmatpush1.bf16.msra.mxu0 %v1800
  %1851 = vmatprep.subr.bf16.mxu0 0
  %1852 = vmatpush1.bf16.msra.mxu0 %v1801
  %1853 = vmatprep.subr.bf16.mxu0 0
  %1854 = vmatpush1.bf16.msra.mxu0 %v1802
  %1855 = vmatprep.subr.bf16.mxu0 0
  %1856 = vmatpush1.bf16.msra.mxu0 %v1803
  %1857 = vmatprep.subr.bf16.mxu0 0
  %1858 = vmatpush1.bf16.msra.mxu0 %v1804
  %1859 = vmatprep.subr.bf16.mxu0 0
  %1860 = vmatpush1.bf16.msra.mxu0 %v1805
  %1861 = vmatprep.subr.bf16.mxu0 0
  %1862 = vmatpush1.bf16.msra.mxu0 %v1806
  %1863 = vmatprep.subr.bf16.mxu0 0
  %1864 = vmatpush1.bf16.msra.mxu0 %v1807
  %1865 = vmatprep.subr.bf16.mxu0 0
  %1866 = vmatpush1.bf16.msra.mxu0 %v1808
  %1867 = vmatprep.subr.bf16.mxu0 0
  %1868 = vmatpush1.bf16.msra.mxu0 %v1809
  %1869 = vmatprep.subr.bf16.mxu0 0
  %1870 = vmatpush1.bf16.msra.mxu0 %v1810
  %1871 = vmatprep.subr.bf16.mxu0 0
  %1872 = vmatpush1.bf16.msra.mxu0 %v1811
  %1873 = vmatprep.mubr.bf16.mxu0 %v1673
  %1874 = vmatmul.mubr.bf16.gmra.mrb[0].mxu0 %v1672
  %v1875 = vpop.f32.mrb[0].mxu0
  %v1876 = vadd.f32 %v1718, %v1875
  %v1877 = vpop.f32.mrb[0].mxu0
  %v1878 = vpop.f32.mrb[0].mxu0
  %v1879 = vpop.f32.mrb[0].mxu0
  %1880 = vdwg.mxu0
  %1881 = vmatprep.subr.bf16.mxu0 0
  %1882 = vmatpush1.bf16.msra.mxu0 %v1812
  %1883 = vmatprep.subr.bf16.mxu0 0
  %1884 = vmatpush1.bf16.msra.mxu0 %v1813
  %1885 = vmatprep.subr.bf16.mxu0 0
  %1886 = vmatpush1.bf16.msra.mxu0 %v1839
  %1887 = vmatprep.subr.bf16.mxu0 0
  %1888 = vmatpush1.bf16.msra.mxu0 0
  %1889 = vmatprep.subr.bf16.mxu0 0
  %1890 = vmatpush1.bf16.msra.mxu0 0
  %1891 = vmatprep.subr.bf16.mxu0 0
  %1892 = vmatpush1.bf16.msra.mxu0 0
  %1893 = vmatprep.subr.bf16.mxu0 0
  %1894 = vmatpush1.bf16.msra.mxu0 0
  %1895 = vmatprep.subr.bf16.mxu0 0
  %1896 = vmatpush1.bf16.msra.mxu0 0
  %1897 = vmatprep.subr.bf16.mxu0 0
  %1898 = vmatpush1.bf16.msra.mxu0 0
  %1899 = vmatprep.subr.bf16.mxu0 0
  %1900 = vmatpush1.bf16.msra.mxu0 0
  %1901 = vmatprep.subr.bf16.mxu0 0
  %1902 = vmatpush1.bf16.msra.mxu0 0
  %1903 = vmatprep.subr.bf16.mxu0 0
  %1904 = vmatpush1.bf16.msra.mxu0 0
  %1905 = vmatprep.subr.bf16.mxu0 0
  %1906 = vmatpush1.bf16.msra.mxu0 0
  %1907 = vmatprep.subr.bf16.mxu0 0
  %1908 = vmatpush1.bf16.msra.mxu0 0
  %1909 = vmatprep.subr.bf16.mxu0 0
  %1910 = vmatpush1.bf16.msra.mxu0 0
  %1911 = vmatprep.subr.bf16.mxu0 0
  %1912 = vmatpush1.bf16.msra.mxu0 0
  %1913 = vmatprep.mubr.bf16.mxu0 0
  %1914 = vmatmul.mubr.bf16.gmra.mrb[0].mxu0 %v1835
  %v1915 = vpop.f32.mrb[0].mxu0
  %v1916 = vadd.f32 %v1876, %v1915
  %v1917 = vpop.f32.mrb[0].mxu0
  %v1918 = vpop.f32.mrb[0].mxu0
  %v1919 = vpop.f32.mrb[0].mxu0
  %1920 = vdwg.mxu0
  %v1921 = vmax.f32 %v1916, 0.0
  %v1922 = vpack.c.bf16 %v1921, %v1921
  %v1923 = vld [vmem:[%s7] sm:$0xf]
  %v1924 = vld [vmem:[%s7 + $0x4] sm:$0xf]
  %v1925 = vld [vmem:[%s7 + $0x8] sm:$0xf]
  %v1926 = vld [vmem:[%s7 + $0xc] sm:$0xf]
  %v1927 = vld [vmem:[%s7 + $0x10] sm:$0xf]
  %v1928 = vld [vmem:[%s7 + $0x14] sm:$0xf]
  %v1929 = vld [vmem:[%s7 + $0x18] sm:$0xf]
  %v1930 = vld [vmem:[%s7 + $0x1c] sm:$0xf]
  %v1931 = vld [vmem:[%s7 + $0x20] sm:$0xf]
  %v1932 = vld [vmem:[%s7 + $0x24] sm:$0xf]
  %v1933 = vld [vmem:[%s7 + $0x28] sm:$0xf]
  %v1934 = vld [vmem:[%s7 + $0x2c] sm:$0xf]
  %v1935 = vld [vmem:[%s7 + $0x30] sm:$0x3]
  %v1936 = vld [vmem:[%s8] sm:$0x1]
  %v1938 = vlaneseq
  %v1939 = vshrl.u32 %v1938, 7
  %v1940 = vsub.s32 0, %v1939
  %v1941 = vrot.slane %v1936, %v1940
  %v1956 = vunpack.c.l.b16 %v1923
  %v1957 = vunpack.c.l.b16 %v1924
  %v1958 = vunpack.c.l.b16 %v1925
  %v1959 = vunpack.c.l.b16 %v1926
  %v1960 = vunpack.c.l.b16 %v1927
  %v1961 = vunpack.c.l.b16 %v1928
  %v1962 = vunpack.c.l.b16 %v1929
  %v1963 = vunpack.c.l.b16 %v1930
  %v1964 = vunpack.c.l.b16 %v1931
  %v1965 = vunpack.c.l.b16 %v1932
  %v1966 = vunpack.c.l.b16 %v1933
  %v1967 = vunpack.c.l.b16 %v1934
  %v1968 = vunpack.c.l.b16 %v1935
  %v1969 = vpack.c.b16 %v1957, %v1956
  %v1970 = vpack.c.b16 %v1959, %v1958
  %v1971 = vpack.c.b16 %v1961, %v1960
  %v1972 = vpack.c.b16 %v1963, %v1962
  %v1973 = vpack.c.b16 %v1965, %v1964
  %v1974 = vpack.c.b16 %v1967, %v1966
  %v1975 = vpack.c.b16 %v1968, %v1968
  %vm1982 = vcmask 818176
  %v1984 = vsel %vm1982, %v1922, 0
  %v1987 = vsel %vm1497, %v1975, 0
  %1989 = vmatprep.subr.bf16.mxu0 0
  %1990 = vmatpush1.bf16.msra.mxu0 %v1969
  %1991 = vmatprep.subr.bf16.mxu0 0
  %1992 = vmatpush1.bf16.msra.mxu0 %v1970
  %1993 = vmatprep.subr.bf16.mxu0 0
  %1994 = vmatpush1.bf16.msra.mxu0 %v1971
  %1995 = vmatprep.subr.bf16.mxu0 0
  %1996 = vmatpush1.bf16.msra.mxu0 %v1972
  %1997 = vmatprep.subr.bf16.mxu0 0
  %1998 = vmatpush1.bf16.msra.mxu0 %v1973
  %1999 = vmatprep.subr.bf16.mxu0 0
  %2000 = vmatpush1.bf16.msra.mxu0 %v1974
  %2001 = vmatprep.subr.bf16.mxu0 0
  %2002 = vmatpush1.bf16.msra.mxu0 %v1987
  %2003 = vmatprep.subr.bf16.mxu0 0
  %2004 = vmatpush1.bf16.msra.mxu0 0
  %2005 = vmatprep.subr.bf16.mxu0 0
  %2006 = vmatpush1.bf16.msra.mxu0 0
  %2007 = vmatprep.subr.bf16.mxu0 0
  %2008 = vmatpush1.bf16.msra.mxu0 0
  %2009 = vmatprep.subr.bf16.mxu0 0
  %2010 = vmatpush1.bf16.msra.mxu0 0
  %2011 = vmatprep.subr.bf16.mxu0 0
  %2012 = vmatpush1.bf16.msra.mxu0 0
  %2013 = vmatprep.subr.bf16.mxu0 0
  %2014 = vmatpush1.bf16.msra.mxu0 0
  %2015 = vmatprep.subr.bf16.mxu0 0
  %2016 = vmatpush1.bf16.msra.mxu0 0
  %2017 = vmatprep.subr.bf16.mxu0 0
  %2018 = vmatpush1.bf16.msra.mxu0 0
  %2019 = vmatprep.subr.bf16.mxu0 0
  %2020 = vmatpush1.bf16.msra.mxu0 0
  %2021 = vmatprep.mubr.bf16.mxu0 0
  %2022 = vmatmul.mubr.bf16.gmra.mrb[0].mxu0 %v1984
  %v2023 = vpop.f32.mrb[0].mxu0
  %v2024 = vadd.f32 %v1941, %v2023
  %v2025 = vpop.f32.mrb[0].mxu0
  %v2026 = vpop.f32.mrb[0].mxu0
  %v2027 = vpop.f32.mrb[0].mxu0
  %2028 = vdwg.mxu0
  %2029 = vst [vmem:[%s9] sm:$0xff] %v2024
  // Predicated region
  $region38: #{net_forward.7} parent=0 // pred_check
    _
  $region39: #{net_forward.7} parent=0 // pred_check_branch
    %2031 = sbr.rel (0) target = $region41
  $region40: #{net_forward.7} parent=0 // pred_region
    _
  $region41: #{net_forward.7} parent=0 // pred_fallthru
    _
  // Predicated region
  $region42: #{net_forward.7} parent=0 // pred_check
    _
  $region43: #{net_forward.7} parent=0 // pred_check_branch
    %2033 = sbr.rel (0) target = $region45
  $region44: #{net_forward.7} parent=0 // pred_region
    _
  $region45: #{net_forward.7} parent=0 // pred_fallthru
    _

</llo_original>
